<compile_context>
chip_gen: v6e
topology: v6e:2x2x1
jax: 0.10.0
libtpu: 0.0.40
codegen_flags: <defaults>
</compile_context>

<pallas_src>
import jax
import jax.numpy as jnp
from jax import lax  # noqa: F401  (kept for clarity; loop is statically unrolled)
from jax.experimental import pallas as pl
from jax.experimental.pallas import tpu as pltpu

HIDDEN = 128      # LSTM hidden size (fixed by the module)
OUT = 2           # fc output classes
FC_LANE = 128     # lane-padded fc output width (sliced back to OUT in the wrapper)


# ---------------------------------------------------------------------------
# Fused kernel: 2-layer LSTM (PyTorch gate order i,f,g,o) + Linear on last step.
# ---------------------------------------------------------------------------
def _fused_lstm_kernel(x_ref, wih0_ref, whh0_ref, b0_ref,
                       wih1_ref, whh1_ref, b1_ref,
                       wfc_ref, bfc_ref, o_ref):
    """
    x_ref    : (T, Bp, E)   f32  embedded inputs, time-major, batch padded
    wih0_ref : (E, 4H)      bf16 W_ih layer 0 (transposed)
    whh0_ref : (H, 4H)      bf16 W_hh layer 0 (transposed)
    b0_ref   : (1, 4H)      f32  b_ih0 + b_hh0
    wih1_ref : (H, 4H)      bf16 W_ih layer 1 (transposed)
    whh1_ref : (H, 4H)      bf16 W_hh layer 1 (transposed)
    b1_ref   : (1, 4H)      f32  b_ih1 + b_hh1
    wfc_ref  : (H, FC_LANE) f32  zero-padded fc weight (first OUT columns real)
    bfc_ref  : (1, FC_LANE) f32  zero-padded fc bias
    o_ref    : (Bp, FC_LANE) f32 lane-dense output slab
    """
    T, Bp, E = x_ref.shape
    H = HIDDEN

    # ---- Hoisted layer-0 input projection: ONE (T*Bp, E)x(E, 4H) MXU matmul
    # covering every timestep, instead of T tiny matmuls inside the recurrence.
    x_flat = x_ref[...].reshape(T * Bp, E).astype(jnp.bfloat16)
    xg0 = jnp.dot(x_flat, wih0_ref[...],
                  preferred_element_type=jnp.float32) + b0_ref[...]   # (T*Bp, 4H)

    # Hoisted broadcast (JAX does not CSE broadcast_in_dim inside the loop).
    b1_full = jnp.broadcast_to(b1_ref[...], (Bp, 4 * H))

    zeros = jnp.zeros((Bp, H), jnp.float32)
    h0, c0, h1, c1 = zeros, zeros, zeros, zeros

    def gates_to_state(gates, c):
        # PyTorch LSTM gate order: input, forget, cell(g), output.
        i = jax.nn.sigmoid(gates[:, 0 * H:1 * H])
        f = jax.nn.sigmoid(gates[:, 1 * H:2 * H])
        g = jnp.tanh(gates[:, 2 * H:3 * H])
        o = jax.nn.sigmoid(gates[:, 3 * H:4 * H])
        c_new = f * c + i * g
        h_new = o * jnp.tanh(c_new)
        return h_new, c_new

    # Fully unrolled static time loop (T small): no per-step grid overhead;
    # h/c and the inter-layer activation stay on-core.
    for t in range(T):
        # Layer 0: recurrent part only (input part precomputed in xg0).
        g0 = xg0[t * Bp:(t + 1) * Bp, :] + jnp.dot(
            h0.astype(jnp.bfloat16), whh0_ref[...],
            preferred_element_type=jnp.float32)
        h0, c0 = gates_to_state(g0, c0)

        # TODO(synk): nn.LSTM inter-layer dropout(0.5) is train-only; eval forward is identity.
        # Layer 1: two K=128 matmuls (input = h0, recurrent = h1), no concat.
        g1 = (jnp.dot(h0.astype(jnp.bfloat16), wih1_ref[...],
                      preferred_element_type=jnp.float32)
              + jnp.dot(h1.astype(jnp.bfloat16), whh1_ref[...],
                        preferred_element_type=jnp.float32)
              + b1_full)
        h1, c1 = gates_to_state(g1, c1)

    # Final Linear(H, 2) on the last step, written into a lane-dense (Bp, 128)
    # slab (sliced back to (B, OUT) in the wrapper -> no masked partial stores).
    o_ref[...] = jnp.dot(h1, wfc_ref[...],
                         preferred_element_type=jnp.float32) + bfc_ref[...]


# ---------------------------------------------------------------------------
# Parameter packing (done once, outside the kernel).
# ---------------------------------------------------------------------------
def _pack_lstm(w_ih, w_hh, b_ih, b_hh):
    """PyTorch (4H,in)/(4H,H)/(4H,)/(4H,) -> (in,4H) bf16, (H,4H) bf16, (1,4H) f32."""
    return (w_ih.T.astype(jnp.bfloat16),
            w_hh.T.astype(jnp.bfloat16),
            (b_ih + b_hh).reshape(1, -1).astype(jnp.float32))


def _pack_fc(w_fc, b_fc):
    """PyTorch (OUT,H)/(OUT,) -> lane-padded ((H,128) f32, (1,128) f32)."""
    O, H = w_fc.shape
    w = jnp.zeros((H, FC_LANE), jnp.float32).at[:, :O].set(w_fc.T.astype(jnp.float32))
    b = jnp.zeros((1, FC_LANE), jnp.float32).at[:, :O].set(b_fc.astype(jnp.float32))
    return w, b


# ---------------------------------------------------------------------------
# Forward pass == Model.forward (eval mode).
# ---------------------------------------------------------------------------
def model_forward(tokens, emb, lstm0, lstm1, fc):
    """tokens: (B, T) int32 -> (B, OUT) f32."""
    B, T = tokens.shape
    wih0, whh0, b0 = lstm0
    wih1, whh1, b1 = lstm1
    wfc, bfc = fc

    # Embedding lookup (gather), produced directly in time-major layout.
    x = jnp.take(emb, tokens.T, axis=0).astype(jnp.float32)   # (T, B, E)

    Bp = max(8, ((B + 7) // 8) * 8)                            # pad batch to sublane min
    if Bp != B:
        x = jnp.pad(x, ((0, 0), (0, Bp - B), (0, 0)))

    vmem = pl.BlockSpec(memory_space=pltpu.MemorySpace.VMEM)   # everything fits in VMEM
    out_pad = pl.pallas_call(
        _fused_lstm_kernel,
        out_shape=jax.ShapeDtypeStruct((Bp, FC_LANE), jnp.float32),
        in_specs=[vmem] * 9,
        out_specs=vmem,
    )(x, wih0, whh0, b0, wih1, whh1, b1, wfc, bfc)

    return out_pad[:B, :OUT]


# ---------------------------------------------------------------------------
# Deterministic parameter init (mirrors the module's xavier_normal_/zeros loop;
# the PyTorch loop also xavier-inits embedding.weight since freeze=False).
# ---------------------------------------------------------------------------
def xavier_normal(key, shape):
    fan_out, fan_in = shape
    std = (2.0 / (fan_in + fan_out)) ** 0.5
    return std * jax.random.normal(key, shape, jnp.float32)


if __name__ == "__main__":
    VOCAB, EMBED, H = 32, 128, HIDDEN
    B, T = 4, 8

    keys = jax.random.split(jax.random.PRNGKey(0), 8)
    emb = xavier_normal(keys[0], (VOCAB, EMBED))
    # LSTM layer 0
    w_ih0 = xavier_normal(keys[1], (4 * H, EMBED))
    w_hh0 = xavier_normal(keys[2], (4 * H, H))
    # LSTM layer 1
    w_ih1 = xavier_normal(keys[3], (4 * H, H))
    w_hh1 = xavier_normal(keys[4], (4 * H, H))
    zeros4h = jnp.zeros((4 * H,), jnp.float32)
    # fc
    w_fc = xavier_normal(keys[5], (OUT, H))
    b_fc = jnp.zeros((OUT,), jnp.float32)

    lstm0 = _pack_lstm(w_ih0, w_hh0, zeros4h, zeros4h)
    lstm1 = _pack_lstm(w_ih1, w_hh1, zeros4h, zeros4h)
    fc = _pack_fc(w_fc, b_fc)

    tokens = jax.random.randint(keys[6], (B, T), 0, VOCAB, dtype=jnp.int32)

    fwd = jax.jit(lambda tok: model_forward(tok, emb, lstm0, lstm1, fc))
    out = fwd(tokens)
    jax.block_until_ready(out)

    assert out.shape == (B, OUT) and out.dtype == jnp.float32
    assert bool(jnp.all(jnp.isfinite(out)))
    print("KERNEL_OK")
</pallas_src>

<mosaic_0001>
module attributes {stable_mosaic.version = 11 : i64} {
  func.func @_fused_lstm_kernel(%arg0: memref<8x8x128xf32, #tpu.memory_space<vmem>>, %arg1: memref<128x512xbf16, #tpu.memory_space<vmem>>, %arg2: memref<128x512xbf16, #tpu.memory_space<vmem>>, %arg3: memref<1x512xf32, #tpu.memory_space<vmem>>, %arg4: memref<128x512xbf16, #tpu.memory_space<vmem>>, %arg5: memref<128x512xbf16, #tpu.memory_space<vmem>>, %arg6: memref<1x512xf32, #tpu.memory_space<vmem>>, %arg7: memref<128x128xf32, #tpu.memory_space<vmem>>, %arg8: memref<1x128xf32, #tpu.memory_space<vmem>>, %arg9: memref<8x128xf32, #tpu.memory_space<vmem>>) attributes {dimension_semantics = [], scalar_prefetch = 0 : i64, scratch_operands = 0 : i64, tpu.core_type = #tpu.core_type<tc>} {
    %c0 = arith.constant 0 : index
    %c0_0 = arith.constant 0 : index
    %c0_1 = arith.constant 0 : index
    %0 = vector.load %arg0[%c0, %c0_0, %c0_1] : memref<8x8x128xf32, #tpu.memory_space<vmem>>, vector<8x8x128xf32>
    %1 = vector.shape_cast %0 : vector<8x8x128xf32> to vector<64x128xf32>
    %2 = arith.truncf %1 : vector<64x128xf32> to vector<64x128xbf16>
    %c0_2 = arith.constant 0 : index
    %c0_3 = arith.constant 0 : index
    %3 = vector.load %arg1[%c0_2, %c0_3] : memref<128x512xbf16, #tpu.memory_space<vmem>>, vector<128x512xbf16>
    %cst = arith.constant dense<0.000000e+00> : vector<64x512xf32>
    %4 = tpu.matmul %2, %3, %cst {dimension_numbers = #tpu.dot_dimension_numbers<[1], [0], [0], [1], [0, 0, 1, 1], [], []>} : vector<64x128xbf16>, vector<128x512xbf16>, vector<64x512xf32> -> vector<64x512xf32>
    %c0_4 = arith.constant 0 : index
    %c0_5 = arith.constant 0 : index
    %5 = vector.load %arg3[%c0_4, %c0_5] : memref<1x512xf32, #tpu.memory_space<vmem>>, vector<1x512xf32>
    %6 = vector.broadcast %5 : vector<1x512xf32> to vector<64x512xf32>
    %7 = arith.addf %4, %6 : vector<64x512xf32>
    %c0_6 = arith.constant 0 : index
    %c0_7 = arith.constant 0 : index
    %8 = vector.load %arg6[%c0_6, %c0_7] : memref<1x512xf32, #tpu.memory_space<vmem>>, vector<1x512xf32>
    %9 = vector.shape_cast %8 : vector<1x512xf32> to vector<1x512xf32>
    %10 = vector.broadcast %9 : vector<1x512xf32> to vector<8x512xf32>
    %cst_8 = arith.constant 0.000000e+00 : f32
    %11 = vector.broadcast %cst_8 : f32 to vector<8x128xf32>
    %12 = vector.extract_strided_slice %7 {offsets = [0, 0], sizes = [8, 512], strides = [1, 1]} : vector<64x512xf32> to vector<8x512xf32>
    %13 = arith.truncf %11 : vector<8x128xf32> to vector<8x128xbf16>
    %c0_9 = arith.constant 0 : index
    %c0_10 = arith.constant 0 : index
    %14 = vector.load %arg2[%c0_9, %c0_10] : memref<128x512xbf16, #tpu.memory_space<vmem>>, vector<128x512xbf16>
    %cst_11 = arith.constant dense<0.000000e+00> : vector<8x512xf32>
    %15 = tpu.matmul %13, %14, %cst_11 {dimension_numbers = #tpu.dot_dimension_numbers<[1], [0], [0], [1], [0, 0, 1, 1], [], []>} : vector<8x128xbf16>, vector<128x512xbf16>, vector<8x512xf32> -> vector<8x512xf32>
    %16 = arith.addf %12, %15 : vector<8x512xf32>
    %17 = vector.extract_strided_slice %16 {offsets = [0, 0], sizes = [8, 128], strides = [1, 1]} : vector<8x512xf32> to vector<8x128xf32>
    %18 = arith.negf %17 : vector<8x128xf32>
    %19 = math.exp %18 : vector<8x128xf32>
    %cst_12 = arith.constant 1.000000e+00 : f32
    %20 = vector.broadcast %cst_12 : f32 to vector<8x128xf32>
    %21 = arith.addf %20, %19 : vector<8x128xf32>
    %22 = arith.divf %20, %21 : vector<8x128xf32>
    %23 = vector.extract_strided_slice %16 {offsets = [0, 128], sizes = [8, 128], strides = [1, 1]} : vector<8x512xf32> to vector<8x128xf32>
    %24 = arith.negf %23 : vector<8x128xf32>
    %25 = math.exp %24 : vector<8x128xf32>
    %cst_13 = arith.constant 1.000000e+00 : f32
    %26 = vector.broadcast %cst_13 : f32 to vector<8x128xf32>
    %27 = arith.addf %26, %25 : vector<8x128xf32>
    %28 = arith.divf %26, %27 : vector<8x128xf32>
    %29 = vector.extract_strided_slice %16 {offsets = [0, 256], sizes = [8, 128], strides = [1, 1]} : vector<8x512xf32> to vector<8x128xf32>
    %30 = math.tanh %29 : vector<8x128xf32>
    %31 = vector.extract_strided_slice %16 {offsets = [0, 384], sizes = [8, 128], strides = [1, 1]} : vector<8x512xf32> to vector<8x128xf32>
    %32 = arith.negf %31 : vector<8x128xf32>
    %33 = math.exp %32 : vector<8x128xf32>
    %cst_14 = arith.constant 1.000000e+00 : f32
    %34 = vector.broadcast %cst_14 : f32 to vector<8x128xf32>
    %35 = arith.addf %34, %33 : vector<8x128xf32>
    %36 = arith.divf %34, %35 : vector<8x128xf32>
    %37 = arith.mulf %28, %11 : vector<8x128xf32>
    %38 = arith.mulf %22, %30 : vector<8x128xf32>
    %39 = arith.addf %37, %38 : vector<8x128xf32>
    %40 = math.tanh %39 : vector<8x128xf32>
    %41 = arith.mulf %36, %40 : vector<8x128xf32>
    %42 = arith.truncf %41 : vector<8x128xf32> to vector<8x128xbf16>
    %c0_15 = arith.constant 0 : index
    %c0_16 = arith.constant 0 : index
    %43 = vector.load %arg4[%c0_15, %c0_16] : memref<128x512xbf16, #tpu.memory_space<vmem>>, vector<128x512xbf16>
    %cst_17 = arith.constant dense<0.000000e+00> : vector<8x512xf32>
    %44 = tpu.matmul %42, %43, %cst_17 {dimension_numbers = #tpu.dot_dimension_numbers<[1], [0], [0], [1], [0, 0, 1, 1], [], []>} : vector<8x128xbf16>, vector<128x512xbf16>, vector<8x512xf32> -> vector<8x512xf32>
    %45 = arith.truncf %11 : vector<8x128xf32> to vector<8x128xbf16>
    %c0_18 = arith.constant 0 : index
    %c0_19 = arith.constant 0 : index
    %46 = vector.load %arg5[%c0_18, %c0_19] : memref<128x512xbf16, #tpu.memory_space<vmem>>, vector<128x512xbf16>
    %cst_20 = arith.constant dense<0.000000e+00> : vector<8x512xf32>
    %47 = tpu.matmul %45, %46, %cst_20 {dimension_numbers = #tpu.dot_dimension_numbers<[1], [0], [0], [1], [0, 0, 1, 1], [], []>} : vector<8x128xbf16>, vector<128x512xbf16>, vector<8x512xf32> -> vector<8x512xf32>
    %48 = arith.addf %44, %47 : vector<8x512xf32>
    %49 = arith.addf %48, %10 : vector<8x512xf32>
    %50 = vector.extract_strided_slice %49 {offsets = [0, 0], sizes = [8, 128], strides = [1, 1]} : vector<8x512xf32> to vector<8x128xf32>
    %51 = arith.negf %50 : vector<8x128xf32>
    %52 = math.exp %51 : vector<8x128xf32>
    %cst_21 = arith.constant 1.000000e+00 : f32
    %53 = vector.broadcast %cst_21 : f32 to vector<8x128xf32>
    %54 = arith.addf %53, %52 : vector<8x128xf32>
    %55 = arith.divf %53, %54 : vector<8x128xf32>
    %56 = vector.extract_strided_slice %49 {offsets = [0, 128], sizes = [8, 128], strides = [1, 1]} : vector<8x512xf32> to vector<8x128xf32>
    %57 = arith.negf %56 : vector<8x128xf32>
    %58 = math.exp %57 : vector<8x128xf32>
    %cst_22 = arith.constant 1.000000e+00 : f32
    %59 = vector.broadcast %cst_22 : f32 to vector<8x128xf32>
    %60 = arith.addf %59, %58 : vector<8x128xf32>
    %61 = arith.divf %59, %60 : vector<8x128xf32>
    %62 = vector.extract_strided_slice %49 {offsets = [0, 256], sizes = [8, 128], strides = [1, 1]} : vector<8x512xf32> to vector<8x128xf32>
    %63 = math.tanh %62 : vector<8x128xf32>
    %64 = vector.extract_strided_slice %49 {offsets = [0, 384], sizes = [8, 128], strides = [1, 1]} : vector<8x512xf32> to vector<8x128xf32>
    %65 = arith.negf %64 : vector<8x128xf32>
    %66 = math.exp %65 : vector<8x128xf32>
    %cst_23 = arith.constant 1.000000e+00 : f32
    %67 = vector.broadcast %cst_23 : f32 to vector<8x128xf32>
    %68 = arith.addf %67, %66 : vector<8x128xf32>
    %69 = arith.divf %67, %68 : vector<8x128xf32>
    %70 = arith.mulf %61, %11 : vector<8x128xf32>
    %71 = arith.mulf %55, %63 : vector<8x128xf32>
    %72 = arith.addf %70, %71 : vector<8x128xf32>
    %73 = math.tanh %72 : vector<8x128xf32>
    %74 = arith.mulf %69, %73 : vector<8x128xf32>
    %75 = vector.extract_strided_slice %7 {offsets = [8, 0], sizes = [8, 512], strides = [1, 1]} : vector<64x512xf32> to vector<8x512xf32>
    %76 = arith.truncf %41 : vector<8x128xf32> to vector<8x128xbf16>
    %c0_24 = arith.constant 0 : index
    %c0_25 = arith.constant 0 : index
    %77 = vector.load %arg2[%c0_24, %c0_25] : memref<128x512xbf16, #tpu.memory_space<vmem>>, vector<128x512xbf16>
    %cst_26 = arith.constant dense<0.000000e+00> : vector<8x512xf32>
    %78 = tpu.matmul %76, %77, %cst_26 {dimension_numbers = #tpu.dot_dimension_numbers<[1], [0], [0], [1], [0, 0, 1, 1], [], []>} : vector<8x128xbf16>, vector<128x512xbf16>, vector<8x512xf32> -> vector<8x512xf32>
    %79 = arith.addf %75, %78 : vector<8x512xf32>
    %80 = vector.extract_strided_slice %79 {offsets = [0, 0], sizes = [8, 128], strides = [1, 1]} : vector<8x512xf32> to vector<8x128xf32>
    %81 = arith.negf %80 : vector<8x128xf32>
    %82 = math.exp %81 : vector<8x128xf32>
    %cst_27 = arith.constant 1.000000e+00 : f32
    %83 = vector.broadcast %cst_27 : f32 to vector<8x128xf32>
    %84 = arith.addf %83, %82 : vector<8x128xf32>
    %85 = arith.divf %83, %84 : vector<8x128xf32>
    %86 = vector.extract_strided_slice %79 {offsets = [0, 128], sizes = [8, 128], strides = [1, 1]} : vector<8x512xf32> to vector<8x128xf32>
    %87 = arith.negf %86 : vector<8x128xf32>
    %88 = math.exp %87 : vector<8x128xf32>
    %cst_28 = arith.constant 1.000000e+00 : f32
    %89 = vector.broadcast %cst_28 : f32 to vector<8x128xf32>
    %90 = arith.addf %89, %88 : vector<8x128xf32>
    %91 = arith.divf %89, %90 : vector<8x128xf32>
    %92 = vector.extract_strided_slice %79 {offsets = [0, 256], sizes = [8, 128], strides = [1, 1]} : vector<8x512xf32> to vector<8x128xf32>
    %93 = math.tanh %92 : vector<8x128xf32>
    %94 = vector.extract_strided_slice %79 {offsets = [0, 384], sizes = [8, 128], strides = [1, 1]} : vector<8x512xf32> to vector<8x128xf32>
    %95 = arith.negf %94 : vector<8x128xf32>
    %96 = math.exp %95 : vector<8x128xf32>
    %cst_29 = arith.constant 1.000000e+00 : f32
    %97 = vector.broadcast %cst_29 : f32 to vector<8x128xf32>
    %98 = arith.addf %97, %96 : vector<8x128xf32>
    %99 = arith.divf %97, %98 : vector<8x128xf32>
    %100 = arith.mulf %91, %39 : vector<8x128xf32>
    %101 = arith.mulf %85, %93 : vector<8x128xf32>
    %102 = arith.addf %100, %101 : vector<8x128xf32>
    %103 = math.tanh %102 : vector<8x128xf32>
    %104 = arith.mulf %99, %103 : vector<8x128xf32>
    %105 = arith.truncf %104 : vector<8x128xf32> to vector<8x128xbf16>
    %c0_30 = arith.constant 0 : index
    %c0_31 = arith.constant 0 : index
    %106 = vector.load %arg4[%c0_30, %c0_31] : memref<128x512xbf16, #tpu.memory_space<vmem>>, vector<128x512xbf16>
    %cst_32 = arith.constant dense<0.000000e+00> : vector<8x512xf32>
    %107 = tpu.matmul %105, %106, %cst_32 {dimension_numbers = #tpu.dot_dimension_numbers<[1], [0], [0], [1], [0, 0, 1, 1], [], []>} : vector<8x128xbf16>, vector<128x512xbf16>, vector<8x512xf32> -> vector<8x512xf32>
    %108 = arith.truncf %74 : vector<8x128xf32> to vector<8x128xbf16>
    %c0_33 = arith.constant 0 : index
    %c0_34 = arith.constant 0 : index
    %109 = vector.load %arg5[%c0_33, %c0_34] : memref<128x512xbf16, #tpu.memory_space<vmem>>, vector<128x512xbf16>
    %cst_35 = arith.constant dense<0.000000e+00> : vector<8x512xf32>
    %110 = tpu.matmul %108, %109, %cst_35 {dimension_numbers = #tpu.dot_dimension_numbers<[1], [0], [0], [1], [0, 0, 1, 1], [], []>} : vector<8x128xbf16>, vector<128x512xbf16>, vector<8x512xf32> -> vector<8x512xf32>
    %111 = arith.addf %107, %110 : vector<8x512xf32>
    %112 = arith.addf %111, %10 : vector<8x512xf32>
    %113 = vector.extract_strided_slice %112 {offsets = [0, 0], sizes = [8, 128], strides = [1, 1]} : vector<8x512xf32> to vector<8x128xf32>
    %114 = arith.negf %113 : vector<8x128xf32>
    %115 = math.exp %114 : vector<8x128xf32>
    %cst_36 = arith.constant 1.000000e+00 : f32
    %116 = vector.broadcast %cst_36 : f32 to vector<8x128xf32>
    %117 = arith.addf %116, %115 : vector<8x128xf32>
    %118 = arith.divf %116, %117 : vector<8x128xf32>
    %119 = vector.extract_strided_slice %112 {offsets = [0, 128], sizes = [8, 128], strides = [1, 1]} : vector<8x512xf32> to vector<8x128xf32>
    %120 = arith.negf %119 : vector<8x128xf32>
    %121 = math.exp %120 : vector<8x128xf32>
    %cst_37 = arith.constant 1.000000e+00 : f32
    %122 = vector.broadcast %cst_37 : f32 to vector<8x128xf32>
    %123 = arith.addf %122, %121 : vector<8x128xf32>
    %124 = arith.divf %122, %123 : vector<8x128xf32>
    %125 = vector.extract_strided_slice %112 {offsets = [0, 256], sizes = [8, 128], strides = [1, 1]} : vector<8x512xf32> to vector<8x128xf32>
    %126 = math.tanh %125 : vector<8x128xf32>
    %127 = vector.extract_strided_slice %112 {offsets = [0, 384], sizes = [8, 128], strides = [1, 1]} : vector<8x512xf32> to vector<8x128xf32>
    %128 = arith.negf %127 : vector<8x128xf32>
    %129 = math.exp %128 : vector<8x128xf32>
    %cst_38 = arith.constant 1.000000e+00 : f32
    %130 = vector.broadcast %cst_38 : f32 to vector<8x128xf32>
    %131 = arith.addf %130, %129 : vector<8x128xf32>
    %132 = arith.divf %130, %131 : vector<8x128xf32>
    %133 = arith.mulf %124, %72 : vector<8x128xf32>
    %134 = arith.mulf %118, %126 : vector<8x128xf32>
    %135 = arith.addf %133, %134 : vector<8x128xf32>
    %136 = math.tanh %135 : vector<8x128xf32>
    %137 = arith.mulf %132, %136 : vector<8x128xf32>
    %138 = vector.extract_strided_slice %7 {offsets = [16, 0], sizes = [8, 512], strides = [1, 1]} : vector<64x512xf32> to vector<8x512xf32>
    %139 = arith.truncf %104 : vector<8x128xf32> to vector<8x128xbf16>
    %c0_39 = arith.constant 0 : index
    %c0_40 = arith.constant 0 : index
    %140 = vector.load %arg2[%c0_39, %c0_40] : memref<128x512xbf16, #tpu.memory_space<vmem>>, vector<128x512xbf16>
    %cst_41 = arith.constant dense<0.000000e+00> : vector<8x512xf32>
    %141 = tpu.matmul %139, %140, %cst_41 {dimension_numbers = #tpu.dot_dimension_numbers<[1], [0], [0], [1], [0, 0, 1, 1], [], []>} : vector<8x128xbf16>, vector<128x512xbf16>, vector<8x512xf32> -> vector<8x512xf32>
    %142 = arith.addf %138, %141 : vector<8x512xf32>
    %143 = vector.extract_strided_slice %142 {offsets = [0, 0], sizes = [8, 128], strides = [1, 1]} : vector<8x512xf32> to vector<8x128xf32>
    %144 = arith.negf %143 : vector<8x128xf32>
    %145 = math.exp %144 : vector<8x128xf32>
    %cst_42 = arith.constant 1.000000e+00 : f32
    %146 = vector.broadcast %cst_42 : f32 to vector<8x128xf32>
    %147 = arith.addf %146, %145 : vector<8x128xf32>
    %148 = arith.divf %146, %147 : vector<8x128xf32>
    %149 = vector.extract_strided_slice %142 {offsets = [0, 128], sizes = [8, 128], strides = [1, 1]} : vector<8x512xf32> to vector<8x128xf32>
    %150 = arith.negf %149 : vector<8x128xf32>
    %151 = math.exp %150 : vector<8x128xf32>
    %cst_43 = arith.constant 1.000000e+00 : f32
    %152 = vector.broadcast %cst_43 : f32 to vector<8x128xf32>
    %153 = arith.addf %152, %151 : vector<8x128xf32>
    %154 = arith.divf %152, %153 : vector<8x128xf32>
    %155 = vector.extract_strided_slice %142 {offsets = [0, 256], sizes = [8, 128], strides = [1, 1]} : vector<8x512xf32> to vector<8x128xf32>
    %156 = math.tanh %155 : vector<8x128xf32>
    %157 = vector.extract_strided_slice %142 {offsets = [0, 384], sizes = [8, 128], strides = [1, 1]} : vector<8x512xf32> to vector<8x128xf32>
    %158 = arith.negf %157 : vector<8x128xf32>
    %159 = math.exp %158 : vector<8x128xf32>
    %cst_44 = arith.constant 1.000000e+00 : f32
    %160 = vector.broadcast %cst_44 : f32 to vector<8x128xf32>
    %161 = arith.addf %160, %159 : vector<8x128xf32>
    %162 = arith.divf %160, %161 : vector<8x128xf32>
    %163 = arith.mulf %154, %102 : vector<8x128xf32>
    %164 = arith.mulf %148, %156 : vector<8x128xf32>
    %165 = arith.addf %163, %164 : vector<8x128xf32>
    %166 = math.tanh %165 : vector<8x128xf32>
    %167 = arith.mulf %162, %166 : vector<8x128xf32>
    %168 = arith.truncf %167 : vector<8x128xf32> to vector<8x128xbf16>
    %c0_45 = arith.constant 0 : index
    %c0_46 = arith.constant 0 : index
    %169 = vector.load %arg4[%c0_45, %c0_46] : memref<128x512xbf16, #tpu.memory_space<vmem>>, vector<128x512xbf16>
    %cst_47 = arith.constant dense<0.000000e+00> : vector<8x512xf32>
    %170 = tpu.matmul %168, %169, %cst_47 {dimension_numbers = #tpu.dot_dimension_numbers<[1], [0], [0], [1], [0, 0, 1, 1], [], []>} : vector<8x128xbf16>, vector<128x512xbf16>, vector<8x512xf32> -> vector<8x512xf32>
    %171 = arith.truncf %137 : vector<8x128xf32> to vector<8x128xbf16>
    %c0_48 = arith.constant 0 : index
    %c0_49 = arith.constant 0 : index
    %172 = vector.load %arg5[%c0_48, %c0_49] : memref<128x512xbf16, #tpu.memory_space<vmem>>, vector<128x512xbf16>
    %cst_50 = arith.constant dense<0.000000e+00> : vector<8x512xf32>
    %173 = tpu.matmul %171, %172, %cst_50 {dimension_numbers = #tpu.dot_dimension_numbers<[1], [0], [0], [1], [0, 0, 1, 1], [], []>} : vector<8x128xbf16>, vector<128x512xbf16>, vector<8x512xf32> -> vector<8x512xf32>
    %174 = arith.addf %170, %173 : vector<8x512xf32>
    %175 = arith.addf %174, %10 : vector<8x512xf32>
    %176 = vector.extract_strided_slice %175 {offsets = [0, 0], sizes = [8, 128], strides = [1, 1]} : vector<8x512xf32> to vector<8x128xf32>
    %177 = arith.negf %176 : vector<8x128xf32>
    %178 = math.exp %177 : vector<8x128xf32>
    %cst_51 = arith.constant 1.000000e+00 : f32
    %179 = vector.broadcast %cst_51 : f32 to vector<8x128xf32>
    %180 = arith.addf %179, %178 : vector<8x128xf32>
    %181 = arith.divf %179, %180 : vector<8x128xf32>
    %182 = vector.extract_strided_slice %175 {offsets = [0, 128], sizes = [8, 128], strides = [1, 1]} : vector<8x512xf32> to vector<8x128xf32>
    %183 = arith.negf %182 : vector<8x128xf32>
    %184 = math.exp %183 : vector<8x128xf32>
    %cst_52 = arith.constant 1.000000e+00 : f32
    %185 = vector.broadcast %cst_52 : f32 to vector<8x128xf32>
    %186 = arith.addf %185, %184 : vector<8x128xf32>
    %187 = arith.divf %185, %186 : vector<8x128xf32>
    %188 = vector.extract_strided_slice %175 {offsets = [0, 256], sizes = [8, 128], strides = [1, 1]} : vector<8x512xf32> to vector<8x128xf32>
    %189 = math.tanh %188 : vector<8x128xf32>
    %190 = vector.extract_strided_slice %175 {offsets = [0, 384], sizes = [8, 128], strides = [1, 1]} : vector<8x512xf32> to vector<8x128xf32>
    %191 = arith.negf %190 : vector<8x128xf32>
    %192 = math.exp %191 : vector<8x128xf32>
    %cst_53 = arith.constant 1.000000e+00 : f32
    %193 = vector.broadcast %cst_53 : f32 to vector<8x128xf32>
    %194 = arith.addf %193, %192 : vector<8x128xf32>
    %195 = arith.divf %193, %194 : vector<8x128xf32>
    %196 = arith.mulf %187, %135 : vector<8x128xf32>
    %197 = arith.mulf %181, %189 : vector<8x128xf32>
    %198 = arith.addf %196, %197 : vector<8x128xf32>
    %199 = math.tanh %198 : vector<8x128xf32>
    %200 = arith.mulf %195, %199 : vector<8x128xf32>
    %201 = vector.extract_strided_slice %7 {offsets = [24, 0], sizes = [8, 512], strides = [1, 1]} : vector<64x512xf32> to vector<8x512xf32>
    %202 = arith.truncf %167 : vector<8x128xf32> to vector<8x128xbf16>
    %c0_54 = arith.constant 0 : index
    %c0_55 = arith.constant 0 : index
    %203 = vector.load %arg2[%c0_54, %c0_55] : memref<128x512xbf16, #tpu.memory_space<vmem>>, vector<128x512xbf16>
    %cst_56 = arith.constant dense<0.000000e+00> : vector<8x512xf32>
    %204 = tpu.matmul %202, %203, %cst_56 {dimension_numbers = #tpu.dot_dimension_numbers<[1], [0], [0], [1], [0, 0, 1, 1], [], []>} : vector<8x128xbf16>, vector<128x512xbf16>, vector<8x512xf32> -> vector<8x512xf32>
    %205 = arith.addf %201, %204 : vector<8x512xf32>
    %206 = vector.extract_strided_slice %205 {offsets = [0, 0], sizes = [8, 128], strides = [1, 1]} : vector<8x512xf32> to vector<8x128xf32>
    %207 = arith.negf %206 : vector<8x128xf32>
    %208 = math.exp %207 : vector<8x128xf32>
    %cst_57 = arith.constant 1.000000e+00 : f32
    %209 = vector.broadcast %cst_57 : f32 to vector<8x128xf32>
    %210 = arith.addf %209, %208 : vector<8x128xf32>
    %211 = arith.divf %209, %210 : vector<8x128xf32>
    %212 = vector.extract_strided_slice %205 {offsets = [0, 128], sizes = [8, 128], strides = [1, 1]} : vector<8x512xf32> to vector<8x128xf32>
    %213 = arith.negf %212 : vector<8x128xf32>
    %214 = math.exp %213 : vector<8x128xf32>
    %cst_58 = arith.constant 1.000000e+00 : f32
    %215 = vector.broadcast %cst_58 : f32 to vector<8x128xf32>
    %216 = arith.addf %215, %214 : vector<8x128xf32>
    %217 = arith.divf %215, %216 : vector<8x128xf32>
    %218 = vector.extract_strided_slice %205 {offsets = [0, 256], sizes = [8, 128], strides = [1, 1]} : vector<8x512xf32> to vector<8x128xf32>
    %219 = math.tanh %218 : vector<8x128xf32>
    %220 = vector.extract_strided_slice %205 {offsets = [0, 384], sizes = [8, 128], strides = [1, 1]} : vector<8x512xf32> to vector<8x128xf32>
    %221 = arith.negf %220 : vector<8x128xf32>
    %222 = math.exp %221 : vector<8x128xf32>
    %cst_59 = arith.constant 1.000000e+00 : f32
    %223 = vector.broadcast %cst_59 : f32 to vector<8x128xf32>
    %224 = arith.addf %223, %222 : vector<8x128xf32>
    %225 = arith.divf %223, %224 : vector<8x128xf32>
    %226 = arith.mulf %217, %165 : vector<8x128xf32>
    %227 = arith.mulf %211, %219 : vector<8x128xf32>
    %228 = arith.addf %226, %227 : vector<8x128xf32>
    %229 = math.tanh %228 : vector<8x128xf32>
    %230 = arith.mulf %225, %229 : vector<8x128xf32>
    %231 = arith.truncf %230 : vector<8x128xf32> to vector<8x128xbf16>
    %c0_60 = arith.constant 0 : index
    %c0_61 = arith.constant 0 : index
    %232 = vector.load %arg4[%c0_60, %c0_61] : memref<128x512xbf16, #tpu.memory_space<vmem>>, vector<128x512xbf16>
    %cst_62 = arith.constant dense<0.000000e+00> : vector<8x512xf32>
    %233 = tpu.matmul %231, %232, %cst_62 {dimension_numbers = #tpu.dot_dimension_numbers<[1], [0], [0], [1], [0, 0, 1, 1], [], []>} : vector<8x128xbf16>, vector<128x512xbf16>, vector<8x512xf32> -> vector<8x512xf32>
    %234 = arith.truncf %200 : vector<8x128xf32> to vector<8x128xbf16>
    %c0_63 = arith.constant 0 : index
    %c0_64 = arith.constant 0 : index
    %235 = vector.load %arg5[%c0_63, %c0_64] : memref<128x512xbf16, #tpu.memory_space<vmem>>, vector<128x512xbf16>
    %cst_65 = arith.constant dense<0.000000e+00> : vector<8x512xf32>
    %236 = tpu.matmul %234, %235, %cst_65 {dimension_numbers = #tpu.dot_dimension_numbers<[1], [0], [0], [1], [0, 0, 1, 1], [], []>} : vector<8x128xbf16>, vector<128x512xbf16>, vector<8x512xf32> -> vector<8x512xf32>
    %237 = arith.addf %233, %236 : vector<8x512xf32>
    %238 = arith.addf %237, %10 : vector<8x512xf32>
    %239 = vector.extract_strided_slice %238 {offsets = [0, 0], sizes = [8, 128], strides = [1, 1]} : vector<8x512xf32> to vector<8x128xf32>
    %240 = arith.negf %239 : vector<8x128xf32>
    %241 = math.exp %240 : vector<8x128xf32>
    %cst_66 = arith.constant 1.000000e+00 : f32
    %242 = vector.broadcast %cst_66 : f32 to vector<8x128xf32>
    %243 = arith.addf %242, %241 : vector<8x128xf32>
    %244 = arith.divf %242, %243 : vector<8x128xf32>
    %245 = vector.extract_strided_slice %238 {offsets = [0, 128], sizes = [8, 128], strides = [1, 1]} : vector<8x512xf32> to vector<8x128xf32>
    %246 = arith.negf %245 : vector<8x128xf32>
    %247 = math.exp %246 : vector<8x128xf32>
    %cst_67 = arith.constant 1.000000e+00 : f32
    %248 = vector.broadcast %cst_67 : f32 to vector<8x128xf32>
    %249 = arith.addf %248, %247 : vector<8x128xf32>
    %250 = arith.divf %248, %249 : vector<8x128xf32>
    %251 = vector.extract_strided_slice %238 {offsets = [0, 256], sizes = [8, 128], strides = [1, 1]} : vector<8x512xf32> to vector<8x128xf32>
    %252 = math.tanh %251 : vector<8x128xf32>
    %253 = vector.extract_strided_slice %238 {offsets = [0, 384], sizes = [8, 128], strides = [1, 1]} : vector<8x512xf32> to vector<8x128xf32>
    %254 = arith.negf %253 : vector<8x128xf32>
    %255 = math.exp %254 : vector<8x128xf32>
    %cst_68 = arith.constant 1.000000e+00 : f32
    %256 = vector.broadcast %cst_68 : f32 to vector<8x128xf32>
    %257 = arith.addf %256, %255 : vector<8x128xf32>
    %258 = arith.divf %256, %257 : vector<8x128xf32>
    %259 = arith.mulf %250, %198 : vector<8x128xf32>
    %260 = arith.mulf %244, %252 : vector<8x128xf32>
    %261 = arith.addf %259, %260 : vector<8x128xf32>
    %262 = math.tanh %261 : vector<8x128xf32>
    %263 = arith.mulf %258, %262 : vector<8x128xf32>
    %264 = vector.extract_strided_slice %7 {offsets = [32, 0], sizes = [8, 512], strides = [1, 1]} : vector<64x512xf32> to vector<8x512xf32>
    %265 = arith.truncf %230 : vector<8x128xf32> to vector<8x128xbf16>
    %c0_69 = arith.constant 0 : index
    %c0_70 = arith.constant 0 : index
    %266 = vector.load %arg2[%c0_69, %c0_70] : memref<128x512xbf16, #tpu.memory_space<vmem>>, vector<128x512xbf16>
    %cst_71 = arith.constant dense<0.000000e+00> : vector<8x512xf32>
    %267 = tpu.matmul %265, %266, %cst_71 {dimension_numbers = #tpu.dot_dimension_numbers<[1], [0], [0], [1], [0, 0, 1, 1], [], []>} : vector<8x128xbf16>, vector<128x512xbf16>, vector<8x512xf32> -> vector<8x512xf32>
    %268 = arith.addf %264, %267 : vector<8x512xf32>
    %269 = vector.extract_strided_slice %268 {offsets = [0, 0], sizes = [8, 128], strides = [1, 1]} : vector<8x512xf32> to vector<8x128xf32>
    %270 = arith.negf %269 : vector<8x128xf32>
    %271 = math.exp %270 : vector<8x128xf32>
    %cst_72 = arith.constant 1.000000e+00 : f32
    %272 = vector.broadcast %cst_72 : f32 to vector<8x128xf32>
    %273 = arith.addf %272, %271 : vector<8x128xf32>
    %274 = arith.divf %272, %273 : vector<8x128xf32>
    %275 = vector.extract_strided_slice %268 {offsets = [0, 128], sizes = [8, 128], strides = [1, 1]} : vector<8x512xf32> to vector<8x128xf32>
    %276 = arith.negf %275 : vector<8x128xf32>
    %277 = math.exp %276 : vector<8x128xf32>
    %cst_73 = arith.constant 1.000000e+00 : f32
    %278 = vector.broadcast %cst_73 : f32 to vector<8x128xf32>
    %279 = arith.addf %278, %277 : vector<8x128xf32>
    %280 = arith.divf %278, %279 : vector<8x128xf32>
    %281 = vector.extract_strided_slice %268 {offsets = [0, 256], sizes = [8, 128], strides = [1, 1]} : vector<8x512xf32> to vector<8x128xf32>
    %282 = math.tanh %281 : vector<8x128xf32>
    %283 = vector.extract_strided_slice %268 {offsets = [0, 384], sizes = [8, 128], strides = [1, 1]} : vector<8x512xf32> to vector<8x128xf32>
    %284 = arith.negf %283 : vector<8x128xf32>
    %285 = math.exp %284 : vector<8x128xf32>
    %cst_74 = arith.constant 1.000000e+00 : f32
    %286 = vector.broadcast %cst_74 : f32 to vector<8x128xf32>
    %287 = arith.addf %286, %285 : vector<8x128xf32>
    %288 = arith.divf %286, %287 : vector<8x128xf32>
    %289 = arith.mulf %280, %228 : vector<8x128xf32>
    %290 = arith.mulf %274, %282 : vector<8x128xf32>
    %291 = arith.addf %289, %290 : vector<8x128xf32>
    %292 = math.tanh %291 : vector<8x128xf32>
    %293 = arith.mulf %288, %292 : vector<8x128xf32>
    %294 = arith.truncf %293 : vector<8x128xf32> to vector<8x128xbf16>
    %c0_75 = arith.constant 0 : index
    %c0_76 = arith.constant 0 : index
    %295 = vector.load %arg4[%c0_75, %c0_76] : memref<128x512xbf16, #tpu.memory_space<vmem>>, vector<128x512xbf16>
    %cst_77 = arith.constant dense<0.000000e+00> : vector<8x512xf32>
    %296 = tpu.matmul %294, %295, %cst_77 {dimension_numbers = #tpu.dot_dimension_numbers<[1], [0], [0], [1], [0, 0, 1, 1], [], []>} : vector<8x128xbf16>, vector<128x512xbf16>, vector<8x512xf32> -> vector<8x512xf32>
    %297 = arith.truncf %263 : vector<8x128xf32> to vector<8x128xbf16>
    %c0_78 = arith.constant 0 : index
    %c0_79 = arith.constant 0 : index
    %298 = vector.load %arg5[%c0_78, %c0_79] : memref<128x512xbf16, #tpu.memory_space<vmem>>, vector<128x512xbf16>
    %cst_80 = arith.constant dense<0.000000e+00> : vector<8x512xf32>
    %299 = tpu.matmul %297, %298, %cst_80 {dimension_numbers = #tpu.dot_dimension_numbers<[1], [0], [0], [1], [0, 0, 1, 1], [], []>} : vector<8x128xbf16>, vector<128x512xbf16>, vector<8x512xf32> -> vector<8x512xf32>
    %300 = arith.addf %296, %299 : vector<8x512xf32>
    %301 = arith.addf %300, %10 : vector<8x512xf32>
    %302 = vector.extract_strided_slice %301 {offsets = [0, 0], sizes = [8, 128], strides = [1, 1]} : vector<8x512xf32> to vector<8x128xf32>
    %303 = arith.negf %302 : vector<8x128xf32>
    %304 = math.exp %303 : vector<8x128xf32>
    %cst_81 = arith.constant 1.000000e+00 : f32
    %305 = vector.broadcast %cst_81 : f32 to vector<8x128xf32>
    %306 = arith.addf %305, %304 : vector<8x128xf32>
    %307 = arith.divf %305, %306 : vector<8x128xf32>
    %308 = vector.extract_strided_slice %301 {offsets = [0, 128], sizes = [8, 128], strides = [1, 1]} : vector<8x512xf32> to vector<8x128xf32>
    %309 = arith.negf %308 : vector<8x128xf32>
    %310 = math.exp %309 : vector<8x128xf32>
    %cst_82 = arith.constant 1.000000e+00 : f32
    %311 = vector.broadcast %cst_82 : f32 to vector<8x128xf32>
    %312 = arith.addf %311, %310 : vector<8x128xf32>
    %313 = arith.divf %311, %312 : vector<8x128xf32>
    %314 = vector.extract_strided_slice %301 {offsets = [0, 256], sizes = [8, 128], strides = [1, 1]} : vector<8x512xf32> to vector<8x128xf32>
    %315 = math.tanh %314 : vector<8x128xf32>
    %316 = vector.extract_strided_slice %301 {offsets = [0, 384], sizes = [8, 128], strides = [1, 1]} : vector<8x512xf32> to vector<8x128xf32>
    %317 = arith.negf %316 : vector<8x128xf32>
    %318 = math.exp %317 : vector<8x128xf32>
    %cst_83 = arith.constant 1.000000e+00 : f32
    %319 = vector.broadcast %cst_83 : f32 to vector<8x128xf32>
    %320 = arith.addf %319, %318 : vector<8x128xf32>
    %321 = arith.divf %319, %320 : vector<8x128xf32>
    %322 = arith.mulf %313, %261 : vector<8x128xf32>
    %323 = arith.mulf %307, %315 : vector<8x128xf32>
    %324 = arith.addf %322, %323 : vector<8x128xf32>
    %325 = math.tanh %324 : vector<8x128xf32>
    %326 = arith.mulf %321, %325 : vector<8x128xf32>
    %327 = vector.extract_strided_slice %7 {offsets = [40, 0], sizes = [8, 512], strides = [1, 1]} : vector<64x512xf32> to vector<8x512xf32>
    %328 = arith.truncf %293 : vector<8x128xf32> to vector<8x128xbf16>
    %c0_84 = arith.constant 0 : index
    %c0_85 = arith.constant 0 : index
    %329 = vector.load %arg2[%c0_84, %c0_85] : memref<128x512xbf16, #tpu.memory_space<vmem>>, vector<128x512xbf16>
    %cst_86 = arith.constant dense<0.000000e+00> : vector<8x512xf32>
    %330 = tpu.matmul %328, %329, %cst_86 {dimension_numbers = #tpu.dot_dimension_numbers<[1], [0], [0], [1], [0, 0, 1, 1], [], []>} : vector<8x128xbf16>, vector<128x512xbf16>, vector<8x512xf32> -> vector<8x512xf32>
    %331 = arith.addf %327, %330 : vector<8x512xf32>
    %332 = vector.extract_strided_slice %331 {offsets = [0, 0], sizes = [8, 128], strides = [1, 1]} : vector<8x512xf32> to vector<8x128xf32>
    %333 = arith.negf %332 : vector<8x128xf32>
    %334 = math.exp %333 : vector<8x128xf32>
    %cst_87 = arith.constant 1.000000e+00 : f32
    %335 = vector.broadcast %cst_87 : f32 to vector<8x128xf32>
    %336 = arith.addf %335, %334 : vector<8x128xf32>
    %337 = arith.divf %335, %336 : vector<8x128xf32>
    %338 = vector.extract_strided_slice %331 {offsets = [0, 128], sizes = [8, 128], strides = [1, 1]} : vector<8x512xf32> to vector<8x128xf32>
    %339 = arith.negf %338 : vector<8x128xf32>
    %340 = math.exp %339 : vector<8x128xf32>
    %cst_88 = arith.constant 1.000000e+00 : f32
    %341 = vector.broadcast %cst_88 : f32 to vector<8x128xf32>
    %342 = arith.addf %341, %340 : vector<8x128xf32>
    %343 = arith.divf %341, %342 : vector<8x128xf32>
    %344 = vector.extract_strided_slice %331 {offsets = [0, 256], sizes = [8, 128], strides = [1, 1]} : vector<8x512xf32> to vector<8x128xf32>
    %345 = math.tanh %344 : vector<8x128xf32>
    %346 = vector.extract_strided_slice %331 {offsets = [0, 384], sizes = [8, 128], strides = [1, 1]} : vector<8x512xf32> to vector<8x128xf32>
    %347 = arith.negf %346 : vector<8x128xf32>
    %348 = math.exp %347 : vector<8x128xf32>
    %cst_89 = arith.constant 1.000000e+00 : f32
    %349 = vector.broadcast %cst_89 : f32 to vector<8x128xf32>
    %350 = arith.addf %349, %348 : vector<8x128xf32>
    %351 = arith.divf %349, %350 : vector<8x128xf32>
    %352 = arith.mulf %343, %291 : vector<8x128xf32>
    %353 = arith.mulf %337, %345 : vector<8x128xf32>
    %354 = arith.addf %352, %353 : vector<8x128xf32>
    %355 = math.tanh %354 : vector<8x128xf32>
    %356 = arith.mulf %351, %355 : vector<8x128xf32>
    %357 = arith.truncf %356 : vector<8x128xf32> to vector<8x128xbf16>
    %c0_90 = arith.constant 0 : index
    %c0_91 = arith.constant 0 : index
    %358 = vector.load %arg4[%c0_90, %c0_91] : memref<128x512xbf16, #tpu.memory_space<vmem>>, vector<128x512xbf16>
    %cst_92 = arith.constant dense<0.000000e+00> : vector<8x512xf32>
    %359 = tpu.matmul %357, %358, %cst_92 {dimension_numbers = #tpu.dot_dimension_numbers<[1], [0], [0], [1], [0, 0, 1, 1], [], []>} : vector<8x128xbf16>, vector<128x512xbf16>, vector<8x512xf32> -> vector<8x512xf32>
    %360 = arith.truncf %326 : vector<8x128xf32> to vector<8x128xbf16>
    %c0_93 = arith.constant 0 : index
    %c0_94 = arith.constant 0 : index
    %361 = vector.load %arg5[%c0_93, %c0_94] : memref<128x512xbf16, #tpu.memory_space<vmem>>, vector<128x512xbf16>
    %cst_95 = arith.constant dense<0.000000e+00> : vector<8x512xf32>
    %362 = tpu.matmul %360, %361, %cst_95 {dimension_numbers = #tpu.dot_dimension_numbers<[1], [0], [0], [1], [0, 0, 1, 1], [], []>} : vector<8x128xbf16>, vector<128x512xbf16>, vector<8x512xf32> -> vector<8x512xf32>
    %363 = arith.addf %359, %362 : vector<8x512xf32>
    %364 = arith.addf %363, %10 : vector<8x512xf32>
    %365 = vector.extract_strided_slice %364 {offsets = [0, 0], sizes = [8, 128], strides = [1, 1]} : vector<8x512xf32> to vector<8x128xf32>
    %366 = arith.negf %365 : vector<8x128xf32>
    %367 = math.exp %366 : vector<8x128xf32>
    %cst_96 = arith.constant 1.000000e+00 : f32
    %368 = vector.broadcast %cst_96 : f32 to vector<8x128xf32>
    %369 = arith.addf %368, %367 : vector<8x128xf32>
    %370 = arith.divf %368, %369 : vector<8x128xf32>
    %371 = vector.extract_strided_slice %364 {offsets = [0, 128], sizes = [8, 128], strides = [1, 1]} : vector<8x512xf32> to vector<8x128xf32>
    %372 = arith.negf %371 : vector<8x128xf32>
    %373 = math.exp %372 : vector<8x128xf32>
    %cst_97 = arith.constant 1.000000e+00 : f32
    %374 = vector.broadcast %cst_97 : f32 to vector<8x128xf32>
    %375 = arith.addf %374, %373 : vector<8x128xf32>
    %376 = arith.divf %374, %375 : vector<8x128xf32>
    %377 = vector.extract_strided_slice %364 {offsets = [0, 256], sizes = [8, 128], strides = [1, 1]} : vector<8x512xf32> to vector<8x128xf32>
    %378 = math.tanh %377 : vector<8x128xf32>
    %379 = vector.extract_strided_slice %364 {offsets = [0, 384], sizes = [8, 128], strides = [1, 1]} : vector<8x512xf32> to vector<8x128xf32>
    %380 = arith.negf %379 : vector<8x128xf32>
    %381 = math.exp %380 : vector<8x128xf32>
    %cst_98 = arith.constant 1.000000e+00 : f32
    %382 = vector.broadcast %cst_98 : f32 to vector<8x128xf32>
    %383 = arith.addf %382, %381 : vector<8x128xf32>
    %384 = arith.divf %382, %383 : vector<8x128xf32>
    %385 = arith.mulf %376, %324 : vector<8x128xf32>
    %386 = arith.mulf %370, %378 : vector<8x128xf32>
    %387 = arith.addf %385, %386 : vector<8x128xf32>
    %388 = math.tanh %387 : vector<8x128xf32>
    %389 = arith.mulf %384, %388 : vector<8x128xf32>
    %390 = vector.extract_strided_slice %7 {offsets = [48, 0], sizes = [8, 512], strides = [1, 1]} : vector<64x512xf32> to vector<8x512xf32>
    %391 = arith.truncf %356 : vector<8x128xf32> to vector<8x128xbf16>
    %c0_99 = arith.constant 0 : index
    %c0_100 = arith.constant 0 : index
    %392 = vector.load %arg2[%c0_99, %c0_100] : memref<128x512xbf16, #tpu.memory_space<vmem>>, vector<128x512xbf16>
    %cst_101 = arith.constant dense<0.000000e+00> : vector<8x512xf32>
    %393 = tpu.matmul %391, %392, %cst_101 {dimension_numbers = #tpu.dot_dimension_numbers<[1], [0], [0], [1], [0, 0, 1, 1], [], []>} : vector<8x128xbf16>, vector<128x512xbf16>, vector<8x512xf32> -> vector<8x512xf32>
    %394 = arith.addf %390, %393 : vector<8x512xf32>
    %395 = vector.extract_strided_slice %394 {offsets = [0, 0], sizes = [8, 128], strides = [1, 1]} : vector<8x512xf32> to vector<8x128xf32>
    %396 = arith.negf %395 : vector<8x128xf32>
    %397 = math.exp %396 : vector<8x128xf32>
    %cst_102 = arith.constant 1.000000e+00 : f32
    %398 = vector.broadcast %cst_102 : f32 to vector<8x128xf32>
    %399 = arith.addf %398, %397 : vector<8x128xf32>
    %400 = arith.divf %398, %399 : vector<8x128xf32>
    %401 = vector.extract_strided_slice %394 {offsets = [0, 128], sizes = [8, 128], strides = [1, 1]} : vector<8x512xf32> to vector<8x128xf32>
    %402 = arith.negf %401 : vector<8x128xf32>
    %403 = math.exp %402 : vector<8x128xf32>
    %cst_103 = arith.constant 1.000000e+00 : f32
    %404 = vector.broadcast %cst_103 : f32 to vector<8x128xf32>
    %405 = arith.addf %404, %403 : vector<8x128xf32>
    %406 = arith.divf %404, %405 : vector<8x128xf32>
    %407 = vector.extract_strided_slice %394 {offsets = [0, 256], sizes = [8, 128], strides = [1, 1]} : vector<8x512xf32> to vector<8x128xf32>
    %408 = math.tanh %407 : vector<8x128xf32>
    %409 = vector.extract_strided_slice %394 {offsets = [0, 384], sizes = [8, 128], strides = [1, 1]} : vector<8x512xf32> to vector<8x128xf32>
    %410 = arith.negf %409 : vector<8x128xf32>
    %411 = math.exp %410 : vector<8x128xf32>
    %cst_104 = arith.constant 1.000000e+00 : f32
    %412 = vector.broadcast %cst_104 : f32 to vector<8x128xf32>
    %413 = arith.addf %412, %411 : vector<8x128xf32>
    %414 = arith.divf %412, %413 : vector<8x128xf32>
    %415 = arith.mulf %406, %354 : vector<8x128xf32>
    %416 = arith.mulf %400, %408 : vector<8x128xf32>
    %417 = arith.addf %415, %416 : vector<8x128xf32>
    %418 = math.tanh %417 : vector<8x128xf32>
    %419 = arith.mulf %414, %418 : vector<8x128xf32>
    %420 = arith.truncf %419 : vector<8x128xf32> to vector<8x128xbf16>
    %c0_105 = arith.constant 0 : index
    %c0_106 = arith.constant 0 : index
    %421 = vector.load %arg4[%c0_105, %c0_106] : memref<128x512xbf16, #tpu.memory_space<vmem>>, vector<128x512xbf16>
    %cst_107 = arith.constant dense<0.000000e+00> : vector<8x512xf32>
    %422 = tpu.matmul %420, %421, %cst_107 {dimension_numbers = #tpu.dot_dimension_numbers<[1], [0], [0], [1], [0, 0, 1, 1], [], []>} : vector<8x128xbf16>, vector<128x512xbf16>, vector<8x512xf32> -> vector<8x512xf32>
    %423 = arith.truncf %389 : vector<8x128xf32> to vector<8x128xbf16>
    %c0_108 = arith.constant 0 : index
    %c0_109 = arith.constant 0 : index
    %424 = vector.load %arg5[%c0_108, %c0_109] : memref<128x512xbf16, #tpu.memory_space<vmem>>, vector<128x512xbf16>
    %cst_110 = arith.constant dense<0.000000e+00> : vector<8x512xf32>
    %425 = tpu.matmul %423, %424, %cst_110 {dimension_numbers = #tpu.dot_dimension_numbers<[1], [0], [0], [1], [0, 0, 1, 1], [], []>} : vector<8x128xbf16>, vector<128x512xbf16>, vector<8x512xf32> -> vector<8x512xf32>
    %426 = arith.addf %422, %425 : vector<8x512xf32>
    %427 = arith.addf %426, %10 : vector<8x512xf32>
    %428 = vector.extract_strided_slice %427 {offsets = [0, 0], sizes = [8, 128], strides = [1, 1]} : vector<8x512xf32> to vector<8x128xf32>
    %429 = arith.negf %428 : vector<8x128xf32>
    %430 = math.exp %429 : vector<8x128xf32>
    %cst_111 = arith.constant 1.000000e+00 : f32
    %431 = vector.broadcast %cst_111 : f32 to vector<8x128xf32>
    %432 = arith.addf %431, %430 : vector<8x128xf32>
    %433 = arith.divf %431, %432 : vector<8x128xf32>
    %434 = vector.extract_strided_slice %427 {offsets = [0, 128], sizes = [8, 128], strides = [1, 1]} : vector<8x512xf32> to vector<8x128xf32>
    %435 = arith.negf %434 : vector<8x128xf32>
    %436 = math.exp %435 : vector<8x128xf32>
    %cst_112 = arith.constant 1.000000e+00 : f32
    %437 = vector.broadcast %cst_112 : f32 to vector<8x128xf32>
    %438 = arith.addf %437, %436 : vector<8x128xf32>
    %439 = arith.divf %437, %438 : vector<8x128xf32>
    %440 = vector.extract_strided_slice %427 {offsets = [0, 256], sizes = [8, 128], strides = [1, 1]} : vector<8x512xf32> to vector<8x128xf32>
    %441 = math.tanh %440 : vector<8x128xf32>
    %442 = vector.extract_strided_slice %427 {offsets = [0, 384], sizes = [8, 128], strides = [1, 1]} : vector<8x512xf32> to vector<8x128xf32>
    %443 = arith.negf %442 : vector<8x128xf32>
    %444 = math.exp %443 : vector<8x128xf32>
    %cst_113 = arith.constant 1.000000e+00 : f32
    %445 = vector.broadcast %cst_113 : f32 to vector<8x128xf32>
    %446 = arith.addf %445, %444 : vector<8x128xf32>
    %447 = arith.divf %445, %446 : vector<8x128xf32>
    %448 = arith.mulf %439, %387 : vector<8x128xf32>
    %449 = arith.mulf %433, %441 : vector<8x128xf32>
    %450 = arith.addf %448, %449 : vector<8x128xf32>
    %451 = math.tanh %450 : vector<8x128xf32>
    %452 = arith.mulf %447, %451 : vector<8x128xf32>
    %453 = vector.extract_strided_slice %7 {offsets = [56, 0], sizes = [8, 512], strides = [1, 1]} : vector<64x512xf32> to vector<8x512xf32>
    %454 = arith.truncf %419 : vector<8x128xf32> to vector<8x128xbf16>
    %c0_114 = arith.constant 0 : index
    %c0_115 = arith.constant 0 : index
    %455 = vector.load %arg2[%c0_114, %c0_115] : memref<128x512xbf16, #tpu.memory_space<vmem>>, vector<128x512xbf16>
    %cst_116 = arith.constant dense<0.000000e+00> : vector<8x512xf32>
    %456 = tpu.matmul %454, %455, %cst_116 {dimension_numbers = #tpu.dot_dimension_numbers<[1], [0], [0], [1], [0, 0, 1, 1], [], []>} : vector<8x128xbf16>, vector<128x512xbf16>, vector<8x512xf32> -> vector<8x512xf32>
    %457 = arith.addf %453, %456 : vector<8x512xf32>
    %458 = vector.extract_strided_slice %457 {offsets = [0, 0], sizes = [8, 128], strides = [1, 1]} : vector<8x512xf32> to vector<8x128xf32>
    %459 = arith.negf %458 : vector<8x128xf32>
    %460 = math.exp %459 : vector<8x128xf32>
    %cst_117 = arith.constant 1.000000e+00 : f32
    %461 = vector.broadcast %cst_117 : f32 to vector<8x128xf32>
    %462 = arith.addf %461, %460 : vector<8x128xf32>
    %463 = arith.divf %461, %462 : vector<8x128xf32>
    %464 = vector.extract_strided_slice %457 {offsets = [0, 128], sizes = [8, 128], strides = [1, 1]} : vector<8x512xf32> to vector<8x128xf32>
    %465 = arith.negf %464 : vector<8x128xf32>
    %466 = math.exp %465 : vector<8x128xf32>
    %cst_118 = arith.constant 1.000000e+00 : f32
    %467 = vector.broadcast %cst_118 : f32 to vector<8x128xf32>
    %468 = arith.addf %467, %466 : vector<8x128xf32>
    %469 = arith.divf %467, %468 : vector<8x128xf32>
    %470 = vector.extract_strided_slice %457 {offsets = [0, 256], sizes = [8, 128], strides = [1, 1]} : vector<8x512xf32> to vector<8x128xf32>
    %471 = math.tanh %470 : vector<8x128xf32>
    %472 = vector.extract_strided_slice %457 {offsets = [0, 384], sizes = [8, 128], strides = [1, 1]} : vector<8x512xf32> to vector<8x128xf32>
    %473 = arith.negf %472 : vector<8x128xf32>
    %474 = math.exp %473 : vector<8x128xf32>
    %cst_119 = arith.constant 1.000000e+00 : f32
    %475 = vector.broadcast %cst_119 : f32 to vector<8x128xf32>
    %476 = arith.addf %475, %474 : vector<8x128xf32>
    %477 = arith.divf %475, %476 : vector<8x128xf32>
    %478 = arith.mulf %469, %417 : vector<8x128xf32>
    %479 = arith.mulf %463, %471 : vector<8x128xf32>
    %480 = arith.addf %478, %479 : vector<8x128xf32>
    %481 = math.tanh %480 : vector<8x128xf32>
    %482 = arith.mulf %477, %481 : vector<8x128xf32>
    %483 = arith.truncf %482 : vector<8x128xf32> to vector<8x128xbf16>
    %c0_120 = arith.constant 0 : index
    %c0_121 = arith.constant 0 : index
    %484 = vector.load %arg4[%c0_120, %c0_121] : memref<128x512xbf16, #tpu.memory_space<vmem>>, vector<128x512xbf16>
    %cst_122 = arith.constant dense<0.000000e+00> : vector<8x512xf32>
    %485 = tpu.matmul %483, %484, %cst_122 {dimension_numbers = #tpu.dot_dimension_numbers<[1], [0], [0], [1], [0, 0, 1, 1], [], []>} : vector<8x128xbf16>, vector<128x512xbf16>, vector<8x512xf32> -> vector<8x512xf32>
    %486 = arith.truncf %452 : vector<8x128xf32> to vector<8x128xbf16>
    %c0_123 = arith.constant 0 : index
    %c0_124 = arith.constant 0 : index
    %487 = vector.load %arg5[%c0_123, %c0_124] : memref<128x512xbf16, #tpu.memory_space<vmem>>, vector<128x512xbf16>
    %cst_125 = arith.constant dense<0.000000e+00> : vector<8x512xf32>
    %488 = tpu.matmul %486, %487, %cst_125 {dimension_numbers = #tpu.dot_dimension_numbers<[1], [0], [0], [1], [0, 0, 1, 1], [], []>} : vector<8x128xbf16>, vector<128x512xbf16>, vector<8x512xf32> -> vector<8x512xf32>
    %489 = arith.addf %485, %488 : vector<8x512xf32>
    %490 = arith.addf %489, %10 : vector<8x512xf32>
    %491 = vector.extract_strided_slice %490 {offsets = [0, 0], sizes = [8, 128], strides = [1, 1]} : vector<8x512xf32> to vector<8x128xf32>
    %492 = arith.negf %491 : vector<8x128xf32>
    %493 = math.exp %492 : vector<8x128xf32>
    %cst_126 = arith.constant 1.000000e+00 : f32
    %494 = vector.broadcast %cst_126 : f32 to vector<8x128xf32>
    %495 = arith.addf %494, %493 : vector<8x128xf32>
    %496 = arith.divf %494, %495 : vector<8x128xf32>
    %497 = vector.extract_strided_slice %490 {offsets = [0, 128], sizes = [8, 128], strides = [1, 1]} : vector<8x512xf32> to vector<8x128xf32>
    %498 = arith.negf %497 : vector<8x128xf32>
    %499 = math.exp %498 : vector<8x128xf32>
    %cst_127 = arith.constant 1.000000e+00 : f32
    %500 = vector.broadcast %cst_127 : f32 to vector<8x128xf32>
    %501 = arith.addf %500, %499 : vector<8x128xf32>
    %502 = arith.divf %500, %501 : vector<8x128xf32>
    %503 = vector.extract_strided_slice %490 {offsets = [0, 256], sizes = [8, 128], strides = [1, 1]} : vector<8x512xf32> to vector<8x128xf32>
    %504 = math.tanh %503 : vector<8x128xf32>
    %505 = vector.extract_strided_slice %490 {offsets = [0, 384], sizes = [8, 128], strides = [1, 1]} : vector<8x512xf32> to vector<8x128xf32>
    %506 = arith.negf %505 : vector<8x128xf32>
    %507 = math.exp %506 : vector<8x128xf32>
    %cst_128 = arith.constant 1.000000e+00 : f32
    %508 = vector.broadcast %cst_128 : f32 to vector<8x128xf32>
    %509 = arith.addf %508, %507 : vector<8x128xf32>
    %510 = arith.divf %508, %509 : vector<8x128xf32>
    %511 = arith.mulf %502, %450 : vector<8x128xf32>
    %512 = arith.mulf %496, %504 : vector<8x128xf32>
    %513 = arith.addf %511, %512 : vector<8x128xf32>
    %514 = math.tanh %513 : vector<8x128xf32>
    %515 = arith.mulf %510, %514 : vector<8x128xf32>
    %c0_129 = arith.constant 0 : index
    %c0_130 = arith.constant 0 : index
    %516 = vector.load %arg7[%c0_129, %c0_130] : memref<128x128xf32, #tpu.memory_space<vmem>>, vector<128x128xf32>
    %cst_131 = arith.constant dense<0.000000e+00> : vector<8x128xf32>
    %517 = tpu.matmul %515, %516, %cst_131 {dimension_numbers = #tpu.dot_dimension_numbers<[1], [0], [0], [1], [0, 0, 1, 1], [], []>} : vector<8x128xf32>, vector<128x128xf32>, vector<8x128xf32> -> vector<8x128xf32>
    %c0_132 = arith.constant 0 : index
    %c0_133 = arith.constant 0 : index
    %518 = vector.load %arg8[%c0_132, %c0_133] : memref<1x128xf32, #tpu.memory_space<vmem>>, vector<1x128xf32>
    %519 = vector.broadcast %518 : vector<1x128xf32> to vector<8x128xf32>
    %520 = arith.addf %517, %519 : vector<8x128xf32>
    %c0_134 = arith.constant 0 : index
    %c0_135 = arith.constant 0 : index
    %521 = vector.load %arg9[%c0_134, %c0_135] : memref<8x128xf32, #tpu.memory_space<vmem>>, vector<8x128xf32>
    tpu.vector_store %arg9[%c0_134, %c0_135], %520 {strides = array<i32>} : memref<8x128xf32, #tpu.memory_space<vmem>>, vector<8x128xf32>,
    return
  }
}

</mosaic_0001>

<llo_original>
// kernel: _lambda_.1
$region0: #{_lambda_.1}
  #allocation0 [shape = 'u32[]', space=smem, size = 0x4, offset = 0x4, fixed_abs, tag = 'smem constant byte address 0x4 - core index']
  #allocation1 [shape = 'u32[144,128]{1,0:T(1,128)}', space=vmem, size = 0x12000, scoped, tag = 'internal scratch']
  %s0 = inlined_call_operand.vmem [shape: f32[8,8,128], index: 0, kind: input, shape index: {}]
  %s1 = inlined_call_operand.vmem [shape: bf16[128,512], index: 1, kind: input, shape index: {}]
  %s2 = inlined_call_operand.hbm [shape: bf16[128,512], index: 2, kind: input, shape index: {}]
  %s3 = inlined_call_operand.vmem [shape: f32[1,512], index: 3, kind: input, shape index: {}, may-alias: {3,6}]
  %s4 = inlined_call_operand.hbm [shape: bf16[128,512], index: 4, kind: input, shape index: {}]
  %s5 = inlined_call_operand.hbm [shape: bf16[128,512], index: 5, kind: input, shape index: {}]
  %s6 = inlined_call_operand.vmem [shape: f32[1,512], index: 6, kind: input, shape index: {}, may-alias: {3,6}]
  %s7 = inlined_call_operand.vmem [shape: f32[128,128], index: 7, kind: input, shape index: {}]
  %s8 = inlined_call_operand.vmem [shape: f32[1,128], index: 8, kind: input, shape index: {}]
  %s9 = inlined_call_operand.vmem [shape: f32[8,128], index: 9, kind: output, shape index: {}]
  %s10 = sld [smem:[#allocation0]]
  $region58: #{_lambda_.1} parent=0
    _
  %s12 = ssub.s32 1, %s10
  %s13 = scalar_select 0, %s12, %s10
  $region1: #{_lambda_.1} parent=0
    #allocation2 [shape = 'u8[131072]{0}', space=vmem, size = 0x20000, scoped, tag = 'input window, operand 2, single buffered']
    #allocation3 [shape = 's32[1]{0}', space=sflag, size = 0x4, scoped, tag = 'scoped memory for _lambda_.1']
    #allocation4 [shape = 'u8[131072]{0}', space=vmem, size = 0x20000, scoped, tag = 'input window, operand 4, single buffered']
    #allocation5 [shape = 's32[1]{0}', space=sflag, size = 0x4, scoped, tag = 'scoped memory for _lambda_.1']
    #allocation6 [shape = 'u8[131072]{0}', space=vmem, size = 0x20000, scoped, tag = 'input window, operand 5, single buffered']
    %14 = vsyncpa [#allocation3], 0
    %15 = vsyncpa [#allocation5], 0
    // Predicated region
    $region2: #{_lambda_.1} parent=1 // pred_check
      _
    $region3: #{_lambda_.1} parent=1 // pred_check_branch
      %17 = sbr.rel (0) target = $region5
    $region4: #{_lambda_.1} parent=1 // pred_region
      _
    $region5: #{_lambda_.1} parent=1 // pred_fallthru
      _
    // Predicated region
    $region6: #{_lambda_.1} parent=1 // pred_check
      _
    $region7: #{_lambda_.1} parent=1 // pred_check_branch
      %19 = sbr.rel (0) target = $region9
    $region8: #{_lambda_.1} parent=1 // pred_region
      _
    $region9: #{_lambda_.1} parent=1 // pred_fallthru
      _
    // Predicated region
    $region10: #{_lambda_.1} parent=1 // pred_check
      _
    $region11: #{_lambda_.1} parent=1 // pred_check_branch
      %21 = sbr.rel (0) target = $region13
    $region12: #{_lambda_.1} parent=1 // pred_region
      %s23 = ssub.s32 4096, 4096
      %24 = vsyncadd [#allocation3], %s23
      %s25 = sshll.u32 [#allocation2], 4
      %s26 = int_to_ptr.vmem [resolvable:$true] %s25
      %31 = dma.hbm_to_vmem [thread:$0]  %s2, 4096, %s26, [#allocation3], 256, 256, 16
    $region13: #{_lambda_.1} parent=1 // pred_fallthru
      _
    // Predicated region
    $region14: #{_lambda_.1} parent=1 // pred_check
      _
    $region15: #{_lambda_.1} parent=1 // pred_check_branch
      %33 = sbr.rel (0) target = $region17
    $region16: #{_lambda_.1} parent=1 // pred_region
      _
    $region17: #{_lambda_.1} parent=1 // pred_fallthru
      _
    // Predicated region
    $region18: #{_lambda_.1} parent=1 // pred_check
      _
    $region19: #{_lambda_.1} parent=1 // pred_check_branch
      %35 = sbr.rel (0) target = $region21
    $region20: #{_lambda_.1} parent=1 // pred_region
      %s37 = ssub.s32 4096, 4096
      %38 = vsyncadd [#allocation5], %s37
      %s39 = sshll.u32 [#allocation4], 4
      %s40 = int_to_ptr.vmem [resolvable:$true] %s39
      %45 = dma.hbm_to_vmem [thread:$0]  %s4, 4096, %s40, [#allocation5], 256, 256, 16
    $region21: #{_lambda_.1} parent=1 // pred_fallthru
      _
    // Predicated region
    $region22: #{_lambda_.1} parent=1 // pred_check
      _
    $region23: #{_lambda_.1} parent=1 // pred_check_branch
      %47 = sbr.rel (0) target = $region25
    $region24: #{_lambda_.1} parent=1 // pred_region
      %s49 = ssub.s32 4096, 4096
      %50 = vsyncadd [#allocation5], %s49
      %s51 = sshll.u32 [#allocation6], 4
      %s52 = int_to_ptr.vmem [resolvable:$true] %s51
      %57 = dma.hbm_to_vmem [thread:$0]  %s5, 4096, %s52, [#allocation5], 256, 256, 16
    $region25: #{_lambda_.1} parent=1 // pred_fallthru
      _
    // Predicated region
    $region26: #{_lambda_.1} parent=1 // pred_check
      _
    $region27: #{_lambda_.1} parent=1 // pred_check_branch
      %59 = sbr.rel (0) target = $region29
    $region28: #{_lambda_.1} parent=1 // pred_region
      _
    $region29: #{_lambda_.1} parent=1 // pred_fallthru
      _
    // Predicated region
    $region30: #{_lambda_.1} parent=1 // pred_check
      _
    $region31: #{_lambda_.1} parent=1 // pred_check_branch
      %61 = sbr.rel (0) target = $region33
    $region32: #{_lambda_.1} parent=1 // pred_region
      _
    $region33: #{_lambda_.1} parent=1 // pred_fallthru
      _
    // Predicated region
    $region34: #{_lambda_.1} parent=1 // pred_check
      _
    $region35: #{_lambda_.1} parent=1 // pred_check_branch
      %63 = sbr.rel (0) target = $region37
    $region36: #{_lambda_.1} parent=1 // pred_region
      _
    $region37: #{_lambda_.1} parent=1 // pred_fallthru
      _
    // Predicated region
    $region38: #{_lambda_.1} parent=1 // pred_check
      _
    $region39: #{_lambda_.1} parent=1 // pred_check_branch
      %65 = sbr.rel (0) target = $region41
    $region40: #{_lambda_.1} parent=1 // pred_region
      %66 = dma.done [#allocation3], 4096
    $region41: #{_lambda_.1} parent=1 // pred_fallthru
      _
    // Predicated region
    $region42: #{_lambda_.1} parent=1 // pred_check
      _
    $region43: #{_lambda_.1} parent=1 // pred_check_branch
      %68 = sbr.rel (0) target = $region45
    $region44: #{_lambda_.1} parent=1 // pred_region
      %69 = dma.done [#allocation5], 4096
    $region45: #{_lambda_.1} parent=1 // pred_fallthru
      _
    // Predicated region
    $region46: #{_lambda_.1} parent=1 // pred_check
      _
    $region47: #{_lambda_.1} parent=1 // pred_check_branch
      %71 = sbr.rel (0) target = $region49
    $region48: #{_lambda_.1} parent=1 // pred_region
      %72 = dma.done [#allocation5], 4096
    $region49: #{_lambda_.1} parent=1 // pred_fallthru
      _
    %v74 = vld [vmem:[%s0] sm:$0xff]
    %v75 = vld [vmem:[%s0 + $0x8] sm:$0xff]
    %v76 = vld [vmem:[%s0 + $0x10] sm:$0xff]
    %v77 = vld [vmem:[%s0 + $0x18] sm:$0xff]
    %v78 = vld [vmem:[%s0 + $0x20] sm:$0xff]
    %v79 = vld [vmem:[%s0 + $0x28] sm:$0xff]
    %v80 = vld [vmem:[%s0 + $0x30] sm:$0xff]
    %v81 = vld [vmem:[%s0 + $0x38] sm:$0xff]
    %v82 = vpack.c.bf16 %v75, %v74
    %v83 = vpack.c.bf16 %v77, %v76
    %v84 = vpack.c.bf16 %v79, %v78
    %v85 = vpack.c.bf16 %v81, %v80
    %v86 = vld [vmem:[%s1] sm:$0xff]
    %v87 = vld [vmem:[%s1 + $0x8] sm:$0xff]
    %v88 = vld [vmem:[%s1 + $0x10] sm:$0xff]
    %v89 = vld [vmem:[%s1 + $0x18] sm:$0xff]
    %v90 = vld [vmem:[%s1 + $0x20] sm:$0xff]
    %v91 = vld [vmem:[%s1 + $0x28] sm:$0xff]
    %v92 = vld [vmem:[%s1 + $0x30] sm:$0xff]
    %v93 = vld [vmem:[%s1 + $0x38] sm:$0xff]
    %v94 = vld [vmem:[%s1 + $0x40] sm:$0xff]
    %v95 = vld [vmem:[%s1 + $0x48] sm:$0xff]
    %v96 = vld [vmem:[%s1 + $0x50] sm:$0xff]
    %v97 = vld [vmem:[%s1 + $0x58] sm:$0xff]
    %v98 = vld [vmem:[%s1 + $0x60] sm:$0xff]
    %v99 = vld [vmem:[%s1 + $0x68] sm:$0xff]
    %v100 = vld [vmem:[%s1 + $0x70] sm:$0xff]
    %v101 = vld [vmem:[%s1 + $0x78] sm:$0xff]
    %v102 = vld [vmem:[%s1 + $0x80] sm:$0xff]
    %v103 = vld [vmem:[%s1 + $0x88] sm:$0xff]
    %v104 = vld [vmem:[%s1 + $0x90] sm:$0xff]
    %v105 = vld [vmem:[%s1 + $0x98] sm:$0xff]
    %v106 = vld [vmem:[%s1 + $0xa0] sm:$0xff]
    %v107 = vld [vmem:[%s1 + $0xa8] sm:$0xff]
    %v108 = vld [vmem:[%s1 + $0xb0] sm:$0xff]
    %v109 = vld [vmem:[%s1 + $0xb8] sm:$0xff]
    %v110 = vld [vmem:[%s1 + $0xc0] sm:$0xff]
    %v111 = vld [vmem:[%s1 + $0xc8] sm:$0xff]
    %v112 = vld [vmem:[%s1 + $0xd0] sm:$0xff]
    %v113 = vld [vmem:[%s1 + $0xd8] sm:$0xff]
    %v114 = vld [vmem:[%s1 + $0xe0] sm:$0xff]
    %v115 = vld [vmem:[%s1 + $0xe8] sm:$0xff]
    %v116 = vld [vmem:[%s1 + $0xf0] sm:$0xff]
    %v117 = vld [vmem:[%s1 + $0xf8] sm:$0xff]
    %v118 = vld [vmem:[%s3] sm:$0xf]
    %v120 = vlaneseq
    %v121 = vshrl.u32 %v120, 7
    %v122 = vsub.s32 0, %v121
    %v123 = vrot.slane %v118, %v122
    %v124 = vlaneseq
    %v125 = vshrl.u32 %v124, 7
    %v126 = vsub.s32 1, %v125
    %v127 = vrot.slane %v118, %v126
    %v128 = vlaneseq
    %v129 = vshrl.u32 %v128, 7
    %v130 = vsub.s32 2, %v129
    %v131 = vrot.slane %v118, %v130
    %v132 = vlaneseq
    %v133 = vshrl.u32 %v132, 7
    %v134 = vsub.s32 3, %v133
    %v135 = vrot.slane %v118, %v134
    %v172 = vunpack.c.l.b16 %v86
    %v173 = vunpack.c.h.b16 %v86
    %v174 = vunpack.c.l.b16 %v87
    %v175 = vunpack.c.h.b16 %v87
    %v176 = vunpack.c.l.b16 %v88
    %v177 = vunpack.c.h.b16 %v88
    %v178 = vunpack.c.l.b16 %v89
    %v179 = vunpack.c.h.b16 %v89
    %v180 = vunpack.c.l.b16 %v90
    %v181 = vunpack.c.h.b16 %v90
    %v182 = vunpack.c.l.b16 %v91
    %v183 = vunpack.c.h.b16 %v91
    %v184 = vunpack.c.l.b16 %v92
    %v185 = vunpack.c.h.b16 %v92
    %v186 = vunpack.c.l.b16 %v93
    %v187 = vunpack.c.h.b16 %v93
    %v188 = vunpack.c.l.b16 %v94
    %v189 = vunpack.c.h.b16 %v94
    %v190 = vunpack.c.l.b16 %v95
    %v191 = vunpack.c.h.b16 %v95
    %v192 = vunpack.c.l.b16 %v96
    %v193 = vunpack.c.h.b16 %v96
    %v194 = vunpack.c.l.b16 %v97
    %v195 = vunpack.c.h.b16 %v97
    %v196 = vunpack.c.l.b16 %v98
    %v197 = vunpack.c.h.b16 %v98
    %v198 = vunpack.c.l.b16 %v99
    %v199 = vunpack.c.h.b16 %v99
    %v200 = vunpack.c.l.b16 %v100
    %v201 = vunpack.c.h.b16 %v100
    %v202 = vunpack.c.l.b16 %v101
    %v203 = vunpack.c.h.b16 %v101
    %v204 = vunpack.c.l.b16 %v102
    %v205 = vunpack.c.h.b16 %v102
    %v206 = vunpack.c.l.b16 %v103
    %v207 = vunpack.c.h.b16 %v103
    %v208 = vunpack.c.l.b16 %v104
    %v209 = vunpack.c.h.b16 %v104
    %v210 = vunpack.c.l.b16 %v105
    %v211 = vunpack.c.h.b16 %v105
    %v212 = vunpack.c.l.b16 %v106
    %v213 = vunpack.c.h.b16 %v106
    %v214 = vunpack.c.l.b16 %v107
    %v215 = vunpack.c.h.b16 %v107
    %v216 = vunpack.c.l.b16 %v108
    %v217 = vunpack.c.h.b16 %v108
    %v218 = vunpack.c.l.b16 %v109
    %v219 = vunpack.c.h.b16 %v109
    %v220 = vunpack.c.l.b16 %v110
    %v221 = vunpack.c.h.b16 %v110
    %v222 = vunpack.c.l.b16 %v111
    %v223 = vunpack.c.h.b16 %v111
    %v224 = vunpack.c.l.b16 %v112
    %v225 = vunpack.c.h.b16 %v112
    %v226 = vunpack.c.l.b16 %v113
    %v227 = vunpack.c.h.b16 %v113
    %v228 = vunpack.c.l.b16 %v114
    %v229 = vunpack.c.h.b16 %v114
    %v230 = vunpack.c.l.b16 %v115
    %v231 = vunpack.c.h.b16 %v115
    %v232 = vunpack.c.l.b16 %v116
    %v233 = vunpack.c.h.b16 %v116
    %v234 = vunpack.c.l.b16 %v117
    %v235 = vunpack.c.h.b16 %v117
    %v236 = vpack.c.b16 %v176, %v172
    %v237 = vpack.c.b16 %v177, %v173
    %v238 = vpack.c.b16 %v178, %v174
    %v239 = vpack.c.b16 %v179, %v175
    %v240 = vpack.c.b16 %v184, %v180
    %v241 = vpack.c.b16 %v185, %v181
    %v242 = vpack.c.b16 %v186, %v182
    %v243 = vpack.c.b16 %v187, %v183
    %v244 = vpack.c.b16 %v192, %v188
    %v245 = vpack.c.b16 %v193, %v189
    %v246 = vpack.c.b16 %v194, %v190
    %v247 = vpack.c.b16 %v195, %v191
    %v248 = vpack.c.b16 %v200, %v196
    %v249 = vpack.c.b16 %v201, %v197
    %v250 = vpack.c.b16 %v202, %v198
    %v251 = vpack.c.b16 %v203, %v199
    %v252 = vpack.c.b16 %v208, %v204
    %v253 = vpack.c.b16 %v209, %v205
    %v254 = vpack.c.b16 %v210, %v206
    %v255 = vpack.c.b16 %v211, %v207
    %v256 = vpack.c.b16 %v216, %v212
    %v257 = vpack.c.b16 %v217, %v213
    %v258 = vpack.c.b16 %v218, %v214
    %v259 = vpack.c.b16 %v219, %v215
    %v260 = vpack.c.b16 %v224, %v220
    %v261 = vpack.c.b16 %v225, %v221
    %v262 = vpack.c.b16 %v226, %v222
    %v263 = vpack.c.b16 %v227, %v223
    %v264 = vpack.c.b16 %v232, %v228
    %v265 = vpack.c.b16 %v233, %v229
    %v266 = vpack.c.b16 %v234, %v230
    %v267 = vpack.c.b16 %v235, %v231
    %300 = vmatprep.subr.bf16.mxu0 %v265
    %301 = vmatpush1.bf16.msra.mxu0 %v264
    %302 = vmatprep.subr.bf16.mxu0 %v261
    %303 = vmatpush1.bf16.msra.mxu0 %v260
    %304 = vmatprep.subr.bf16.mxu0 %v257
    %305 = vmatpush1.bf16.msra.mxu0 %v256
    %306 = vmatprep.subr.bf16.mxu0 %v253
    %307 = vmatpush1.bf16.msra.mxu0 %v252
    %308 = vmatprep.subr.bf16.mxu0 %v249
    %309 = vmatpush1.bf16.msra.mxu0 %v248
    %310 = vmatprep.subr.bf16.mxu0 %v245
    %311 = vmatpush1.bf16.msra.mxu0 %v244
    %312 = vmatprep.subr.bf16.mxu0 %v241
    %313 = vmatpush1.bf16.msra.mxu0 %v240
    %314 = vmatprep.subr.bf16.mxu0 %v237
    %315 = vmatpush1.bf16.msra.mxu0 %v236
    %316 = vmatprep.subr.bf16.mxu0 0
    %317 = vmatpush2.bf16.msra.mxu0 0
    %318 = vmatprep.subr.bf16.mxu0 0
    %319 = vmatpush2.bf16.msra.mxu0 0
    %320 = vmatprep.subr.bf16.mxu0 0
    %321 = vmatpush2.bf16.msra.mxu0 0
    %322 = vmatprep.subr.bf16.mxu0 0
    %323 = vmatpush2.bf16.msra.mxu0 0
    %324 = vmatprep.subr.bf16.mxu0 0
    %325 = vmatpush2.bf16.msra.mxu0 0
    %326 = vmatprep.subr.bf16.mxu0 0
    %327 = vmatpush2.bf16.msra.mxu0 0
    %328 = vmatprep.subr.bf16.mxu0 0
    %329 = vmatpush2.bf16.msra.mxu0 0
    %330 = vmatprep.subr.bf16.mxu0 0
    %331 = vmatpush2.bf16.msra.mxu0 0
    %332 = vmatprep.mubr.bf16.mxu0 0
    %333 = vmatmul.mubr.bf16.gmra.mxu0 %v82
    %v334 = vpop.f32.mrf.mxu0
    %v335 = vadd.f32 %v123, %v334
    %v336 = vpop.f32.mrf.mxu0
    %v337 = vadd.f32 %v127, %v336
    %v338 = vpop.f32.mrf.mxu0
    %v339 = vadd.f32 %v123, %v338
    %v340 = vpop.f32.mrf.mxu0
    %v341 = vadd.f32 %v127, %v340
    %342 = vmatprep.mubr.bf16.mxu0 0
    %343 = vmatmul.mubr.bf16.gmra.mxu0 %v83
    %v344 = vpop.f32.mrf.mxu0
    %v345 = vadd.f32 %v123, %v344
    %v346 = vpop.f32.mrf.mxu0
    %v347 = vadd.f32 %v127, %v346
    %v348 = vpop.f32.mrf.mxu0
    %v349 = vadd.f32 %v123, %v348
    %v350 = vpop.f32.mrf.mxu0
    %v351 = vadd.f32 %v127, %v350
    %352 = vmatprep.mubr.bf16.mxu0 0
    %353 = vmatmul.mubr.bf16.gmra.mxu0 %v84
    %v354 = vpop.f32.mrf.mxu0
    %v355 = vadd.f32 %v123, %v354
    %v356 = vpop.f32.mrf.mxu0
    %v357 = vadd.f32 %v127, %v356
    %v358 = vpop.f32.mrf.mxu0
    %v359 = vadd.f32 %v123, %v358
    %v360 = vpop.f32.mrf.mxu0
    %v361 = vadd.f32 %v127, %v360
    %362 = vmatprep.mubr.bf16.mxu0 0
    %363 = vmatmul.mubr.bf16.gmra.mxu0 %v85
    %v364 = vpop.f32.mrf.mxu0
    %v365 = vadd.f32 %v123, %v364
    %v366 = vpop.f32.mrf.mxu0
    %v367 = vadd.f32 %v127, %v366
    %v368 = vpop.f32.mrf.mxu0
    %v369 = vadd.f32 %v123, %v368
    %v370 = vpop.f32.mrf.mxu0
    %v371 = vadd.f32 %v127, %v370
    %372 = vdwg.mxu0
    %373 = vmatprep.subr.bf16.mxu0 %v267
    %374 = vmatpush1.bf16.msra.mxu0 %v266
    %375 = vmatprep.subr.bf16.mxu0 %v263
    %376 = vmatpush1.bf16.msra.mxu0 %v262
    %377 = vmatprep.subr.bf16.mxu0 %v259
    %378 = vmatpush1.bf16.msra.mxu0 %v258
    %379 = vmatprep.subr.bf16.mxu0 %v255
    %380 = vmatpush1.bf16.msra.mxu0 %v254
    %381 = vmatprep.subr.bf16.mxu0 %v251
    %382 = vmatpush1.bf16.msra.mxu0 %v250
    %383 = vmatprep.subr.bf16.mxu0 %v247
    %384 = vmatpush1.bf16.msra.mxu0 %v246
    %385 = vmatprep.subr.bf16.mxu0 %v243
    %386 = vmatpush1.bf16.msra.mxu0 %v242
    %387 = vmatprep.subr.bf16.mxu0 %v239
    %388 = vmatpush1.bf16.msra.mxu0 %v238
    %389 = vmatprep.subr.bf16.mxu0 0
    %390 = vmatpush2.bf16.msra.mxu0 0
    %391 = vmatprep.subr.bf16.mxu0 0
    %392 = vmatpush2.bf16.msra.mxu0 0
    %393 = vmatprep.subr.bf16.mxu0 0
    %394 = vmatpush2.bf16.msra.mxu0 0
    %395 = vmatprep.subr.bf16.mxu0 0
    %396 = vmatpush2.bf16.msra.mxu0 0
    %397 = vmatprep.subr.bf16.mxu0 0
    %398 = vmatpush2.bf16.msra.mxu0 0
    %399 = vmatprep.subr.bf16.mxu0 0
    %400 = vmatpush2.bf16.msra.mxu0 0
    %401 = vmatprep.subr.bf16.mxu0 0
    %402 = vmatpush2.bf16.msra.mxu0 0
    %403 = vmatprep.subr.bf16.mxu0 0
    %404 = vmatpush2.bf16.msra.mxu0 0
    %405 = vmatprep.mubr.bf16.mxu0 0
    %406 = vmatmul.mubr.bf16.gmra.mxu0 %v82
    %v407 = vpop.f32.mrf.mxu0
    %v408 = vadd.f32 %v131, %v407
    %v409 = vpop.f32.mrf.mxu0
    %v410 = vadd.f32 %v135, %v409
    %v411 = vpop.f32.mrf.mxu0
    %v412 = vadd.f32 %v131, %v411
    %v413 = vpop.f32.mrf.mxu0
    %v414 = vadd.f32 %v135, %v413
    %415 = vmatprep.mubr.bf16.mxu0 0
    %416 = vmatmul.mubr.bf16.gmra.mxu0 %v83
    %v417 = vpop.f32.mrf.mxu0
    %v418 = vadd.f32 %v131, %v417
    %v419 = vpop.f32.mrf.mxu0
    %v420 = vadd.f32 %v135, %v419
    %v421 = vpop.f32.mrf.mxu0
    %v422 = vadd.f32 %v131, %v421
    %v423 = vpop.f32.mrf.mxu0
    %v424 = vadd.f32 %v135, %v423
    %425 = vmatprep.mubr.bf16.mxu0 0
    %426 = vmatmul.mubr.bf16.gmra.mxu0 %v84
    %v427 = vpop.f32.mrf.mxu0
    %v428 = vadd.f32 %v131, %v427
    %v429 = vpop.f32.mrf.mxu0
    %v430 = vadd.f32 %v135, %v429
    %v431 = vpop.f32.mrf.mxu0
    %v432 = vadd.f32 %v131, %v431
    %v433 = vpop.f32.mrf.mxu0
    %v434 = vadd.f32 %v135, %v433
    %435 = vmatprep.mubr.bf16.mxu0 0
    %436 = vmatmul.mubr.bf16.gmra.mxu0 %v85
    %v437 = vpop.f32.mrf.mxu0
    %v438 = vadd.f32 %v131, %v437
    %v439 = vpop.f32.mrf.mxu0
    %v440 = vadd.f32 %v135, %v439
    %v441 = vpop.f32.mrf.mxu0
    %v442 = vadd.f32 %v131, %v441
    %v443 = vpop.f32.mrf.mxu0
    %v444 = vadd.f32 %v135, %v443
    %445 = vdwg.mxu0
    %v446 = vld [vmem:[%s6] sm:$0xf]
    %v448 = vlaneseq
    %v449 = vshrl.u32 %v448, 7
    %v450 = vsub.s32 0, %v449
    %v451 = vrot.slane %v446, %v450
    %v452 = vlaneseq
    %v453 = vshrl.u32 %v452, 7
    %v454 = vsub.s32 1, %v453
    %v455 = vrot.slane %v446, %v454
    %v456 = vlaneseq
    %v457 = vshrl.u32 %v456, 7
    %v458 = vsub.s32 2, %v457
    %v459 = vrot.slane %v446, %v458
    %v460 = vlaneseq
    %v461 = vshrl.u32 %v460, 7
    %v462 = vsub.s32 3, %v461
    %v463 = vrot.slane %v446, %v462
    %v468 = vld [vmem:[#allocation2] sm:$0xff]
    %v469 = vld [vmem:[#allocation2 + $0x8] sm:$0xff]
    %v470 = vld [vmem:[#allocation2 + $0x10] sm:$0xff]
    %v471 = vld [vmem:[#allocation2 + $0x18] sm:$0xff]
    %v472 = vld [vmem:[#allocation2 + $0x20] sm:$0xff]
    %v473 = vld [vmem:[#allocation2 + $0x28] sm:$0xff]
    %v474 = vld [vmem:[#allocation2 + $0x30] sm:$0xff]
    %v475 = vld [vmem:[#allocation2 + $0x38] sm:$0xff]
    %v476 = vld [vmem:[#allocation2 + $0x40] sm:$0xff]
    %v477 = vld [vmem:[#allocation2 + $0x48] sm:$0xff]
    %v478 = vld [vmem:[#allocation2 + $0x50] sm:$0xff]
    %v479 = vld [vmem:[#allocation2 + $0x58] sm:$0xff]
    %v480 = vld [vmem:[#allocation2 + $0x60] sm:$0xff]
    %v481 = vld [vmem:[#allocation2 + $0x68] sm:$0xff]
    %v482 = vld [vmem:[#allocation2 + $0x70] sm:$0xff]
    %v483 = vld [vmem:[#allocation2 + $0x78] sm:$0xff]
    %v484 = vld [vmem:[#allocation2 + $0x80] sm:$0xff]
    %v485 = vld [vmem:[#allocation2 + $0x88] sm:$0xff]
    %v486 = vld [vmem:[#allocation2 + $0x90] sm:$0xff]
    %v487 = vld [vmem:[#allocation2 + $0x98] sm:$0xff]
    %v488 = vld [vmem:[#allocation2 + $0xa0] sm:$0xff]
    %v489 = vld [vmem:[#allocation2 + $0xa8] sm:$0xff]
    %v490 = vld [vmem:[#allocation2 + $0xb0] sm:$0xff]
    %v491 = vld [vmem:[#allocation2 + $0xb8] sm:$0xff]
    %v492 = vld [vmem:[#allocation2 + $0xc0] sm:$0xff]
    %v493 = vld [vmem:[#allocation2 + $0xc8] sm:$0xff]
    %v494 = vld [vmem:[#allocation2 + $0xd0] sm:$0xff]
    %v495 = vld [vmem:[#allocation2 + $0xd8] sm:$0xff]
    %v496 = vld [vmem:[#allocation2 + $0xe0] sm:$0xff]
    %v497 = vld [vmem:[#allocation2 + $0xe8] sm:$0xff]
    %v498 = vld [vmem:[#allocation2 + $0xf0] sm:$0xff]
    %v499 = vld [vmem:[#allocation2 + $0xf8] sm:$0xff]
    %v532 = vunpack.c.l.b16 %v468
    %v533 = vunpack.c.h.b16 %v468
    %v534 = vunpack.c.l.b16 %v469
    %v535 = vunpack.c.h.b16 %v469
    %v536 = vunpack.c.l.b16 %v470
    %v537 = vunpack.c.h.b16 %v470
    %v538 = vunpack.c.l.b16 %v471
    %v539 = vunpack.c.h.b16 %v471
    %v540 = vunpack.c.l.b16 %v472
    %v541 = vunpack.c.h.b16 %v472
    %v542 = vunpack.c.l.b16 %v473
    %v543 = vunpack.c.h.b16 %v473
    %v544 = vunpack.c.l.b16 %v474
    %v545 = vunpack.c.h.b16 %v474
    %v546 = vunpack.c.l.b16 %v475
    %v547 = vunpack.c.h.b16 %v475
    %v548 = vunpack.c.l.b16 %v476
    %v549 = vunpack.c.h.b16 %v476
    %v550 = vunpack.c.l.b16 %v477
    %v551 = vunpack.c.h.b16 %v477
    %v552 = vunpack.c.l.b16 %v478
    %v553 = vunpack.c.h.b16 %v478
    %v554 = vunpack.c.l.b16 %v479
    %v555 = vunpack.c.h.b16 %v479
    %v556 = vunpack.c.l.b16 %v480
    %v557 = vunpack.c.h.b16 %v480
    %v558 = vunpack.c.l.b16 %v481
    %v559 = vunpack.c.h.b16 %v481
    %v560 = vunpack.c.l.b16 %v482
    %v561 = vunpack.c.h.b16 %v482
    %v562 = vunpack.c.l.b16 %v483
    %v563 = vunpack.c.h.b16 %v483
    %v564 = vunpack.c.l.b16 %v484
    %v565 = vunpack.c.h.b16 %v484
    %v566 = vunpack.c.l.b16 %v485
    %v567 = vunpack.c.h.b16 %v485
    %v568 = vunpack.c.l.b16 %v486
    %v569 = vunpack.c.h.b16 %v486
    %v570 = vunpack.c.l.b16 %v487
    %v571 = vunpack.c.h.b16 %v487
    %v572 = vunpack.c.l.b16 %v488
    %v573 = vunpack.c.h.b16 %v488
    %v574 = vunpack.c.l.b16 %v489
    %v575 = vunpack.c.h.b16 %v489
    %v576 = vunpack.c.l.b16 %v490
    %v577 = vunpack.c.h.b16 %v490
    %v578 = vunpack.c.l.b16 %v491
    %v579 = vunpack.c.h.b16 %v491
    %v580 = vunpack.c.l.b16 %v492
    %v581 = vunpack.c.h.b16 %v492
    %v582 = vunpack.c.l.b16 %v493
    %v583 = vunpack.c.h.b16 %v493
    %v584 = vunpack.c.l.b16 %v494
    %v585 = vunpack.c.h.b16 %v494
    %v586 = vunpack.c.l.b16 %v495
    %v587 = vunpack.c.h.b16 %v495
    %v588 = vunpack.c.l.b16 %v496
    %v589 = vunpack.c.h.b16 %v496
    %v590 = vunpack.c.l.b16 %v497
    %v591 = vunpack.c.h.b16 %v497
    %v592 = vunpack.c.l.b16 %v498
    %v593 = vunpack.c.h.b16 %v498
    %v594 = vunpack.c.l.b16 %v499
    %v595 = vunpack.c.h.b16 %v499
    %v596 = vpack.c.b16 %v536, %v532
    %v597 = vpack.c.b16 %v537, %v533
    %v598 = vpack.c.b16 %v538, %v534
    %v599 = vpack.c.b16 %v539, %v535
    %v600 = vpack.c.b16 %v544, %v540
    %v601 = vpack.c.b16 %v545, %v541
    %v602 = vpack.c.b16 %v546, %v542
    %v603 = vpack.c.b16 %v547, %v543
    %v604 = vpack.c.b16 %v552, %v548
    %v605 = vpack.c.b16 %v553, %v549
    %v606 = vpack.c.b16 %v554, %v550
    %v607 = vpack.c.b16 %v555, %v551
    %v608 = vpack.c.b16 %v560, %v556
    %v609 = vpack.c.b16 %v561, %v557
    %v610 = vpack.c.b16 %v562, %v558
    %v611 = vpack.c.b16 %v563, %v559
    %v612 = vpack.c.b16 %v568, %v564
    %v613 = vpack.c.b16 %v569, %v565
    %v614 = vpack.c.b16 %v570, %v566
    %v615 = vpack.c.b16 %v571, %v567
    %v616 = vpack.c.b16 %v576, %v572
    %v617 = vpack.c.b16 %v577, %v573
    %v618 = vpack.c.b16 %v578, %v574
    %v619 = vpack.c.b16 %v579, %v575
    %v620 = vpack.c.b16 %v584, %v580
    %v621 = vpack.c.b16 %v585, %v581
    %v622 = vpack.c.b16 %v586, %v582
    %v623 = vpack.c.b16 %v587, %v583
    %v624 = vpack.c.b16 %v592, %v588
    %v625 = vpack.c.b16 %v593, %v589
    %v626 = vpack.c.b16 %v594, %v590
    %v627 = vpack.c.b16 %v595, %v591
    %660 = vmatprep.subr.bf16.mxu0 %v625
    %661 = vmatpush1.bf16.msra.mxu0 %v624
    %662 = vmatprep.subr.bf16.mxu0 %v621
    %663 = vmatpush1.bf16.msra.mxu0 %v620
    %664 = vmatprep.subr.bf16.mxu0 %v617
    %665 = vmatpush1.bf16.msra.mxu0 %v616
    %666 = vmatprep.subr.bf16.mxu0 %v613
    %667 = vmatpush1.bf16.msra.mxu0 %v612
    %668 = vmatprep.subr.bf16.mxu0 %v609
    %669 = vmatpush1.bf16.msra.mxu0 %v608
    %670 = vmatprep.subr.bf16.mxu0 %v605
    %671 = vmatpush1.bf16.msra.mxu0 %v604
    %672 = vmatprep.subr.bf16.mxu0 %v601
    %673 = vmatpush1.bf16.msra.mxu0 %v600
    %674 = vmatprep.subr.bf16.mxu0 %v597
    %675 = vmatpush1.bf16.msra.mxu0 %v596
    %676 = vmatprep.subr.bf16.mxu0 0
    %677 = vmatpush2.bf16.msra.mxu0 0
    %678 = vmatprep.subr.bf16.mxu0 0
    %679 = vmatpush2.bf16.msra.mxu0 0
    %680 = vmatprep.subr.bf16.mxu0 0
    %681 = vmatpush2.bf16.msra.mxu0 0
    %682 = vmatprep.subr.bf16.mxu0 0
    %683 = vmatpush2.bf16.msra.mxu0 0
    %684 = vmatprep.subr.bf16.mxu0 0
    %685 = vmatpush2.bf16.msra.mxu0 0
    %686 = vmatprep.subr.bf16.mxu0 0
    %687 = vmatpush2.bf16.msra.mxu0 0
    %688 = vmatprep.subr.bf16.mxu0 0
    %689 = vmatpush2.bf16.msra.mxu0 0
    %690 = vmatprep.subr.bf16.mxu0 0
    %691 = vmatpush2.bf16.msra.mxu0 0
    %692 = vmatprep.mubr.bf16.mxu0 0
    %693 = vmatmul.mubr.bf16.gmra.mxu0 0
    %v694 = vpop.f32.mrf.mxu0
    %v695 = vadd.f32 0.0, %v694
    %v696 = vpop.f32.mrf.mxu0
    %v697 = vadd.f32 0.0, %v696
    %v698 = vpop.f32.mrf.mxu0
    %v699 = vpop.f32.mrf.mxu0
    %700 = vdwg.mxu0
    %701 = vmatprep.subr.bf16.mxu0 %v627
    %702 = vmatpush1.bf16.msra.mxu0 %v626
    %703 = vmatprep.subr.bf16.mxu0 %v623
    %704 = vmatpush1.bf16.msra.mxu0 %v622
    %705 = vmatprep.subr.bf16.mxu0 %v619
    %706 = vmatpush1.bf16.msra.mxu0 %v618
    %707 = vmatprep.subr.bf16.mxu0 %v615
    %708 = vmatpush1.bf16.msra.mxu0 %v614
    %709 = vmatprep.subr.bf16.mxu0 %v611
    %710 = vmatpush1.bf16.msra.mxu0 %v610
    %711 = vmatprep.subr.bf16.mxu0 %v607
    %712 = vmatpush1.bf16.msra.mxu0 %v606
    %713 = vmatprep.subr.bf16.mxu0 %v603
    %714 = vmatpush1.bf16.msra.mxu0 %v602
    %715 = vmatprep.subr.bf16.mxu0 %v599
    %716 = vmatpush1.bf16.msra.mxu0 %v598
    %717 = vmatprep.subr.bf16.mxu0 0
    %718 = vmatpush2.bf16.msra.mxu0 0
    %719 = vmatprep.subr.bf16.mxu0 0
    %720 = vmatpush2.bf16.msra.mxu0 0
    %721 = vmatprep.subr.bf16.mxu0 0
    %722 = vmatpush2.bf16.msra.mxu0 0
    %723 = vmatprep.subr.bf16.mxu0 0
    %724 = vmatpush2.bf16.msra.mxu0 0
    %725 = vmatprep.subr.bf16.mxu0 0
    %726 = vmatpush2.bf16.msra.mxu0 0
    %727 = vmatprep.subr.bf16.mxu0 0
    %728 = vmatpush2.bf16.msra.mxu0 0
    %729 = vmatprep.subr.bf16.mxu0 0
    %730 = vmatpush2.bf16.msra.mxu0 0
    %731 = vmatprep.subr.bf16.mxu0 0
    %732 = vmatpush2.bf16.msra.mxu0 0
    %733 = vmatprep.mubr.bf16.mxu0 0
    %734 = vmatmul.mubr.bf16.gmra.mxu0 0
    %v735 = vpop.f32.mrf.mxu0
    %v736 = vadd.f32 0.0, %v735
    %v737 = vpop.f32.mrf.mxu0
    %v738 = vadd.f32 0.0, %v737
    %v739 = vpop.f32.mrf.mxu0
    %v740 = vpop.f32.mrf.mxu0
    %741 = vdwg.mxu0
    %v742 = vadd.f32 %v335, %v695
    %v743 = vadd.f32 %v337, %v697
    %v744 = vadd.f32 %v408, %v736
    %v745 = vadd.f32 %v410, %v738
    %v746 = vxor.u32 %v742, 2147483648
    %v747 = vmul.f32 %v746, 1.442695
    %v748 = vpow.pop %v747
    %v749 = vadd.f32 %v748, 1.0
    %v750 = vrcp.pop %v749
    %v751 = vmul.f32 1.0, %v750
    %v752 = vxor.u32 %v743, 2147483648
    %v753 = vmul.f32 %v752, 1.442695
    %v754 = vpow.pop %v753
    %v755 = vadd.f32 %v754, 1.0
    %v756 = vrcp.pop %v755
    %v757 = vmul.f32 1.0, %v756
    %v758 = vtanh.pop %v744
    %v759 = vxor.u32 %v745, 2147483648
    %v760 = vmul.f32 %v759, 1.442695
    %v761 = vpow.pop %v760
    %v762 = vadd.f32 %v761, 1.0
    %v763 = vrcp.pop %v762
    %v764 = vmul.f32 1.0, %v763
    %v765 = vmul.f32 %v757, 0.0
    %v766 = vmul.f32 %v751, %v758
    %v767 = vadd.f32 %v765, %v766
    %v768 = vtanh.pop %v767
    %v769 = vmul.f32 %v764, %v768
    %v770 = vpack.c.bf16 %v769, %v769
    %v771 = vld [vmem:[#allocation4] sm:$0xff]
    %v772 = vld [vmem:[#allocation4 + $0x8] sm:$0xff]
    %v773 = vld [vmem:[#allocation4 + $0x10] sm:$0xff]
    %v774 = vld [vmem:[#allocation4 + $0x18] sm:$0xff]
    %v775 = vld [vmem:[#allocation4 + $0x20] sm:$0xff]
    %v776 = vld [vmem:[#allocation4 + $0x28] sm:$0xff]
    %v777 = vld [vmem:[#allocation4 + $0x30] sm:$0xff]
    %v778 = vld [vmem:[#allocation4 + $0x38] sm:$0xff]
    %v779 = vld [vmem:[#allocation4 + $0x40] sm:$0xff]
    %v780 = vld [vmem:[#allocation4 + $0x48] sm:$0xff]
    %v781 = vld [vmem:[#allocation4 + $0x50] sm:$0xff]
    %v782 = vld [vmem:[#allocation4 + $0x58] sm:$0xff]
    %v783 = vld [vmem:[#allocation4 + $0x60] sm:$0xff]
    %v784 = vld [vmem:[#allocation4 + $0x68] sm:$0xff]
    %v785 = vld [vmem:[#allocation4 + $0x70] sm:$0xff]
    %v786 = vld [vmem:[#allocation4 + $0x78] sm:$0xff]
    %v787 = vld [vmem:[#allocation4 + $0x80] sm:$0xff]
    %v788 = vld [vmem:[#allocation4 + $0x88] sm:$0xff]
    %v789 = vld [vmem:[#allocation4 + $0x90] sm:$0xff]
    %v790 = vld [vmem:[#allocation4 + $0x98] sm:$0xff]
    %v791 = vld [vmem:[#allocation4 + $0xa0] sm:$0xff]
    %v792 = vld [vmem:[#allocation4 + $0xa8] sm:$0xff]
    %v793 = vld [vmem:[#allocation4 + $0xb0] sm:$0xff]
    %v794 = vld [vmem:[#allocation4 + $0xb8] sm:$0xff]
    %v795 = vld [vmem:[#allocation4 + $0xc0] sm:$0xff]
    %v796 = vld [vmem:[#allocation4 + $0xc8] sm:$0xff]
    %v797 = vld [vmem:[#allocation4 + $0xd0] sm:$0xff]
    %v798 = vld [vmem:[#allocation4 + $0xd8] sm:$0xff]
    %v799 = vld [vmem:[#allocation4 + $0xe0] sm:$0xff]
    %v800 = vld [vmem:[#allocation4 + $0xe8] sm:$0xff]
    %v801 = vld [vmem:[#allocation4 + $0xf0] sm:$0xff]
    %v802 = vld [vmem:[#allocation4 + $0xf8] sm:$0xff]
    %v803 = vld [vmem:[#allocation6] sm:$0xff]
    %v804 = vld [vmem:[#allocation6 + $0x8] sm:$0xff]
    %v805 = vld [vmem:[#allocation6 + $0x10] sm:$0xff]
    %v806 = vld [vmem:[#allocation6 + $0x18] sm:$0xff]
    %v807 = vld [vmem:[#allocation6 + $0x20] sm:$0xff]
    %v808 = vld [vmem:[#allocation6 + $0x28] sm:$0xff]
    %v809 = vld [vmem:[#allocation6 + $0x30] sm:$0xff]
    %v810 = vld [vmem:[#allocation6 + $0x38] sm:$0xff]
    %v811 = vld [vmem:[#allocation6 + $0x40] sm:$0xff]
    %v812 = vld [vmem:[#allocation6 + $0x48] sm:$0xff]
    %v813 = vld [vmem:[#allocation6 + $0x50] sm:$0xff]
    %v814 = vld [vmem:[#allocation6 + $0x58] sm:$0xff]
    %v815 = vld [vmem:[#allocation6 + $0x60] sm:$0xff]
    %v816 = vld [vmem:[#allocation6 + $0x68] sm:$0xff]
    %v817 = vld [vmem:[#allocation6 + $0x70] sm:$0xff]
    %v818 = vld [vmem:[#allocation6 + $0x78] sm:$0xff]
    %v819 = vld [vmem:[#allocation6 + $0x80] sm:$0xff]
    %v820 = vld [vmem:[#allocation6 + $0x88] sm:$0xff]
    %v821 = vld [vmem:[#allocation6 + $0x90] sm:$0xff]
    %v822 = vld [vmem:[#allocation6 + $0x98] sm:$0xff]
    %v823 = vld [vmem:[#allocation6 + $0xa0] sm:$0xff]
    %v824 = vld [vmem:[#allocation6 + $0xa8] sm:$0xff]
    %v825 = vld [vmem:[#allocation6 + $0xb0] sm:$0xff]
    %v826 = vld [vmem:[#allocation6 + $0xb8] sm:$0xff]
    %v827 = vld [vmem:[#allocation6 + $0xc0] sm:$0xff]
    %v828 = vld [vmem:[#allocation6 + $0xc8] sm:$0xff]
    %v829 = vld [vmem:[#allocation6 + $0xd0] sm:$0xff]
    %v830 = vld [vmem:[#allocation6 + $0xd8] sm:$0xff]
    %v831 = vld [vmem:[#allocation6 + $0xe0] sm:$0xff]
    %v832 = vld [vmem:[#allocation6 + $0xe8] sm:$0xff]
    %v833 = vld [vmem:[#allocation6 + $0xf0] sm:$0xff]
    %v834 = vld [vmem:[#allocation6 + $0xf8] sm:$0xff]
    %v867 = vunpack.c.l.b16 %v803
    %v868 = vunpack.c.h.b16 %v803
    %v869 = vunpack.c.l.b16 %v804
    %v870 = vunpack.c.h.b16 %v804
    %v871 = vunpack.c.l.b16 %v805
    %v872 = vunpack.c.h.b16 %v805
    %v873 = vunpack.c.l.b16 %v806
    %v874 = vunpack.c.h.b16 %v806
    %v875 = vunpack.c.l.b16 %v807
    %v876 = vunpack.c.h.b16 %v807
    %v877 = vunpack.c.l.b16 %v808
    %v878 = vunpack.c.h.b16 %v808
    %v879 = vunpack.c.l.b16 %v809
    %v880 = vunpack.c.h.b16 %v809
    %v881 = vunpack.c.l.b16 %v810
    %v882 = vunpack.c.h.b16 %v810
    %v883 = vunpack.c.l.b16 %v811
    %v884 = vunpack.c.h.b16 %v811
    %v885 = vunpack.c.l.b16 %v812
    %v886 = vunpack.c.h.b16 %v812
    %v887 = vunpack.c.l.b16 %v813
    %v888 = vunpack.c.h.b16 %v813
    %v889 = vunpack.c.l.b16 %v814
    %v890 = vunpack.c.h.b16 %v814
    %v891 = vunpack.c.l.b16 %v815
    %v892 = vunpack.c.h.b16 %v815
    %v893 = vunpack.c.l.b16 %v816
    %v894 = vunpack.c.h.b16 %v816
    %v895 = vunpack.c.l.b16 %v817
    %v896 = vunpack.c.h.b16 %v817
    %v897 = vunpack.c.l.b16 %v818
    %v898 = vunpack.c.h.b16 %v818
    %v899 = vunpack.c.l.b16 %v819
    %v900 = vunpack.c.h.b16 %v819
    %v901 = vunpack.c.l.b16 %v820
    %v902 = vunpack.c.h.b16 %v820
    %v903 = vunpack.c.l.b16 %v821
    %v904 = vunpack.c.h.b16 %v821
    %v905 = vunpack.c.l.b16 %v822
    %v906 = vunpack.c.h.b16 %v822
    %v907 = vunpack.c.l.b16 %v823
    %v908 = vunpack.c.h.b16 %v823
    %v909 = vunpack.c.l.b16 %v824
    %v910 = vunpack.c.h.b16 %v824
    %v911 = vunpack.c.l.b16 %v825
    %v912 = vunpack.c.h.b16 %v825
    %v913 = vunpack.c.l.b16 %v826
    %v914 = vunpack.c.h.b16 %v826
    %v915 = vunpack.c.l.b16 %v827
    %v916 = vunpack.c.h.b16 %v827
    %v917 = vunpack.c.l.b16 %v828
    %v918 = vunpack.c.h.b16 %v828
    %v919 = vunpack.c.l.b16 %v829
    %v920 = vunpack.c.h.b16 %v829
    %v921 = vunpack.c.l.b16 %v830
    %v922 = vunpack.c.h.b16 %v830
    %v923 = vunpack.c.l.b16 %v831
    %v924 = vunpack.c.h.b16 %v831
    %v925 = vunpack.c.l.b16 %v832
    %v926 = vunpack.c.h.b16 %v832
    %v927 = vunpack.c.l.b16 %v833
    %v928 = vunpack.c.h.b16 %v833
    %v929 = vunpack.c.l.b16 %v834
    %v930 = vunpack.c.h.b16 %v834
    %v931 = vpack.c.b16 %v871, %v867
    %v932 = vpack.c.b16 %v872, %v868
    %v933 = vpack.c.b16 %v873, %v869
    %v934 = vpack.c.b16 %v874, %v870
    %v935 = vpack.c.b16 %v879, %v875
    %v936 = vpack.c.b16 %v880, %v876
    %v937 = vpack.c.b16 %v881, %v877
    %v938 = vpack.c.b16 %v882, %v878
    %v939 = vpack.c.b16 %v887, %v883
    %v940 = vpack.c.b16 %v888, %v884
    %v941 = vpack.c.b16 %v889, %v885
    %v942 = vpack.c.b16 %v890, %v886
    %v943 = vpack.c.b16 %v895, %v891
    %v944 = vpack.c.b16 %v896, %v892
    %v945 = vpack.c.b16 %v897, %v893
    %v946 = vpack.c.b16 %v898, %v894
    %v947 = vpack.c.b16 %v903, %v899
    %v948 = vpack.c.b16 %v904, %v900
    %v949 = vpack.c.b16 %v905, %v901
    %v950 = vpack.c.b16 %v906, %v902
    %v951 = vpack.c.b16 %v911, %v907
    %v952 = vpack.c.b16 %v912, %v908
    %v953 = vpack.c.b16 %v913, %v909
    %v954 = vpack.c.b16 %v914, %v910
    %v955 = vpack.c.b16 %v919, %v915
    %v956 = vpack.c.b16 %v920, %v916
    %v957 = vpack.c.b16 %v921, %v917
    %v958 = vpack.c.b16 %v922, %v918
    %v959 = vpack.c.b16 %v927, %v923
    %v960 = vpack.c.b16 %v928, %v924
    %v961 = vpack.c.b16 %v929, %v925
    %v962 = vpack.c.b16 %v930, %v926
    %995 = vmatprep.subr.bf16.mxu0 %v960
    %996 = vmatpush1.bf16.msra.mxu0 %v959
    %997 = vmatprep.subr.bf16.mxu0 %v956
    %998 = vmatpush1.bf16.msra.mxu0 %v955
    %999 = vmatprep.subr.bf16.mxu0 %v952
    %1000 = vmatpush1.bf16.msra.mxu0 %v951
    %1001 = vmatprep.subr.bf16.mxu0 %v948
    %1002 = vmatpush1.bf16.msra.mxu0 %v947
    %1003 = vmatprep.subr.bf16.mxu0 %v944
    %1004 = vmatpush1.bf16.msra.mxu0 %v943
    %1005 = vmatprep.subr.bf16.mxu0 %v940
    %1006 = vmatpush1.bf16.msra.mxu0 %v939
    %1007 = vmatprep.subr.bf16.mxu0 %v936
    %1008 = vmatpush1.bf16.msra.mxu0 %v935
    %1009 = vmatprep.subr.bf16.mxu0 %v932
    %1010 = vmatpush1.bf16.msra.mxu0 %v931
    %1011 = vmatprep.subr.bf16.mxu0 0
    %1012 = vmatpush2.bf16.msra.mxu0 0
    %1013 = vmatprep.subr.bf16.mxu0 0
    %1014 = vmatpush2.bf16.msra.mxu0 0
    %1015 = vmatprep.subr.bf16.mxu0 0
    %1016 = vmatpush2.bf16.msra.mxu0 0
    %1017 = vmatprep.subr.bf16.mxu0 0
    %1018 = vmatpush2.bf16.msra.mxu0 0
    %1019 = vmatprep.subr.bf16.mxu0 0
    %1020 = vmatpush2.bf16.msra.mxu0 0
    %1021 = vmatprep.subr.bf16.mxu0 0
    %1022 = vmatpush2.bf16.msra.mxu0 0
    %1023 = vmatprep.subr.bf16.mxu0 0
    %1024 = vmatpush2.bf16.msra.mxu0 0
    %1025 = vmatprep.subr.bf16.mxu0 0
    %1026 = vmatpush2.bf16.msra.mxu0 0
    %1027 = vmatprep.mubr.bf16.mxu0 0
    %1028 = vmatmul.mubr.bf16.gmra.mxu0 0
    %v1029 = vpop.f32.mrf.mxu0
    %v1030 = vadd.f32 0.0, %v1029
    %v1031 = vpop.f32.mrf.mxu0
    %v1032 = vadd.f32 0.0, %v1031
    %v1033 = vpop.f32.mrf.mxu0
    %v1034 = vpop.f32.mrf.mxu0
    %1035 = vdwg.mxu0
    %1036 = vmatprep.subr.bf16.mxu0 %v962
    %1037 = vmatpush1.bf16.msra.mxu0 %v961
    %1038 = vmatprep.subr.bf16.mxu0 %v958
    %1039 = vmatpush1.bf16.msra.mxu0 %v957
    %1040 = vmatprep.subr.bf16.mxu0 %v954
    %1041 = vmatpush1.bf16.msra.mxu0 %v953
    %1042 = vmatprep.subr.bf16.mxu0 %v950
    %1043 = vmatpush1.bf16.msra.mxu0 %v949
    %1044 = vmatprep.subr.bf16.mxu0 %v946
    %1045 = vmatpush1.bf16.msra.mxu0 %v945
    %1046 = vmatprep.subr.bf16.mxu0 %v942
    %1047 = vmatpush1.bf16.msra.mxu0 %v941
    %1048 = vmatprep.subr.bf16.mxu0 %v938
    %1049 = vmatpush1.bf16.msra.mxu0 %v937
    %1050 = vmatprep.subr.bf16.mxu0 %v934
    %1051 = vmatpush1.bf16.msra.mxu0 %v933
    %1052 = vmatprep.subr.bf16.mxu0 0
    %1053 = vmatpush2.bf16.msra.mxu0 0
    %1054 = vmatprep.subr.bf16.mxu0 0
    %1055 = vmatpush2.bf16.msra.mxu0 0
    %1056 = vmatprep.subr.bf16.mxu0 0
    %1057 = vmatpush2.bf16.msra.mxu0 0
    %1058 = vmatprep.subr.bf16.mxu0 0
    %1059 = vmatpush2.bf16.msra.mxu0 0
    %1060 = vmatprep.subr.bf16.mxu0 0
    %1061 = vmatpush2.bf16.msra.mxu0 0
    %1062 = vmatprep.subr.bf16.mxu0 0
    %1063 = vmatpush2.bf16.msra.mxu0 0
    %1064 = vmatprep.subr.bf16.mxu0 0
    %1065 = vmatpush2.bf16.msra.mxu0 0
    %1066 = vmatprep.subr.bf16.mxu0 0
    %1067 = vmatpush2.bf16.msra.mxu0 0
    %1068 = vmatprep.mubr.bf16.mxu0 0
    %1069 = vmatmul.mubr.bf16.gmra.mxu0 0
    %v1070 = vpop.f32.mrf.mxu0
    %v1071 = vadd.f32 0.0, %v1070
    %v1072 = vpop.f32.mrf.mxu0
    %v1073 = vadd.f32 0.0, %v1072
    %v1074 = vpop.f32.mrf.mxu0
    %v1075 = vpop.f32.mrf.mxu0
    %1076 = vdwg.mxu0
    %v1109 = vunpack.c.l.b16 %v771
    %v1110 = vunpack.c.h.b16 %v771
    %v1111 = vunpack.c.l.b16 %v772
    %v1112 = vunpack.c.h.b16 %v772
    %v1113 = vunpack.c.l.b16 %v773
    %v1114 = vunpack.c.h.b16 %v773
    %v1115 = vunpack.c.l.b16 %v774
    %v1116 = vunpack.c.h.b16 %v774
    %v1117 = vunpack.c.l.b16 %v775
    %v1118 = vunpack.c.h.b16 %v775
    %v1119 = vunpack.c.l.b16 %v776
    %v1120 = vunpack.c.h.b16 %v776
    %v1121 = vunpack.c.l.b16 %v777
    %v1122 = vunpack.c.h.b16 %v777
    %v1123 = vunpack.c.l.b16 %v778
    %v1124 = vunpack.c.h.b16 %v778
    %v1125 = vunpack.c.l.b16 %v779
    %v1126 = vunpack.c.h.b16 %v779
    %v1127 = vunpack.c.l.b16 %v780
    %v1128 = vunpack.c.h.b16 %v780
    %v1129 = vunpack.c.l.b16 %v781
    %v1130 = vunpack.c.h.b16 %v781
    %v1131 = vunpack.c.l.b16 %v782
    %v1132 = vunpack.c.h.b16 %v782
    %v1133 = vunpack.c.l.b16 %v783
    %v1134 = vunpack.c.h.b16 %v783
    %v1135 = vunpack.c.l.b16 %v784
    %v1136 = vunpack.c.h.b16 %v784
    %v1137 = vunpack.c.l.b16 %v785
    %v1138 = vunpack.c.h.b16 %v785
    %v1139 = vunpack.c.l.b16 %v786
    %v1140 = vunpack.c.h.b16 %v786
    %v1141 = vunpack.c.l.b16 %v787
    %v1142 = vunpack.c.h.b16 %v787
    %v1143 = vunpack.c.l.b16 %v788
    %v1144 = vunpack.c.h.b16 %v788
    %v1145 = vunpack.c.l.b16 %v789
    %v1146 = vunpack.c.h.b16 %v789
    %v1147 = vunpack.c.l.b16 %v790
    %v1148 = vunpack.c.h.b16 %v790
    %v1149 = vunpack.c.l.b16 %v791
    %v1150 = vunpack.c.h.b16 %v791
    %v1151 = vunpack.c.l.b16 %v792
    %v1152 = vunpack.c.h.b16 %v792
    %v1153 = vunpack.c.l.b16 %v793
    %v1154 = vunpack.c.h.b16 %v793
    %v1155 = vunpack.c.l.b16 %v794
    %v1156 = vunpack.c.h.b16 %v794
    %v1157 = vunpack.c.l.b16 %v795
    %v1158 = vunpack.c.h.b16 %v795
    %v1159 = vunpack.c.l.b16 %v796
    %v1160 = vunpack.c.h.b16 %v796
    %v1161 = vunpack.c.l.b16 %v797
    %v1162 = vunpack.c.h.b16 %v797
    %v1163 = vunpack.c.l.b16 %v798
    %v1164 = vunpack.c.h.b16 %v798
    %v1165 = vunpack.c.l.b16 %v799
    %v1166 = vunpack.c.h.b16 %v799
    %v1167 = vunpack.c.l.b16 %v800
    %v1168 = vunpack.c.h.b16 %v800
    %v1169 = vunpack.c.l.b16 %v801
    %v1170 = vunpack.c.h.b16 %v801
    %v1171 = vunpack.c.l.b16 %v802
    %v1172 = vunpack.c.h.b16 %v802
    %v1173 = vpack.c.b16 %v1113, %v1109
    %v1174 = vpack.c.b16 %v1114, %v1110
    %v1175 = vpack.c.b16 %v1115, %v1111
    %v1176 = vpack.c.b16 %v1116, %v1112
    %v1177 = vpack.c.b16 %v1121, %v1117
    %v1178 = vpack.c.b16 %v1122, %v1118
    %v1179 = vpack.c.b16 %v1123, %v1119
    %v1180 = vpack.c.b16 %v1124, %v1120
    %v1181 = vpack.c.b16 %v1129, %v1125
    %v1182 = vpack.c.b16 %v1130, %v1126
    %v1183 = vpack.c.b16 %v1131, %v1127
    %v1184 = vpack.c.b16 %v1132, %v1128
    %v1185 = vpack.c.b16 %v1137, %v1133
    %v1186 = vpack.c.b16 %v1138, %v1134
    %v1187 = vpack.c.b16 %v1139, %v1135
    %v1188 = vpack.c.b16 %v1140, %v1136
    %v1189 = vpack.c.b16 %v1145, %v1141
    %v1190 = vpack.c.b16 %v1146, %v1142
    %v1191 = vpack.c.b16 %v1147, %v1143
    %v1192 = vpack.c.b16 %v1148, %v1144
    %v1193 = vpack.c.b16 %v1153, %v1149
    %v1194 = vpack.c.b16 %v1154, %v1150
    %v1195 = vpack.c.b16 %v1155, %v1151
    %v1196 = vpack.c.b16 %v1156, %v1152
    %v1197 = vpack.c.b16 %v1161, %v1157
    %v1198 = vpack.c.b16 %v1162, %v1158
    %v1199 = vpack.c.b16 %v1163, %v1159
    %v1200 = vpack.c.b16 %v1164, %v1160
    %v1201 = vpack.c.b16 %v1169, %v1165
    %v1202 = vpack.c.b16 %v1170, %v1166
    %v1203 = vpack.c.b16 %v1171, %v1167
    %v1204 = vpack.c.b16 %v1172, %v1168
    %1237 = vmatprep.subr.bf16.mxu0 %v1202
    %1238 = vmatpush1.bf16.msra.mxu0 %v1201
    %1239 = vmatprep.subr.bf16.mxu0 %v1198
    %1240 = vmatpush1.bf16.msra.mxu0 %v1197
    %1241 = vmatprep.subr.bf16.mxu0 %v1194
    %1242 = vmatpush1.bf16.msra.mxu0 %v1193
    %1243 = vmatprep.subr.bf16.mxu0 %v1190
    %1244 = vmatpush1.bf16.msra.mxu0 %v1189
    %1245 = vmatprep.subr.bf16.mxu0 %v1186
    %1246 = vmatpush1.bf16.msra.mxu0 %v1185
    %1247 = vmatprep.subr.bf16.mxu0 %v1182
    %1248 = vmatpush1.bf16.msra.mxu0 %v1181
    %1249 = vmatprep.subr.bf16.mxu0 %v1178
    %1250 = vmatpush1.bf16.msra.mxu0 %v1177
    %1251 = vmatprep.subr.bf16.mxu0 %v1174
    %1252 = vmatpush1.bf16.msra.mxu0 %v1173
    %1253 = vmatprep.subr.bf16.mxu0 0
    %1254 = vmatpush2.bf16.msra.mxu0 0
    %1255 = vmatprep.subr.bf16.mxu0 0
    %1256 = vmatpush2.bf16.msra.mxu0 0
    %1257 = vmatprep.subr.bf16.mxu0 0
    %1258 = vmatpush2.bf16.msra.mxu0 0
    %1259 = vmatprep.subr.bf16.mxu0 0
    %1260 = vmatpush2.bf16.msra.mxu0 0
    %1261 = vmatprep.subr.bf16.mxu0 0
    %1262 = vmatpush2.bf16.msra.mxu0 0
    %1263 = vmatprep.subr.bf16.mxu0 0
    %1264 = vmatpush2.bf16.msra.mxu0 0
    %1265 = vmatprep.subr.bf16.mxu0 0
    %1266 = vmatpush2.bf16.msra.mxu0 0
    %1267 = vmatprep.subr.bf16.mxu0 0
    %1268 = vmatpush2.bf16.msra.mxu0 0
    %1269 = vmatprep.mubr.bf16.mxu0 0
    %1270 = vmatmul.mubr.bf16.gmra.mxu0 %v770
    %v1271 = vpop.f32.mrf.mxu0
    %v1272 = vadd.f32 %v1030, %v1271
    %v1273 = vpop.f32.mrf.mxu0
    %v1274 = vadd.f32 %v1032, %v1273
    %v1275 = vpop.f32.mrf.mxu0
    %v1276 = vpop.f32.mrf.mxu0
    %1277 = vdwg.mxu0
    %1278 = vmatprep.subr.bf16.mxu0 %v1204
    %1279 = vmatpush1.bf16.msra.mxu0 %v1203
    %1280 = vmatprep.subr.bf16.mxu0 %v1200
    %1281 = vmatpush1.bf16.msra.mxu0 %v1199
    %1282 = vmatprep.subr.bf16.mxu0 %v1196
    %1283 = vmatpush1.bf16.msra.mxu0 %v1195
    %1284 = vmatprep.subr.bf16.mxu0 %v1192
    %1285 = vmatpush1.bf16.msra.mxu0 %v1191
    %1286 = vmatprep.subr.bf16.mxu0 %v1188
    %1287 = vmatpush1.bf16.msra.mxu0 %v1187
    %1288 = vmatprep.subr.bf16.mxu0 %v1184
    %1289 = vmatpush1.bf16.msra.mxu0 %v1183
    %1290 = vmatprep.subr.bf16.mxu0 %v1180
    %1291 = vmatpush1.bf16.msra.mxu0 %v1179
    %1292 = vmatprep.subr.bf16.mxu0 %v1176
    %1293 = vmatpush1.bf16.msra.mxu0 %v1175
    %1294 = vmatprep.subr.bf16.mxu0 0
    %1295 = vmatpush2.bf16.msra.mxu0 0
    %1296 = vmatprep.subr.bf16.mxu0 0
    %1297 = vmatpush2.bf16.msra.mxu0 0
    %1298 = vmatprep.subr.bf16.mxu0 0
    %1299 = vmatpush2.bf16.msra.mxu0 0
    %1300 = vmatprep.subr.bf16.mxu0 0
    %1301 = vmatpush2.bf16.msra.mxu0 0
    %1302 = vmatprep.subr.bf16.mxu0 0
    %1303 = vmatpush2.bf16.msra.mxu0 0
    %1304 = vmatprep.subr.bf16.mxu0 0
    %1305 = vmatpush2.bf16.msra.mxu0 0
    %1306 = vmatprep.subr.bf16.mxu0 0
    %1307 = vmatpush2.bf16.msra.mxu0 0
    %1308 = vmatprep.subr.bf16.mxu0 0
    %1309 = vmatpush2.bf16.msra.mxu0 0
    %1310 = vmatprep.mubr.bf16.mxu0 0
    %1311 = vmatmul.mubr.bf16.gmra.mxu0 %v770
    %v1312 = vpop.f32.mrf.mxu0
    %v1313 = vadd.f32 %v1071, %v1312
    %v1314 = vpop.f32.mrf.mxu0
    %v1315 = vadd.f32 %v1073, %v1314
    %v1316 = vpop.f32.mrf.mxu0
    %v1317 = vpop.f32.mrf.mxu0
    %1318 = vdwg.mxu0
    %v1319 = vadd.f32 %v1272, %v451
    %v1320 = vadd.f32 %v1274, %v455
    %v1321 = vadd.f32 %v1313, %v459
    %v1322 = vadd.f32 %v1315, %v463
    %v1323 = vxor.u32 %v1319, 2147483648
    %v1324 = vmul.f32 %v1323, 1.442695
    %v1325 = vpow.pop %v1324
    %v1326 = vadd.f32 %v1325, 1.0
    %v1327 = vrcp.pop %v1326
    %v1328 = vmul.f32 1.0, %v1327
    %v1329 = vxor.u32 %v1320, 2147483648
    %v1330 = vmul.f32 %v1329, 1.442695
    %v1331 = vpow.pop %v1330
    %v1332 = vadd.f32 %v1331, 1.0
    %v1333 = vrcp.pop %v1332
    %v1334 = vmul.f32 1.0, %v1333
    %v1335 = vtanh.pop %v1321
    %v1336 = vxor.u32 %v1322, 2147483648
    %v1337 = vmul.f32 %v1336, 1.442695
    %v1338 = vpow.pop %v1337
    %v1339 = vadd.f32 %v1338, 1.0
    %v1340 = vrcp.pop %v1339
    %v1341 = vmul.f32 1.0, %v1340
    %v1342 = vmul.f32 %v1334, 0.0
    %v1343 = vmul.f32 %v1328, %v1335
    %v1344 = vadd.f32 %v1342, %v1343
    %v1345 = vtanh.pop %v1344
    %v1346 = vmul.f32 %v1341, %v1345
    %1347 = vmatprep.subr.bf16.mxu0 %v625
    %1348 = vmatpush1.bf16.msra.mxu0 %v624
    %1349 = vmatprep.subr.bf16.mxu0 %v621
    %1350 = vmatpush1.bf16.msra.mxu0 %v620
    %1351 = vmatprep.subr.bf16.mxu0 %v617
    %1352 = vmatpush1.bf16.msra.mxu0 %v616
    %1353 = vmatprep.subr.bf16.mxu0 %v613
    %1354 = vmatpush1.bf16.msra.mxu0 %v612
    %1355 = vmatprep.subr.bf16.mxu0 %v609
    %1356 = vmatpush1.bf16.msra.mxu0 %v608
    %1357 = vmatprep.subr.bf16.mxu0 %v605
    %1358 = vmatpush1.bf16.msra.mxu0 %v604
    %1359 = vmatprep.subr.bf16.mxu0 %v601
    %1360 = vmatpush1.bf16.msra.mxu0 %v600
    %1361 = vmatprep.subr.bf16.mxu0 %v597
    %1362 = vmatpush1.bf16.msra.mxu0 %v596
    %1363 = vmatprep.subr.bf16.mxu0 0
    %1364 = vmatpush2.bf16.msra.mxu0 0
    %1365 = vmatprep.subr.bf16.mxu0 0
    %1366 = vmatpush2.bf16.msra.mxu0 0
    %1367 = vmatprep.subr.bf16.mxu0 0
    %1368 = vmatpush2.bf16.msra.mxu0 0
    %1369 = vmatprep.subr.bf16.mxu0 0
    %1370 = vmatpush2.bf16.msra.mxu0 0
    %1371 = vmatprep.subr.bf16.mxu0 0
    %1372 = vmatpush2.bf16.msra.mxu0 0
    %1373 = vmatprep.subr.bf16.mxu0 0
    %1374 = vmatpush2.bf16.msra.mxu0 0
    %1375 = vmatprep.subr.bf16.mxu0 0
    %1376 = vmatpush2.bf16.msra.mxu0 0
    %1377 = vmatprep.subr.bf16.mxu0 0
    %1378 = vmatpush2.bf16.msra.mxu0 0
    %1379 = vmatprep.mubr.bf16.mxu0 0
    %1380 = vmatmul.mubr.bf16.gmra.mxu0 %v770
    %v1381 = vpop.f32.mrf.mxu0
    %v1382 = vadd.f32 0.0, %v1381
    %v1383 = vpop.f32.mrf.mxu0
    %v1384 = vadd.f32 0.0, %v1383
    %v1385 = vpop.f32.mrf.mxu0
    %v1386 = vpop.f32.mrf.mxu0
    %1387 = vdwg.mxu0
    %1388 = vmatprep.subr.bf16.mxu0 %v627
    %1389 = vmatpush1.bf16.msra.mxu0 %v626
    %1390 = vmatprep.subr.bf16.mxu0 %v623
    %1391 = vmatpush1.bf16.msra.mxu0 %v622
    %1392 = vmatprep.subr.bf16.mxu0 %v619
    %1393 = vmatpush1.bf16.msra.mxu0 %v618
    %1394 = vmatprep.subr.bf16.mxu0 %v615
    %1395 = vmatpush1.bf16.msra.mxu0 %v614
    %1396 = vmatprep.subr.bf16.mxu0 %v611
    %1397 = vmatpush1.bf16.msra.mxu0 %v610
    %1398 = vmatprep.subr.bf16.mxu0 %v607
    %1399 = vmatpush1.bf16.msra.mxu0 %v606
    %1400 = vmatprep.subr.bf16.mxu0 %v603
    %1401 = vmatpush1.bf16.msra.mxu0 %v602
    %1402 = vmatprep.subr.bf16.mxu0 %v599
    %1403 = vmatpush1.bf16.msra.mxu0 %v598
    %1404 = vmatprep.subr.bf16.mxu0 0
    %1405 = vmatpush2.bf16.msra.mxu0 0
    %1406 = vmatprep.subr.bf16.mxu0 0
    %1407 = vmatpush2.bf16.msra.mxu0 0
    %1408 = vmatprep.subr.bf16.mxu0 0
    %1409 = vmatpush2.bf16.msra.mxu0 0
    %1410 = vmatprep.subr.bf16.mxu0 0
    %1411 = vmatpush2.bf16.msra.mxu0 0
    %1412 = vmatprep.subr.bf16.mxu0 0
    %1413 = vmatpush2.bf16.msra.mxu0 0
    %1414 = vmatprep.subr.bf16.mxu0 0
    %1415 = vmatpush2.bf16.msra.mxu0 0
    %1416 = vmatprep.subr.bf16.mxu0 0
    %1417 = vmatpush2.bf16.msra.mxu0 0
    %1418 = vmatprep.subr.bf16.mxu0 0
    %1419 = vmatpush2.bf16.msra.mxu0 0
    %1420 = vmatprep.mubr.bf16.mxu0 0
    %1421 = vmatmul.mubr.bf16.gmra.mxu0 %v770
    %v1422 = vpop.f32.mrf.mxu0
    %v1423 = vadd.f32 0.0, %v1422
    %v1424 = vpop.f32.mrf.mxu0
    %v1425 = vadd.f32 0.0, %v1424
    %v1426 = vpop.f32.mrf.mxu0
    %v1427 = vpop.f32.mrf.mxu0
    %1428 = vdwg.mxu0
    %v1429 = vadd.f32 %v339, %v1382
    %v1430 = vadd.f32 %v341, %v1384
    %v1431 = vadd.f32 %v412, %v1423
    %v1432 = vadd.f32 %v414, %v1425
    %v1433 = vxor.u32 %v1429, 2147483648
    %v1434 = vmul.f32 %v1433, 1.442695
    %v1435 = vpow.pop %v1434
    %v1436 = vadd.f32 %v1435, 1.0
    %v1437 = vrcp.pop %v1436
    %v1438 = vmul.f32 1.0, %v1437
    %v1439 = vxor.u32 %v1430, 2147483648
    %v1440 = vmul.f32 %v1439, 1.442695
    %v1441 = vpow.pop %v1440
    %v1442 = vadd.f32 %v1441, 1.0
    %v1443 = vrcp.pop %v1442
    %v1444 = vmul.f32 1.0, %v1443
    %v1445 = vtanh.pop %v1431
    %v1446 = vxor.u32 %v1432, 2147483648
    %v1447 = vmul.f32 %v1446, 1.442695
    %v1448 = vpow.pop %v1447
    %v1449 = vadd.f32 %v1448, 1.0
    %v1450 = vrcp.pop %v1449
    %v1451 = vmul.f32 1.0, %v1450
    %v1452 = vmul.f32 %v1444, %v767
    %v1453 = vmul.f32 %v1438, %v1445
    %v1454 = vadd.f32 %v1452, %v1453
    %v1455 = vtanh.pop %v1454
    %v1456 = vmul.f32 %v1451, %v1455
    %v1457 = vpack.c.bf16 %v1456, %v1456
    %v1458 = vpack.c.bf16 %v1346, %v1346
    %1459 = vmatprep.subr.bf16.mxu0 %v960
    %1460 = vmatpush1.bf16.msra.mxu0 %v959
    %1461 = vmatprep.subr.bf16.mxu0 %v956
    %1462 = vmatpush1.bf16.msra.mxu0 %v955
    %1463 = vmatprep.subr.bf16.mxu0 %v952
    %1464 = vmatpush1.bf16.msra.mxu0 %v951
    %1465 = vmatprep.subr.bf16.mxu0 %v948
    %1466 = vmatpush1.bf16.msra.mxu0 %v947
    %1467 = vmatprep.subr.bf16.mxu0 %v944
    %1468 = vmatpush1.bf16.msra.mxu0 %v943
    %1469 = vmatprep.subr.bf16.mxu0 %v940
    %1470 = vmatpush1.bf16.msra.mxu0 %v939
    %1471 = vmatprep.subr.bf16.mxu0 %v936
    %1472 = vmatpush1.bf16.msra.mxu0 %v935
    %1473 = vmatprep.subr.bf16.mxu0 %v932
    %1474 = vmatpush1.bf16.msra.mxu0 %v931
    %1475 = vmatprep.subr.bf16.mxu0 0
    %1476 = vmatpush2.bf16.msra.mxu0 0
    %1477 = vmatprep.subr.bf16.mxu0 0
    %1478 = vmatpush2.bf16.msra.mxu0 0
    %1479 = vmatprep.subr.bf16.mxu0 0
    %1480 = vmatpush2.bf16.msra.mxu0 0
    %1481 = vmatprep.subr.bf16.mxu0 0
    %1482 = vmatpush2.bf16.msra.mxu0 0
    %1483 = vmatprep.subr.bf16.mxu0 0
    %1484 = vmatpush2.bf16.msra.mxu0 0
    %1485 = vmatprep.subr.bf16.mxu0 0
    %1486 = vmatpush2.bf16.msra.mxu0 0
    %1487 = vmatprep.subr.bf16.mxu0 0
    %1488 = vmatpush2.bf16.msra.mxu0 0
    %1489 = vmatprep.subr.bf16.mxu0 0
    %1490 = vmatpush2.bf16.msra.mxu0 0
    %1491 = vmatprep.mubr.bf16.mxu0 0
    %1492 = vmatmul.mubr.bf16.gmra.mxu0 %v1458
    %v1493 = vpop.f32.mrf.mxu0
    %v1494 = vadd.f32 0.0, %v1493
    %v1495 = vpop.f32.mrf.mxu0
    %v1496 = vadd.f32 0.0, %v1495
    %v1497 = vpop.f32.mrf.mxu0
    %v1498 = vpop.f32.mrf.mxu0
    %1499 = vdwg.mxu0
    %1500 = vmatprep.subr.bf16.mxu0 %v962
    %1501 = vmatpush1.bf16.msra.mxu0 %v961
    %1502 = vmatprep.subr.bf16.mxu0 %v958
    %1503 = vmatpush1.bf16.msra.mxu0 %v957
    %1504 = vmatprep.subr.bf16.mxu0 %v954
    %1505 = vmatpush1.bf16.msra.mxu0 %v953
    %1506 = vmatprep.subr.bf16.mxu0 %v950
    %1507 = vmatpush1.bf16.msra.mxu0 %v949
    %1508 = vmatprep.subr.bf16.mxu0 %v946
    %1509 = vmatpush1.bf16.msra.mxu0 %v945
    %1510 = vmatprep.subr.bf16.mxu0 %v942
    %1511 = vmatpush1.bf16.msra.mxu0 %v941
    %1512 = vmatprep.subr.bf16.mxu0 %v938
    %1513 = vmatpush1.bf16.msra.mxu0 %v937
    %1514 = vmatprep.subr.bf16.mxu0 %v934
    %1515 = vmatpush1.bf16.msra.mxu0 %v933
    %1516 = vmatprep.subr.bf16.mxu0 0
    %1517 = vmatpush2.bf16.msra.mxu0 0
    %1518 = vmatprep.subr.bf16.mxu0 0
    %1519 = vmatpush2.bf16.msra.mxu0 0
    %1520 = vmatprep.subr.bf16.mxu0 0
    %1521 = vmatpush2.bf16.msra.mxu0 0
    %1522 = vmatprep.subr.bf16.mxu0 0
    %1523 = vmatpush2.bf16.msra.mxu0 0
    %1524 = vmatprep.subr.bf16.mxu0 0
    %1525 = vmatpush2.bf16.msra.mxu0 0
    %1526 = vmatprep.subr.bf16.mxu0 0
    %1527 = vmatpush2.bf16.msra.mxu0 0
    %1528 = vmatprep.subr.bf16.mxu0 0
    %1529 = vmatpush2.bf16.msra.mxu0 0
    %1530 = vmatprep.subr.bf16.mxu0 0
    %1531 = vmatpush2.bf16.msra.mxu0 0
    %1532 = vmatprep.mubr.bf16.mxu0 0
    %1533 = vmatmul.mubr.bf16.gmra.mxu0 %v1458
    %v1534 = vpop.f32.mrf.mxu0
    %v1535 = vadd.f32 0.0, %v1534
    %v1536 = vpop.f32.mrf.mxu0
    %v1537 = vadd.f32 0.0, %v1536
    %v1538 = vpop.f32.mrf.mxu0
    %v1539 = vpop.f32.mrf.mxu0
    %1540 = vdwg.mxu0
    %1541 = vmatprep.subr.bf16.mxu0 %v1202
    %1542 = vmatpush1.bf16.msra.mxu0 %v1201
    %1543 = vmatprep.subr.bf16.mxu0 %v1198
    %1544 = vmatpush1.bf16.msra.mxu0 %v1197
    %1545 = vmatprep.subr.bf16.mxu0 %v1194
    %1546 = vmatpush1.bf16.msra.mxu0 %v1193
    %1547 = vmatprep.subr.bf16.mxu0 %v1190
    %1548 = vmatpush1.bf16.msra.mxu0 %v1189
    %1549 = vmatprep.subr.bf16.mxu0 %v1186
    %1550 = vmatpush1.bf16.msra.mxu0 %v1185
    %1551 = vmatprep.subr.bf16.mxu0 %v1182
    %1552 = vmatpush1.bf16.msra.mxu0 %v1181
    %1553 = vmatprep.subr.bf16.mxu0 %v1178
    %1554 = vmatpush1.bf16.msra.mxu0 %v1177
    %1555 = vmatprep.subr.bf16.mxu0 %v1174
    %1556 = vmatpush1.bf16.msra.mxu0 %v1173
    %1557 = vmatprep.subr.bf16.mxu0 0
    %1558 = vmatpush2.bf16.msra.mxu0 0
    %1559 = vmatprep.subr.bf16.mxu0 0
    %1560 = vmatpush2.bf16.msra.mxu0 0
    %1561 = vmatprep.subr.bf16.mxu0 0
    %1562 = vmatpush2.bf16.msra.mxu0 0
    %1563 = vmatprep.subr.bf16.mxu0 0
    %1564 = vmatpush2.bf16.msra.mxu0 0
    %1565 = vmatprep.subr.bf16.mxu0 0
    %1566 = vmatpush2.bf16.msra.mxu0 0
    %1567 = vmatprep.subr.bf16.mxu0 0
    %1568 = vmatpush2.bf16.msra.mxu0 0
    %1569 = vmatprep.subr.bf16.mxu0 0
    %1570 = vmatpush2.bf16.msra.mxu0 0
    %1571 = vmatprep.subr.bf16.mxu0 0
    %1572 = vmatpush2.bf16.msra.mxu0 0
    %1573 = vmatprep.mubr.bf16.mxu0 0
    %1574 = vmatmul.mubr.bf16.gmra.mxu0 %v1457
    %v1575 = vpop.f32.mrf.mxu0
    %v1576 = vadd.f32 %v1494, %v1575
    %v1577 = vpop.f32.mrf.mxu0
    %v1578 = vadd.f32 %v1496, %v1577
    %v1579 = vpop.f32.mrf.mxu0
    %v1580 = vpop.f32.mrf.mxu0
    %1581 = vdwg.mxu0
    %1582 = vmatprep.subr.bf16.mxu0 %v1204
    %1583 = vmatpush1.bf16.msra.mxu0 %v1203
    %1584 = vmatprep.subr.bf16.mxu0 %v1200
    %1585 = vmatpush1.bf16.msra.mxu0 %v1199
    %1586 = vmatprep.subr.bf16.mxu0 %v1196
    %1587 = vmatpush1.bf16.msra.mxu0 %v1195
    %1588 = vmatprep.subr.bf16.mxu0 %v1192
    %1589 = vmatpush1.bf16.msra.mxu0 %v1191
    %1590 = vmatprep.subr.bf16.mxu0 %v1188
    %1591 = vmatpush1.bf16.msra.mxu0 %v1187
    %1592 = vmatprep.subr.bf16.mxu0 %v1184
    %1593 = vmatpush1.bf16.msra.mxu0 %v1183
    %1594 = vmatprep.subr.bf16.mxu0 %v1180
    %1595 = vmatpush1.bf16.msra.mxu0 %v1179
    %1596 = vmatprep.subr.bf16.mxu0 %v1176
    %1597 = vmatpush1.bf16.msra.mxu0 %v1175
    %1598 = vmatprep.subr.bf16.mxu0 0
    %1599 = vmatpush2.bf16.msra.mxu0 0
    %1600 = vmatprep.subr.bf16.mxu0 0
    %1601 = vmatpush2.bf16.msra.mxu0 0
    %1602 = vmatprep.subr.bf16.mxu0 0
    %1603 = vmatpush2.bf16.msra.mxu0 0
    %1604 = vmatprep.subr.bf16.mxu0 0
    %1605 = vmatpush2.bf16.msra.mxu0 0
    %1606 = vmatprep.subr.bf16.mxu0 0
    %1607 = vmatpush2.bf16.msra.mxu0 0
    %1608 = vmatprep.subr.bf16.mxu0 0
    %1609 = vmatpush2.bf16.msra.mxu0 0
    %1610 = vmatprep.subr.bf16.mxu0 0
    %1611 = vmatpush2.bf16.msra.mxu0 0
    %1612 = vmatprep.subr.bf16.mxu0 0
    %1613 = vmatpush2.bf16.msra.mxu0 0
    %1614 = vmatprep.mubr.bf16.mxu0 0
    %1615 = vmatmul.mubr.bf16.gmra.mxu0 %v1457
    %v1616 = vpop.f32.mrf.mxu0
    %v1617 = vadd.f32 %v1535, %v1616
    %v1618 = vpop.f32.mrf.mxu0
    %v1619 = vadd.f32 %v1537, %v1618
    %v1620 = vpop.f32.mrf.mxu0
    %v1621 = vpop.f32.mrf.mxu0
    %1622 = vdwg.mxu0
    %v1623 = vadd.f32 %v1576, %v451
    %v1624 = vadd.f32 %v1578, %v455
    %v1625 = vadd.f32 %v1617, %v459
    %v1626 = vadd.f32 %v1619, %v463
    %v1627 = vxor.u32 %v1623, 2147483648
    %v1628 = vmul.f32 %v1627, 1.442695
    %v1629 = vpow.pop %v1628
    %v1630 = vadd.f32 %v1629, 1.0
    %v1631 = vrcp.pop %v1630
    %v1632 = vmul.f32 1.0, %v1631
    %v1633 = vxor.u32 %v1624, 2147483648
    %v1634 = vmul.f32 %v1633, 1.442695
    %v1635 = vpow.pop %v1634
    %v1636 = vadd.f32 %v1635, 1.0
    %v1637 = vrcp.pop %v1636
    %v1638 = vmul.f32 1.0, %v1637
    %v1639 = vtanh.pop %v1625
    %v1640 = vxor.u32 %v1626, 2147483648
    %v1641 = vmul.f32 %v1640, 1.442695
    %v1642 = vpow.pop %v1641
    %v1643 = vadd.f32 %v1642, 1.0
    %v1644 = vrcp.pop %v1643
    %v1645 = vmul.f32 1.0, %v1644
    %v1646 = vmul.f32 %v1638, %v1344
    %v1647 = vmul.f32 %v1632, %v1639
    %v1648 = vadd.f32 %v1646, %v1647
    %v1649 = vtanh.pop %v1648
    %v1650 = vmul.f32 %v1645, %v1649
    %1651 = vmatprep.subr.bf16.mxu0 %v625
    %1652 = vmatpush1.bf16.msra.mxu0 %v624
    %1653 = vmatprep.subr.bf16.mxu0 %v621
    %1654 = vmatpush1.bf16.msra.mxu0 %v620
    %1655 = vmatprep.subr.bf16.mxu0 %v617
    %1656 = vmatpush1.bf16.msra.mxu0 %v616
    %1657 = vmatprep.subr.bf16.mxu0 %v613
    %1658 = vmatpush1.bf16.msra.mxu0 %v612
    %1659 = vmatprep.subr.bf16.mxu0 %v609
    %1660 = vmatpush1.bf16.msra.mxu0 %v608
    %1661 = vmatprep.subr.bf16.mxu0 %v605
    %1662 = vmatpush1.bf16.msra.mxu0 %v604
    %1663 = vmatprep.subr.bf16.mxu0 %v601
    %1664 = vmatpush1.bf16.msra.mxu0 %v600
    %1665 = vmatprep.subr.bf16.mxu0 %v597
    %1666 = vmatpush1.bf16.msra.mxu0 %v596
    %1667 = vmatprep.subr.bf16.mxu0 0
    %1668 = vmatpush2.bf16.msra.mxu0 0
    %1669 = vmatprep.subr.bf16.mxu0 0
    %1670 = vmatpush2.bf16.msra.mxu0 0
    %1671 = vmatprep.subr.bf16.mxu0 0
    %1672 = vmatpush2.bf16.msra.mxu0 0
    %1673 = vmatprep.subr.bf16.mxu0 0
    %1674 = vmatpush2.bf16.msra.mxu0 0
    %1675 = vmatprep.subr.bf16.mxu0 0
    %1676 = vmatpush2.bf16.msra.mxu0 0
    %1677 = vmatprep.subr.bf16.mxu0 0
    %1678 = vmatpush2.bf16.msra.mxu0 0
    %1679 = vmatprep.subr.bf16.mxu0 0
    %1680 = vmatpush2.bf16.msra.mxu0 0
    %1681 = vmatprep.subr.bf16.mxu0 0
    %1682 = vmatpush2.bf16.msra.mxu0 0
    %1683 = vmatprep.mubr.bf16.mxu0 0
    %1684 = vmatmul.mubr.bf16.gmra.mxu0 %v1457
    %v1685 = vpop.f32.mrf.mxu0
    %v1686 = vadd.f32 0.0, %v1685
    %v1687 = vpop.f32.mrf.mxu0
    %v1688 = vadd.f32 0.0, %v1687
    %v1689 = vpop.f32.mrf.mxu0
    %v1690 = vpop.f32.mrf.mxu0
    %1691 = vdwg.mxu0
    %1692 = vmatprep.subr.bf16.mxu0 %v627
    %1693 = vmatpush1.bf16.msra.mxu0 %v626
    %1694 = vmatprep.subr.bf16.mxu0 %v623
    %1695 = vmatpush1.bf16.msra.mxu0 %v622
    %1696 = vmatprep.subr.bf16.mxu0 %v619
    %1697 = vmatpush1.bf16.msra.mxu0 %v618
    %1698 = vmatprep.subr.bf16.mxu0 %v615
    %1699 = vmatpush1.bf16.msra.mxu0 %v614
    %1700 = vmatprep.subr.bf16.mxu0 %v611
    %1701 = vmatpush1.bf16.msra.mxu0 %v610
    %1702 = vmatprep.subr.bf16.mxu0 %v607
    %1703 = vmatpush1.bf16.msra.mxu0 %v606
    %1704 = vmatprep.subr.bf16.mxu0 %v603
    %1705 = vmatpush1.bf16.msra.mxu0 %v602
    %1706 = vmatprep.subr.bf16.mxu0 %v599
    %1707 = vmatpush1.bf16.msra.mxu0 %v598
    %1708 = vmatprep.subr.bf16.mxu0 0
    %1709 = vmatpush2.bf16.msra.mxu0 0
    %1710 = vmatprep.subr.bf16.mxu0 0
    %1711 = vmatpush2.bf16.msra.mxu0 0
    %1712 = vmatprep.subr.bf16.mxu0 0
    %1713 = vmatpush2.bf16.msra.mxu0 0
    %1714 = vmatprep.subr.bf16.mxu0 0
    %1715 = vmatpush2.bf16.msra.mxu0 0
    %1716 = vmatprep.subr.bf16.mxu0 0
    %1717 = vmatpush2.bf16.msra.mxu0 0
    %1718 = vmatprep.subr.bf16.mxu0 0
    %1719 = vmatpush2.bf16.msra.mxu0 0
    %1720 = vmatprep.subr.bf16.mxu0 0
    %1721 = vmatpush2.bf16.msra.mxu0 0
    %1722 = vmatprep.subr.bf16.mxu0 0
    %1723 = vmatpush2.bf16.msra.mxu0 0
    %1724 = vmatprep.mubr.bf16.mxu0 0
    %1725 = vmatmul.mubr.bf16.gmra.mxu0 %v1457
    %v1726 = vpop.f32.mrf.mxu0
    %v1727 = vadd.f32 0.0, %v1726
    %v1728 = vpop.f32.mrf.mxu0
    %v1729 = vadd.f32 0.0, %v1728
    %v1730 = vpop.f32.mrf.mxu0
    %v1731 = vpop.f32.mrf.mxu0
    %1732 = vdwg.mxu0
    %v1733 = vadd.f32 %v345, %v1686
    %v1734 = vadd.f32 %v347, %v1688
    %v1735 = vadd.f32 %v418, %v1727
    %v1736 = vadd.f32 %v420, %v1729
    %v1737 = vxor.u32 %v1733, 2147483648
    %v1738 = vmul.f32 %v1737, 1.442695
    %v1739 = vpow.pop %v1738
    %v1740 = vadd.f32 %v1739, 1.0
    %v1741 = vrcp.pop %v1740
    %v1742 = vmul.f32 1.0, %v1741
    %v1743 = vxor.u32 %v1734, 2147483648
    %v1744 = vmul.f32 %v1743, 1.442695
    %v1745 = vpow.pop %v1744
    %v1746 = vadd.f32 %v1745, 1.0
    %v1747 = vrcp.pop %v1746
    %v1748 = vmul.f32 1.0, %v1747
    %v1749 = vtanh.pop %v1735
    %v1750 = vxor.u32 %v1736, 2147483648
    %v1751 = vmul.f32 %v1750, 1.442695
    %v1752 = vpow.pop %v1751
    %v1753 = vadd.f32 %v1752, 1.0
    %v1754 = vrcp.pop %v1753
    %v1755 = vmul.f32 1.0, %v1754
    %v1756 = vmul.f32 %v1748, %v1454
    %v1757 = vmul.f32 %v1742, %v1749
    %v1758 = vadd.f32 %v1756, %v1757
    %v1759 = vtanh.pop %v1758
    %v1760 = vmul.f32 %v1755, %v1759
    %v1761 = vpack.c.bf16 %v1760, %v1760
    %v1762 = vpack.c.bf16 %v1650, %v1650
    %1763 = vmatprep.subr.bf16.mxu0 %v960
    %1764 = vmatpush1.bf16.msra.mxu0 %v959
    %1765 = vmatprep.subr.bf16.mxu0 %v956
    %1766 = vmatpush1.bf16.msra.mxu0 %v955
    %1767 = vmatprep.subr.bf16.mxu0 %v952
    %1768 = vmatpush1.bf16.msra.mxu0 %v951
    %1769 = vmatprep.subr.bf16.mxu0 %v948
    %1770 = vmatpush1.bf16.msra.mxu0 %v947
    %1771 = vmatprep.subr.bf16.mxu0 %v944
    %1772 = vmatpush1.bf16.msra.mxu0 %v943
    %1773 = vmatprep.subr.bf16.mxu0 %v940
    %1774 = vmatpush1.bf16.msra.mxu0 %v939
    %1775 = vmatprep.subr.bf16.mxu0 %v936
    %1776 = vmatpush1.bf16.msra.mxu0 %v935
    %1777 = vmatprep.subr.bf16.mxu0 %v932
    %1778 = vmatpush1.bf16.msra.mxu0 %v931
    %1779 = vmatprep.subr.bf16.mxu0 0
    %1780 = vmatpush2.bf16.msra.mxu0 0
    %1781 = vmatprep.subr.bf16.mxu0 0
    %1782 = vmatpush2.bf16.msra.mxu0 0
    %1783 = vmatprep.subr.bf16.mxu0 0
    %1784 = vmatpush2.bf16.msra.mxu0 0
    %1785 = vmatprep.subr.bf16.mxu0 0
    %1786 = vmatpush2.bf16.msra.mxu0 0
    %1787 = vmatprep.subr.bf16.mxu0 0
    %1788 = vmatpush2.bf16.msra.mxu0 0
    %1789 = vmatprep.subr.bf16.mxu0 0
    %1790 = vmatpush2.bf16.msra.mxu0 0
    %1791 = vmatprep.subr.bf16.mxu0 0
    %1792 = vmatpush2.bf16.msra.mxu0 0
    %1793 = vmatprep.subr.bf16.mxu0 0
    %1794 = vmatpush2.bf16.msra.mxu0 0
    %1795 = vmatprep.mubr.bf16.mxu0 0
    %1796 = vmatmul.mubr.bf16.gmra.mxu0 %v1762
    %v1797 = vpop.f32.mrf.mxu0
    %v1798 = vadd.f32 0.0, %v1797
    %v1799 = vpop.f32.mrf.mxu0
    %v1800 = vadd.f32 0.0, %v1799
    %v1801 = vpop.f32.mrf.mxu0
    %v1802 = vpop.f32.mrf.mxu0
    %1803 = vdwg.mxu0
    %1804 = vmatprep.subr.bf16.mxu0 %v962
    %1805 = vmatpush1.bf16.msra.mxu0 %v961
    %1806 = vmatprep.subr.bf16.mxu0 %v958
    %1807 = vmatpush1.bf16.msra.mxu0 %v957
    %1808 = vmatprep.subr.bf16.mxu0 %v954
    %1809 = vmatpush1.bf16.msra.mxu0 %v953
    %1810 = vmatprep.subr.bf16.mxu0 %v950
    %1811 = vmatpush1.bf16.msra.mxu0 %v949
    %1812 = vmatprep.subr.bf16.mxu0 %v946
    %1813 = vmatpush1.bf16.msra.mxu0 %v945
    %1814 = vmatprep.subr.bf16.mxu0 %v942
    %1815 = vmatpush1.bf16.msra.mxu0 %v941
    %1816 = vmatprep.subr.bf16.mxu0 %v938
    %1817 = vmatpush1.bf16.msra.mxu0 %v937
    %1818 = vmatprep.subr.bf16.mxu0 %v934
    %1819 = vmatpush1.bf16.msra.mxu0 %v933
    %1820 = vmatprep.subr.bf16.mxu0 0
    %1821 = vmatpush2.bf16.msra.mxu0 0
    %1822 = vmatprep.subr.bf16.mxu0 0
    %1823 = vmatpush2.bf16.msra.mxu0 0
    %1824 = vmatprep.subr.bf16.mxu0 0
    %1825 = vmatpush2.bf16.msra.mxu0 0
    %1826 = vmatprep.subr.bf16.mxu0 0
    %1827 = vmatpush2.bf16.msra.mxu0 0
    %1828 = vmatprep.subr.bf16.mxu0 0
    %1829 = vmatpush2.bf16.msra.mxu0 0
    %1830 = vmatprep.subr.bf16.mxu0 0
    %1831 = vmatpush2.bf16.msra.mxu0 0
    %1832 = vmatprep.subr.bf16.mxu0 0
    %1833 = vmatpush2.bf16.msra.mxu0 0
    %1834 = vmatprep.subr.bf16.mxu0 0
    %1835 = vmatpush2.bf16.msra.mxu0 0
    %1836 = vmatprep.mubr.bf16.mxu0 0
    %1837 = vmatmul.mubr.bf16.gmra.mxu0 %v1762
    %v1838 = vpop.f32.mrf.mxu0
    %v1839 = vadd.f32 0.0, %v1838
    %v1840 = vpop.f32.mrf.mxu0
    %v1841 = vadd.f32 0.0, %v1840
    %v1842 = vpop.f32.mrf.mxu0
    %v1843 = vpop.f32.mrf.mxu0
    %1844 = vdwg.mxu0
    %1845 = vmatprep.subr.bf16.mxu0 %v1202
    %1846 = vmatpush1.bf16.msra.mxu0 %v1201
    %1847 = vmatprep.subr.bf16.mxu0 %v1198
    %1848 = vmatpush1.bf16.msra.mxu0 %v1197
    %1849 = vmatprep.subr.bf16.mxu0 %v1194
    %1850 = vmatpush1.bf16.msra.mxu0 %v1193
    %1851 = vmatprep.subr.bf16.mxu0 %v1190
    %1852 = vmatpush1.bf16.msra.mxu0 %v1189
    %1853 = vmatprep.subr.bf16.mxu0 %v1186
    %1854 = vmatpush1.bf16.msra.mxu0 %v1185
    %1855 = vmatprep.subr.bf16.mxu0 %v1182
    %1856 = vmatpush1.bf16.msra.mxu0 %v1181
    %1857 = vmatprep.subr.bf16.mxu0 %v1178
    %1858 = vmatpush1.bf16.msra.mxu0 %v1177
    %1859 = vmatprep.subr.bf16.mxu0 %v1174
    %1860 = vmatpush1.bf16.msra.mxu0 %v1173
    %1861 = vmatprep.subr.bf16.mxu0 0
    %1862 = vmatpush2.bf16.msra.mxu0 0
    %1863 = vmatprep.subr.bf16.mxu0 0
    %1864 = vmatpush2.bf16.msra.mxu0 0
    %1865 = vmatprep.subr.bf16.mxu0 0
    %1866 = vmatpush2.bf16.msra.mxu0 0
    %1867 = vmatprep.subr.bf16.mxu0 0
    %1868 = vmatpush2.bf16.msra.mxu0 0
    %1869 = vmatprep.subr.bf16.mxu0 0
    %1870 = vmatpush2.bf16.msra.mxu0 0
    %1871 = vmatprep.subr.bf16.mxu0 0
    %1872 = vmatpush2.bf16.msra.mxu0 0
    %1873 = vmatprep.subr.bf16.mxu0 0
    %1874 = vmatpush2.bf16.msra.mxu0 0
    %1875 = vmatprep.subr.bf16.mxu0 0
    %1876 = vmatpush2.bf16.msra.mxu0 0
    %1877 = vmatprep.mubr.bf16.mxu0 0
    %1878 = vmatmul.mubr.bf16.gmra.mxu0 %v1761
    %v1879 = vpop.f32.mrf.mxu0
    %v1880 = vadd.f32 %v1798, %v1879
    %v1881 = vpop.f32.mrf.mxu0
    %v1882 = vadd.f32 %v1800, %v1881
    %v1883 = vpop.f32.mrf.mxu0
    %v1884 = vpop.f32.mrf.mxu0
    %1885 = vdwg.mxu0
    %1886 = vmatprep.subr.bf16.mxu0 %v1204
    %1887 = vmatpush1.bf16.msra.mxu0 %v1203
    %1888 = vmatprep.subr.bf16.mxu0 %v1200
    %1889 = vmatpush1.bf16.msra.mxu0 %v1199
    %1890 = vmatprep.subr.bf16.mxu0 %v1196
    %1891 = vmatpush1.bf16.msra.mxu0 %v1195
    %1892 = vmatprep.subr.bf16.mxu0 %v1192
    %1893 = vmatpush1.bf16.msra.mxu0 %v1191
    %1894 = vmatprep.subr.bf16.mxu0 %v1188
    %1895 = vmatpush1.bf16.msra.mxu0 %v1187
    %1896 = vmatprep.subr.bf16.mxu0 %v1184
    %1897 = vmatpush1.bf16.msra.mxu0 %v1183
    %1898 = vmatprep.subr.bf16.mxu0 %v1180
    %1899 = vmatpush1.bf16.msra.mxu0 %v1179
    %1900 = vmatprep.subr.bf16.mxu0 %v1176
    %1901 = vmatpush1.bf16.msra.mxu0 %v1175
    %1902 = vmatprep.subr.bf16.mxu0 0
    %1903 = vmatpush2.bf16.msra.mxu0 0
    %1904 = vmatprep.subr.bf16.mxu0 0
    %1905 = vmatpush2.bf16.msra.mxu0 0
    %1906 = vmatprep.subr.bf16.mxu0 0
    %1907 = vmatpush2.bf16.msra.mxu0 0
    %1908 = vmatprep.subr.bf16.mxu0 0
    %1909 = vmatpush2.bf16.msra.mxu0 0
    %1910 = vmatprep.subr.bf16.mxu0 0
    %1911 = vmatpush2.bf16.msra.mxu0 0
    %1912 = vmatprep.subr.bf16.mxu0 0
    %1913 = vmatpush2.bf16.msra.mxu0 0
    %1914 = vmatprep.subr.bf16.mxu0 0
    %1915 = vmatpush2.bf16.msra.mxu0 0
    %1916 = vmatprep.subr.bf16.mxu0 0
    %1917 = vmatpush2.bf16.msra.mxu0 0
    %1918 = vmatprep.mubr.bf16.mxu0 0
    %1919 = vmatmul.mubr.bf16.gmra.mxu0 %v1761
    %v1920 = vpop.f32.mrf.mxu0
    %v1921 = vadd.f32 %v1839, %v1920
    %v1922 = vpop.f32.mrf.mxu0
    %v1923 = vadd.f32 %v1841, %v1922
    %v1924 = vpop.f32.mrf.mxu0
    %v1925 = vpop.f32.mrf.mxu0
    %1926 = vdwg.mxu0
    %v1927 = vadd.f32 %v1880, %v451
    %v1928 = vadd.f32 %v1882, %v455
    %v1929 = vadd.f32 %v1921, %v459
    %v1930 = vadd.f32 %v1923, %v463
    %v1931 = vxor.u32 %v1927, 2147483648
    %v1932 = vmul.f32 %v1931, 1.442695
    %v1933 = vpow.pop %v1932
    %v1934 = vadd.f32 %v1933, 1.0
    %v1935 = vrcp.pop %v1934
    %v1936 = vmul.f32 1.0, %v1935
    %v1937 = vxor.u32 %v1928, 2147483648
    %v1938 = vmul.f32 %v1937, 1.442695
    %v1939 = vpow.pop %v1938
    %v1940 = vadd.f32 %v1939, 1.0
    %v1941 = vrcp.pop %v1940
    %v1942 = vmul.f32 1.0, %v1941
    %v1943 = vtanh.pop %v1929
    %v1944 = vxor.u32 %v1930, 2147483648
    %v1945 = vmul.f32 %v1944, 1.442695
    %v1946 = vpow.pop %v1945
    %v1947 = vadd.f32 %v1946, 1.0
    %v1948 = vrcp.pop %v1947
    %v1949 = vmul.f32 1.0, %v1948
    %v1950 = vmul.f32 %v1942, %v1648
    %v1951 = vmul.f32 %v1936, %v1943
    %v1952 = vadd.f32 %v1950, %v1951
    %v1953 = vtanh.pop %v1952
    %v1954 = vmul.f32 %v1949, %v1953
    %1955 = vmatprep.subr.bf16.mxu0 %v625
    %1956 = vmatpush1.bf16.msra.mxu0 %v624
    %1957 = vmatprep.subr.bf16.mxu0 %v621
    %1958 = vmatpush1.bf16.msra.mxu0 %v620
    %1959 = vmatprep.subr.bf16.mxu0 %v617
    %1960 = vmatpush1.bf16.msra.mxu0 %v616
    %1961 = vmatprep.subr.bf16.mxu0 %v613
    %1962 = vmatpush1.bf16.msra.mxu0 %v612
    %1963 = vmatprep.subr.bf16.mxu0 %v609
    %1964 = vmatpush1.bf16.msra.mxu0 %v608
    %1965 = vmatprep.subr.bf16.mxu0 %v605
    %1966 = vmatpush1.bf16.msra.mxu0 %v604
    %1967 = vmatprep.subr.bf16.mxu0 %v601
    %1968 = vmatpush1.bf16.msra.mxu0 %v600
    %1969 = vmatprep.subr.bf16.mxu0 %v597
    %1970 = vmatpush1.bf16.msra.mxu0 %v596
    %1971 = vmatprep.subr.bf16.mxu0 0
    %1972 = vmatpush2.bf16.msra.mxu0 0
    %1973 = vmatprep.subr.bf16.mxu0 0
    %1974 = vmatpush2.bf16.msra.mxu0 0
    %1975 = vmatprep.subr.bf16.mxu0 0
    %1976 = vmatpush2.bf16.msra.mxu0 0
    %1977 = vmatprep.subr.bf16.mxu0 0
    %1978 = vmatpush2.bf16.msra.mxu0 0
    %1979 = vmatprep.subr.bf16.mxu0 0
    %1980 = vmatpush2.bf16.msra.mxu0 0
    %1981 = vmatprep.subr.bf16.mxu0 0
    %1982 = vmatpush2.bf16.msra.mxu0 0
    %1983 = vmatprep.subr.bf16.mxu0 0
    %1984 = vmatpush2.bf16.msra.mxu0 0
    %1985 = vmatprep.subr.bf16.mxu0 0
    %1986 = vmatpush2.bf16.msra.mxu0 0
    %1987 = vmatprep.mubr.bf16.mxu0 0
    %1988 = vmatmul.mubr.bf16.gmra.mxu0 %v1761
    %v1989 = vpop.f32.mrf.mxu0
    %v1990 = vadd.f32 0.0, %v1989
    %v1991 = vpop.f32.mrf.mxu0
    %v1992 = vadd.f32 0.0, %v1991
    %v1993 = vpop.f32.mrf.mxu0
    %v1994 = vpop.f32.mrf.mxu0
    %1995 = vdwg.mxu0
    %1996 = vmatprep.subr.bf16.mxu0 %v627
    %1997 = vmatpush1.bf16.msra.mxu0 %v626
    %1998 = vmatprep.subr.bf16.mxu0 %v623
    %1999 = vmatpush1.bf16.msra.mxu0 %v622
    %2000 = vmatprep.subr.bf16.mxu0 %v619
    %2001 = vmatpush1.bf16.msra.mxu0 %v618
    %2002 = vmatprep.subr.bf16.mxu0 %v615
    %2003 = vmatpush1.bf16.msra.mxu0 %v614
    %2004 = vmatprep.subr.bf16.mxu0 %v611
    %2005 = vmatpush1.bf16.msra.mxu0 %v610
    %2006 = vmatprep.subr.bf16.mxu0 %v607
    %2007 = vmatpush1.bf16.msra.mxu0 %v606
    %2008 = vmatprep.subr.bf16.mxu0 %v603
    %2009 = vmatpush1.bf16.msra.mxu0 %v602
    %2010 = vmatprep.subr.bf16.mxu0 %v599
    %2011 = vmatpush1.bf16.msra.mxu0 %v598
    %2012 = vmatprep.subr.bf16.mxu0 0
    %2013 = vmatpush2.bf16.msra.mxu0 0
    %2014 = vmatprep.subr.bf16.mxu0 0
    %2015 = vmatpush2.bf16.msra.mxu0 0
    %2016 = vmatprep.subr.bf16.mxu0 0
    %2017 = vmatpush2.bf16.msra.mxu0 0
    %2018 = vmatprep.subr.bf16.mxu0 0
    %2019 = vmatpush2.bf16.msra.mxu0 0
    %2020 = vmatprep.subr.bf16.mxu0 0
    %2021 = vmatpush2.bf16.msra.mxu0 0
    %2022 = vmatprep.subr.bf16.mxu0 0
    %2023 = vmatpush2.bf16.msra.mxu0 0
    %2024 = vmatprep.subr.bf16.mxu0 0
    %2025 = vmatpush2.bf16.msra.mxu0 0
    %2026 = vmatprep.subr.bf16.mxu0 0
    %2027 = vmatpush2.bf16.msra.mxu0 0
    %2028 = vmatprep.mubr.bf16.mxu0 0
    %2029 = vmatmul.mubr.bf16.gmra.mxu0 %v1761
    %v2030 = vpop.f32.mrf.mxu0
    %v2031 = vadd.f32 0.0, %v2030
    %v2032 = vpop.f32.mrf.mxu0
    %v2033 = vadd.f32 0.0, %v2032
    %v2034 = vpop.f32.mrf.mxu0
    %v2035 = vpop.f32.mrf.mxu0
    %2036 = vdwg.mxu0
    %v2037 = vadd.f32 %v349, %v1990
    %v2038 = vadd.f32 %v351, %v1992
    %v2039 = vadd.f32 %v422, %v2031
    %v2040 = vadd.f32 %v424, %v2033
    %v2041 = vxor.u32 %v2037, 2147483648
    %v2042 = vmul.f32 %v2041, 1.442695
    %v2043 = vpow.pop %v2042
    %v2044 = vadd.f32 %v2043, 1.0
    %v2045 = vrcp.pop %v2044
    %v2046 = vmul.f32 1.0, %v2045
    %v2047 = vxor.u32 %v2038, 2147483648
    %v2048 = vmul.f32 %v2047, 1.442695
    %v2049 = vpow.pop %v2048
    %v2050 = vadd.f32 %v2049, 1.0
    %v2051 = vrcp.pop %v2050
    %v2052 = vmul.f32 1.0, %v2051
    %v2053 = vtanh.pop %v2039
    %v2054 = vxor.u32 %v2040, 2147483648
    %v2055 = vmul.f32 %v2054, 1.442695
    %v2056 = vpow.pop %v2055
    %v2057 = vadd.f32 %v2056, 1.0
    %v2058 = vrcp.pop %v2057
    %v2059 = vmul.f32 1.0, %v2058
    %v2060 = vmul.f32 %v2052, %v1758
    %v2061 = vmul.f32 %v2046, %v2053
    %v2062 = vadd.f32 %v2060, %v2061
    %v2063 = vtanh.pop %v2062
    %v2064 = vmul.f32 %v2059, %v2063
    %v2065 = vpack.c.bf16 %v2064, %v2064
    %v2066 = vpack.c.bf16 %v1954, %v1954
    %2067 = vmatprep.subr.bf16.mxu0 %v960
    %2068 = vmatpush1.bf16.msra.mxu0 %v959
    %2069 = vmatprep.subr.bf16.mxu0 %v956
    %2070 = vmatpush1.bf16.msra.mxu0 %v955
    %2071 = vmatprep.subr.bf16.mxu0 %v952
    %2072 = vmatpush1.bf16.msra.mxu0 %v951
    %2073 = vmatprep.subr.bf16.mxu0 %v948
    %2074 = vmatpush1.bf16.msra.mxu0 %v947
    %2075 = vmatprep.subr.bf16.mxu0 %v944
    %2076 = vmatpush1.bf16.msra.mxu0 %v943
    %2077 = vmatprep.subr.bf16.mxu0 %v940
    %2078 = vmatpush1.bf16.msra.mxu0 %v939
    %2079 = vmatprep.subr.bf16.mxu0 %v936
    %2080 = vmatpush1.bf16.msra.mxu0 %v935
    %2081 = vmatprep.subr.bf16.mxu0 %v932
    %2082 = vmatpush1.bf16.msra.mxu0 %v931
    %2083 = vmatprep.subr.bf16.mxu0 0
    %2084 = vmatpush2.bf16.msra.mxu0 0
    %2085 = vmatprep.subr.bf16.mxu0 0
    %2086 = vmatpush2.bf16.msra.mxu0 0
    %2087 = vmatprep.subr.bf16.mxu0 0
    %2088 = vmatpush2.bf16.msra.mxu0 0
    %2089 = vmatprep.subr.bf16.mxu0 0
    %2090 = vmatpush2.bf16.msra.mxu0 0
    %2091 = vmatprep.subr.bf16.mxu0 0
    %2092 = vmatpush2.bf16.msra.mxu0 0
    %2093 = vmatprep.subr.bf16.mxu0 0
    %2094 = vmatpush2.bf16.msra.mxu0 0
    %2095 = vmatprep.subr.bf16.mxu0 0
    %2096 = vmatpush2.bf16.msra.mxu0 0
    %2097 = vmatprep.subr.bf16.mxu0 0
    %2098 = vmatpush2.bf16.msra.mxu0 0
    %2099 = vmatprep.mubr.bf16.mxu0 0
    %2100 = vmatmul.mubr.bf16.gmra.mxu0 %v2066
    %v2101 = vpop.f32.mrf.mxu0
    %v2102 = vadd.f32 0.0, %v2101
    %v2103 = vpop.f32.mrf.mxu0
    %v2104 = vadd.f32 0.0, %v2103
    %v2105 = vpop.f32.mrf.mxu0
    %v2106 = vpop.f32.mrf.mxu0
    %2107 = vdwg.mxu0
    %2108 = vmatprep.subr.bf16.mxu0 %v962
    %2109 = vmatpush1.bf16.msra.mxu0 %v961
    %2110 = vmatprep.subr.bf16.mxu0 %v958
    %2111 = vmatpush1.bf16.msra.mxu0 %v957
    %2112 = vmatprep.subr.bf16.mxu0 %v954
    %2113 = vmatpush1.bf16.msra.mxu0 %v953
    %2114 = vmatprep.subr.bf16.mxu0 %v950
    %2115 = vmatpush1.bf16.msra.mxu0 %v949
    %2116 = vmatprep.subr.bf16.mxu0 %v946
    %2117 = vmatpush1.bf16.msra.mxu0 %v945
    %2118 = vmatprep.subr.bf16.mxu0 %v942
    %2119 = vmatpush1.bf16.msra.mxu0 %v941
    %2120 = vmatprep.subr.bf16.mxu0 %v938
    %2121 = vmatpush1.bf16.msra.mxu0 %v937
    %2122 = vmatprep.subr.bf16.mxu0 %v934
    %2123 = vmatpush1.bf16.msra.mxu0 %v933
    %2124 = vmatprep.subr.bf16.mxu0 0
    %2125 = vmatpush2.bf16.msra.mxu0 0
    %2126 = vmatprep.subr.bf16.mxu0 0
    %2127 = vmatpush2.bf16.msra.mxu0 0
    %2128 = vmatprep.subr.bf16.mxu0 0
    %2129 = vmatpush2.bf16.msra.mxu0 0
    %2130 = vmatprep.subr.bf16.mxu0 0
    %2131 = vmatpush2.bf16.msra.mxu0 0
    %2132 = vmatprep.subr.bf16.mxu0 0
    %2133 = vmatpush2.bf16.msra.mxu0 0
    %2134 = vmatprep.subr.bf16.mxu0 0
    %2135 = vmatpush2.bf16.msra.mxu0 0
    %2136 = vmatprep.subr.bf16.mxu0 0
    %2137 = vmatpush2.bf16.msra.mxu0 0
    %2138 = vmatprep.subr.bf16.mxu0 0
    %2139 = vmatpush2.bf16.msra.mxu0 0
    %2140 = vmatprep.mubr.bf16.mxu0 0
    %2141 = vmatmul.mubr.bf16.gmra.mxu0 %v2066
    %v2142 = vpop.f32.mrf.mxu0
    %v2143 = vadd.f32 0.0, %v2142
    %v2144 = vpop.f32.mrf.mxu0
    %v2145 = vadd.f32 0.0, %v2144
    %v2146 = vpop.f32.mrf.mxu0
    %v2147 = vpop.f32.mrf.mxu0
    %2148 = vdwg.mxu0
    %2149 = vmatprep.subr.bf16.mxu0 %v1202
    %2150 = vmatpush1.bf16.msra.mxu0 %v1201
    %2151 = vmatprep.subr.bf16.mxu0 %v1198
    %2152 = vmatpush1.bf16.msra.mxu0 %v1197
    %2153 = vmatprep.subr.bf16.mxu0 %v1194
    %2154 = vmatpush1.bf16.msra.mxu0 %v1193
    %2155 = vmatprep.subr.bf16.mxu0 %v1190
    %2156 = vmatpush1.bf16.msra.mxu0 %v1189
    %2157 = vmatprep.subr.bf16.mxu0 %v1186
    %2158 = vmatpush1.bf16.msra.mxu0 %v1185
    %2159 = vmatprep.subr.bf16.mxu0 %v1182
    %2160 = vmatpush1.bf16.msra.mxu0 %v1181
    %2161 = vmatprep.subr.bf16.mxu0 %v1178
    %2162 = vmatpush1.bf16.msra.mxu0 %v1177
    %2163 = vmatprep.subr.bf16.mxu0 %v1174
    %2164 = vmatpush1.bf16.msra.mxu0 %v1173
    %2165 = vmatprep.subr.bf16.mxu0 0
    %2166 = vmatpush2.bf16.msra.mxu0 0
    %2167 = vmatprep.subr.bf16.mxu0 0
    %2168 = vmatpush2.bf16.msra.mxu0 0
    %2169 = vmatprep.subr.bf16.mxu0 0
    %2170 = vmatpush2.bf16.msra.mxu0 0
    %2171 = vmatprep.subr.bf16.mxu0 0
    %2172 = vmatpush2.bf16.msra.mxu0 0
    %2173 = vmatprep.subr.bf16.mxu0 0
    %2174 = vmatpush2.bf16.msra.mxu0 0
    %2175 = vmatprep.subr.bf16.mxu0 0
    %2176 = vmatpush2.bf16.msra.mxu0 0
    %2177 = vmatprep.subr.bf16.mxu0 0
    %2178 = vmatpush2.bf16.msra.mxu0 0
    %2179 = vmatprep.subr.bf16.mxu0 0
    %2180 = vmatpush2.bf16.msra.mxu0 0
    %2181 = vmatprep.mubr.bf16.mxu0 0
    %2182 = vmatmul.mubr.bf16.gmra.mxu0 %v2065
    %v2183 = vpop.f32.mrf.mxu0
    %v2184 = vadd.f32 %v2102, %v2183
    %v2185 = vpop.f32.mrf.mxu0
    %v2186 = vadd.f32 %v2104, %v2185
    %v2187 = vpop.f32.mrf.mxu0
    %v2188 = vpop.f32.mrf.mxu0
    %2189 = vdwg.mxu0
    %2190 = vmatprep.subr.bf16.mxu0 %v1204
    %2191 = vmatpush1.bf16.msra.mxu0 %v1203
    %2192 = vmatprep.subr.bf16.mxu0 %v1200
    %2193 = vmatpush1.bf16.msra.mxu0 %v1199
    %2194 = vmatprep.subr.bf16.mxu0 %v1196
    %2195 = vmatpush1.bf16.msra.mxu0 %v1195
    %2196 = vmatprep.subr.bf16.mxu0 %v1192
    %2197 = vmatpush1.bf16.msra.mxu0 %v1191
    %2198 = vmatprep.subr.bf16.mxu0 %v1188
    %2199 = vmatpush1.bf16.msra.mxu0 %v1187
    %2200 = vmatprep.subr.bf16.mxu0 %v1184
    %2201 = vmatpush1.bf16.msra.mxu0 %v1183
    %2202 = vmatprep.subr.bf16.mxu0 %v1180
    %2203 = vmatpush1.bf16.msra.mxu0 %v1179
    %2204 = vmatprep.subr.bf16.mxu0 %v1176
    %2205 = vmatpush1.bf16.msra.mxu0 %v1175
    %2206 = vmatprep.subr.bf16.mxu0 0
    %2207 = vmatpush2.bf16.msra.mxu0 0
    %2208 = vmatprep.subr.bf16.mxu0 0
    %2209 = vmatpush2.bf16.msra.mxu0 0
    %2210 = vmatprep.subr.bf16.mxu0 0
    %2211 = vmatpush2.bf16.msra.mxu0 0
    %2212 = vmatprep.subr.bf16.mxu0 0
    %2213 = vmatpush2.bf16.msra.mxu0 0
    %2214 = vmatprep.subr.bf16.mxu0 0
    %2215 = vmatpush2.bf16.msra.mxu0 0
    %2216 = vmatprep.subr.bf16.mxu0 0
    %2217 = vmatpush2.bf16.msra.mxu0 0
    %2218 = vmatprep.subr.bf16.mxu0 0
    %2219 = vmatpush2.bf16.msra.mxu0 0
    %2220 = vmatprep.subr.bf16.mxu0 0
    %2221 = vmatpush2.bf16.msra.mxu0 0
    %2222 = vmatprep.mubr.bf16.mxu0 0
    %2223 = vmatmul.mubr.bf16.gmra.mxu0 %v2065
    %v2224 = vpop.f32.mrf.mxu0
    %v2225 = vadd.f32 %v2143, %v2224
    %v2226 = vpop.f32.mrf.mxu0
    %v2227 = vadd.f32 %v2145, %v2226
    %v2228 = vpop.f32.mrf.mxu0
    %v2229 = vpop.f32.mrf.mxu0
    %2230 = vdwg.mxu0
    %v2231 = vadd.f32 %v2184, %v451
    %v2232 = vadd.f32 %v2186, %v455
    %v2233 = vadd.f32 %v2225, %v459
    %v2234 = vadd.f32 %v2227, %v463
    %v2235 = vxor.u32 %v2231, 2147483648
    %v2236 = vmul.f32 %v2235, 1.442695
    %v2237 = vpow.pop %v2236
    %v2238 = vadd.f32 %v2237, 1.0
    %v2239 = vrcp.pop %v2238
    %v2240 = vmul.f32 1.0, %v2239
    %v2241 = vxor.u32 %v2232, 2147483648
    %v2242 = vmul.f32 %v2241, 1.442695
    %v2243 = vpow.pop %v2242
    %v2244 = vadd.f32 %v2243, 1.0
    %v2245 = vrcp.pop %v2244
    %v2246 = vmul.f32 1.0, %v2245
    %v2247 = vtanh.pop %v2233
    %v2248 = vxor.u32 %v2234, 2147483648
    %v2249 = vmul.f32 %v2248, 1.442695
    %v2250 = vpow.pop %v2249
    %v2251 = vadd.f32 %v2250, 1.0
    %v2252 = vrcp.pop %v2251
    %v2253 = vmul.f32 1.0, %v2252
    %v2254 = vmul.f32 %v2246, %v1952
    %v2255 = vmul.f32 %v2240, %v2247
    %v2256 = vadd.f32 %v2254, %v2255
    %v2257 = vtanh.pop %v2256
    %v2258 = vmul.f32 %v2253, %v2257
    %2259 = vmatprep.subr.bf16.mxu0 %v625
    %2260 = vmatpush1.bf16.msra.mxu0 %v624
    %2261 = vmatprep.subr.bf16.mxu0 %v621
    %2262 = vmatpush1.bf16.msra.mxu0 %v620
    %2263 = vmatprep.subr.bf16.mxu0 %v617
    %2264 = vmatpush1.bf16.msra.mxu0 %v616
    %2265 = vmatprep.subr.bf16.mxu0 %v613
    %2266 = vmatpush1.bf16.msra.mxu0 %v612
    %2267 = vmatprep.subr.bf16.mxu0 %v609
    %2268 = vmatpush1.bf16.msra.mxu0 %v608
    %2269 = vmatprep.subr.bf16.mxu0 %v605
    %2270 = vmatpush1.bf16.msra.mxu0 %v604
    %2271 = vmatprep.subr.bf16.mxu0 %v601
    %2272 = vmatpush1.bf16.msra.mxu0 %v600
    %2273 = vmatprep.subr.bf16.mxu0 %v597
    %2274 = vmatpush1.bf16.msra.mxu0 %v596
    %2275 = vmatprep.subr.bf16.mxu0 0
    %2276 = vmatpush2.bf16.msra.mxu0 0
    %2277 = vmatprep.subr.bf16.mxu0 0
    %2278 = vmatpush2.bf16.msra.mxu0 0
    %2279 = vmatprep.subr.bf16.mxu0 0
    %2280 = vmatpush2.bf16.msra.mxu0 0
    %2281 = vmatprep.subr.bf16.mxu0 0
    %2282 = vmatpush2.bf16.msra.mxu0 0
    %2283 = vmatprep.subr.bf16.mxu0 0
    %2284 = vmatpush2.bf16.msra.mxu0 0
    %2285 = vmatprep.subr.bf16.mxu0 0
    %2286 = vmatpush2.bf16.msra.mxu0 0
    %2287 = vmatprep.subr.bf16.mxu0 0
    %2288 = vmatpush2.bf16.msra.mxu0 0
    %2289 = vmatprep.subr.bf16.mxu0 0
    %2290 = vmatpush2.bf16.msra.mxu0 0
    %2291 = vmatprep.mubr.bf16.mxu0 0
    %2292 = vmatmul.mubr.bf16.gmra.mxu0 %v2065
    %v2293 = vpop.f32.mrf.mxu0
    %v2294 = vadd.f32 0.0, %v2293
    %v2295 = vpop.f32.mrf.mxu0
    %v2296 = vadd.f32 0.0, %v2295
    %v2297 = vpop.f32.mrf.mxu0
    %v2298 = vpop.f32.mrf.mxu0
    %2299 = vdwg.mxu0
    %2300 = vmatprep.subr.bf16.mxu0 %v627
    %2301 = vmatpush1.bf16.msra.mxu0 %v626
    %2302 = vmatprep.subr.bf16.mxu0 %v623
    %2303 = vmatpush1.bf16.msra.mxu0 %v622
    %2304 = vmatprep.subr.bf16.mxu0 %v619
    %2305 = vmatpush1.bf16.msra.mxu0 %v618
    %2306 = vmatprep.subr.bf16.mxu0 %v615
    %2307 = vmatpush1.bf16.msra.mxu0 %v614
    %2308 = vmatprep.subr.bf16.mxu0 %v611
    %2309 = vmatpush1.bf16.msra.mxu0 %v610
    %2310 = vmatprep.subr.bf16.mxu0 %v607
    %2311 = vmatpush1.bf16.msra.mxu0 %v606
    %2312 = vmatprep.subr.bf16.mxu0 %v603
    %2313 = vmatpush1.bf16.msra.mxu0 %v602
    %2314 = vmatprep.subr.bf16.mxu0 %v599
    %2315 = vmatpush1.bf16.msra.mxu0 %v598
    %2316 = vmatprep.subr.bf16.mxu0 0
    %2317 = vmatpush2.bf16.msra.mxu0 0
    %2318 = vmatprep.subr.bf16.mxu0 0
    %2319 = vmatpush2.bf16.msra.mxu0 0
    %2320 = vmatprep.subr.bf16.mxu0 0
    %2321 = vmatpush2.bf16.msra.mxu0 0
    %2322 = vmatprep.subr.bf16.mxu0 0
    %2323 = vmatpush2.bf16.msra.mxu0 0
    %2324 = vmatprep.subr.bf16.mxu0 0
    %2325 = vmatpush2.bf16.msra.mxu0 0
    %2326 = vmatprep.subr.bf16.mxu0 0
    %2327 = vmatpush2.bf16.msra.mxu0 0
    %2328 = vmatprep.subr.bf16.mxu0 0
    %2329 = vmatpush2.bf16.msra.mxu0 0
    %2330 = vmatprep.subr.bf16.mxu0 0
    %2331 = vmatpush2.bf16.msra.mxu0 0
    %2332 = vmatprep.mubr.bf16.mxu0 0
    %2333 = vmatmul.mubr.bf16.gmra.mxu0 %v2065
    %v2334 = vpop.f32.mrf.mxu0
    %v2335 = vadd.f32 0.0, %v2334
    %v2336 = vpop.f32.mrf.mxu0
    %v2337 = vadd.f32 0.0, %v2336
    %v2338 = vpop.f32.mrf.mxu0
    %v2339 = vpop.f32.mrf.mxu0
    %2340 = vdwg.mxu0
    %v2341 = vadd.f32 %v355, %v2294
    %v2342 = vadd.f32 %v357, %v2296
    %v2343 = vadd.f32 %v428, %v2335
    %v2344 = vadd.f32 %v430, %v2337
    %v2345 = vxor.u32 %v2341, 2147483648
    %v2346 = vmul.f32 %v2345, 1.442695
    %v2347 = vpow.pop %v2346
    %v2348 = vadd.f32 %v2347, 1.0
    %v2349 = vrcp.pop %v2348
    %v2350 = vmul.f32 1.0, %v2349
    %v2351 = vxor.u32 %v2342, 2147483648
    %v2352 = vmul.f32 %v2351, 1.442695
    %v2353 = vpow.pop %v2352
    %v2354 = vadd.f32 %v2353, 1.0
    %v2355 = vrcp.pop %v2354
    %v2356 = vmul.f32 1.0, %v2355
    %v2357 = vtanh.pop %v2343
    %v2358 = vxor.u32 %v2344, 2147483648
    %v2359 = vmul.f32 %v2358, 1.442695
    %v2360 = vpow.pop %v2359
    %v2361 = vadd.f32 %v2360, 1.0
    %v2362 = vrcp.pop %v2361
    %v2363 = vmul.f32 1.0, %v2362
    %v2364 = vmul.f32 %v2356, %v2062
    %v2365 = vmul.f32 %v2350, %v2357
    %v2366 = vadd.f32 %v2364, %v2365
    %v2367 = vtanh.pop %v2366
    %v2368 = vmul.f32 %v2363, %v2367
    %v2369 = vpack.c.bf16 %v2368, %v2368
    %v2370 = vpack.c.bf16 %v2258, %v2258
    %2371 = vmatprep.subr.bf16.mxu0 %v960
    %2372 = vmatpush1.bf16.msra.mxu0 %v959
    %2373 = vmatprep.subr.bf16.mxu0 %v956
    %2374 = vmatpush1.bf16.msra.mxu0 %v955
    %2375 = vmatprep.subr.bf16.mxu0 %v952
    %2376 = vmatpush1.bf16.msra.mxu0 %v951
    %2377 = vmatprep.subr.bf16.mxu0 %v948
    %2378 = vmatpush1.bf16.msra.mxu0 %v947
    %2379 = vmatprep.subr.bf16.mxu0 %v944
    %2380 = vmatpush1.bf16.msra.mxu0 %v943
    %2381 = vmatprep.subr.bf16.mxu0 %v940
    %2382 = vmatpush1.bf16.msra.mxu0 %v939
    %2383 = vmatprep.subr.bf16.mxu0 %v936
    %2384 = vmatpush1.bf16.msra.mxu0 %v935
    %2385 = vmatprep.subr.bf16.mxu0 %v932
    %2386 = vmatpush1.bf16.msra.mxu0 %v931
    %2387 = vmatprep.subr.bf16.mxu0 0
    %2388 = vmatpush2.bf16.msra.mxu0 0
    %2389 = vmatprep.subr.bf16.mxu0 0
    %2390 = vmatpush2.bf16.msra.mxu0 0
    %2391 = vmatprep.subr.bf16.mxu0 0
    %2392 = vmatpush2.bf16.msra.mxu0 0
    %2393 = vmatprep.subr.bf16.mxu0 0
    %2394 = vmatpush2.bf16.msra.mxu0 0
    %2395 = vmatprep.subr.bf16.mxu0 0
    %2396 = vmatpush2.bf16.msra.mxu0 0
    %2397 = vmatprep.subr.bf16.mxu0 0
    %2398 = vmatpush2.bf16.msra.mxu0 0
    %2399 = vmatprep.subr.bf16.mxu0 0
    %2400 = vmatpush2.bf16.msra.mxu0 0
    %2401 = vmatprep.subr.bf16.mxu0 0
    %2402 = vmatpush2.bf16.msra.mxu0 0
    %2403 = vmatprep.mubr.bf16.mxu0 0
    %2404 = vmatmul.mubr.bf16.gmra.mxu0 %v2370
    %v2405 = vpop.f32.mrf.mxu0
    %v2406 = vadd.f32 0.0, %v2405
    %v2407 = vpop.f32.mrf.mxu0
    %v2408 = vadd.f32 0.0, %v2407
    %v2409 = vpop.f32.mrf.mxu0
    %v2410 = vpop.f32.mrf.mxu0
    %2411 = vdwg.mxu0
    %2412 = vmatprep.subr.bf16.mxu0 %v962
    %2413 = vmatpush1.bf16.msra.mxu0 %v961
    %2414 = vmatprep.subr.bf16.mxu0 %v958
    %2415 = vmatpush1.bf16.msra.mxu0 %v957
    %2416 = vmatprep.subr.bf16.mxu0 %v954
    %2417 = vmatpush1.bf16.msra.mxu0 %v953
    %2418 = vmatprep.subr.bf16.mxu0 %v950
    %2419 = vmatpush1.bf16.msra.mxu0 %v949
    %2420 = vmatprep.subr.bf16.mxu0 %v946
    %2421 = vmatpush1.bf16.msra.mxu0 %v945
    %2422 = vmatprep.subr.bf16.mxu0 %v942
    %2423 = vmatpush1.bf16.msra.mxu0 %v941
    %2424 = vmatprep.subr.bf16.mxu0 %v938
    %2425 = vmatpush1.bf16.msra.mxu0 %v937
    %2426 = vmatprep.subr.bf16.mxu0 %v934
    %2427 = vmatpush1.bf16.msra.mxu0 %v933
    %2428 = vmatprep.subr.bf16.mxu0 0
    %2429 = vmatpush2.bf16.msra.mxu0 0
    %2430 = vmatprep.subr.bf16.mxu0 0
    %2431 = vmatpush2.bf16.msra.mxu0 0
    %2432 = vmatprep.subr.bf16.mxu0 0
    %2433 = vmatpush2.bf16.msra.mxu0 0
    %2434 = vmatprep.subr.bf16.mxu0 0
    %2435 = vmatpush2.bf16.msra.mxu0 0
    %2436 = vmatprep.subr.bf16.mxu0 0
    %2437 = vmatpush2.bf16.msra.mxu0 0
    %2438 = vmatprep.subr.bf16.mxu0 0
    %2439 = vmatpush2.bf16.msra.mxu0 0
    %2440 = vmatprep.subr.bf16.mxu0 0
    %2441 = vmatpush2.bf16.msra.mxu0 0
    %2442 = vmatprep.subr.bf16.mxu0 0
    %2443 = vmatpush2.bf16.msra.mxu0 0
    %2444 = vmatprep.mubr.bf16.mxu0 0
    %2445 = vmatmul.mubr.bf16.gmra.mxu0 %v2370
    %v2446 = vpop.f32.mrf.mxu0
    %v2447 = vadd.f32 0.0, %v2446
    %v2448 = vpop.f32.mrf.mxu0
    %v2449 = vadd.f32 0.0, %v2448
    %v2450 = vpop.f32.mrf.mxu0
    %v2451 = vpop.f32.mrf.mxu0
    %2452 = vdwg.mxu0
    %2453 = vmatprep.subr.bf16.mxu0 %v1202
    %2454 = vmatpush1.bf16.msra.mxu0 %v1201
    %2455 = vmatprep.subr.bf16.mxu0 %v1198
    %2456 = vmatpush1.bf16.msra.mxu0 %v1197
    %2457 = vmatprep.subr.bf16.mxu0 %v1194
    %2458 = vmatpush1.bf16.msra.mxu0 %v1193
    %2459 = vmatprep.subr.bf16.mxu0 %v1190
    %2460 = vmatpush1.bf16.msra.mxu0 %v1189
    %2461 = vmatprep.subr.bf16.mxu0 %v1186
    %2462 = vmatpush1.bf16.msra.mxu0 %v1185
    %2463 = vmatprep.subr.bf16.mxu0 %v1182
    %2464 = vmatpush1.bf16.msra.mxu0 %v1181
    %2465 = vmatprep.subr.bf16.mxu0 %v1178
    %2466 = vmatpush1.bf16.msra.mxu0 %v1177
    %2467 = vmatprep.subr.bf16.mxu0 %v1174
    %2468 = vmatpush1.bf16.msra.mxu0 %v1173
    %2469 = vmatprep.subr.bf16.mxu0 0
    %2470 = vmatpush2.bf16.msra.mxu0 0
    %2471 = vmatprep.subr.bf16.mxu0 0
    %2472 = vmatpush2.bf16.msra.mxu0 0
    %2473 = vmatprep.subr.bf16.mxu0 0
    %2474 = vmatpush2.bf16.msra.mxu0 0
    %2475 = vmatprep.subr.bf16.mxu0 0
    %2476 = vmatpush2.bf16.msra.mxu0 0
    %2477 = vmatprep.subr.bf16.mxu0 0
    %2478 = vmatpush2.bf16.msra.mxu0 0
    %2479 = vmatprep.subr.bf16.mxu0 0
    %2480 = vmatpush2.bf16.msra.mxu0 0
    %2481 = vmatprep.subr.bf16.mxu0 0
    %2482 = vmatpush2.bf16.msra.mxu0 0
    %2483 = vmatprep.subr.bf16.mxu0 0
    %2484 = vmatpush2.bf16.msra.mxu0 0
    %2485 = vmatprep.mubr.bf16.mxu0 0
    %2486 = vmatmul.mubr.bf16.gmra.mxu0 %v2369
    %v2487 = vpop.f32.mrf.mxu0
    %v2488 = vadd.f32 %v2406, %v2487
    %v2489 = vpop.f32.mrf.mxu0
    %v2490 = vadd.f32 %v2408, %v2489
    %v2491 = vpop.f32.mrf.mxu0
    %v2492 = vpop.f32.mrf.mxu0
    %2493 = vdwg.mxu0
    %2494 = vmatprep.subr.bf16.mxu0 %v1204
    %2495 = vmatpush1.bf16.msra.mxu0 %v1203
    %2496 = vmatprep.subr.bf16.mxu0 %v1200
    %2497 = vmatpush1.bf16.msra.mxu0 %v1199
    %2498 = vmatprep.subr.bf16.mxu0 %v1196
    %2499 = vmatpush1.bf16.msra.mxu0 %v1195
    %2500 = vmatprep.subr.bf16.mxu0 %v1192
    %2501 = vmatpush1.bf16.msra.mxu0 %v1191
    %2502 = vmatprep.subr.bf16.mxu0 %v1188
    %2503 = vmatpush1.bf16.msra.mxu0 %v1187
    %2504 = vmatprep.subr.bf16.mxu0 %v1184
    %2505 = vmatpush1.bf16.msra.mxu0 %v1183
    %2506 = vmatprep.subr.bf16.mxu0 %v1180
    %2507 = vmatpush1.bf16.msra.mxu0 %v1179
    %2508 = vmatprep.subr.bf16.mxu0 %v1176
    %2509 = vmatpush1.bf16.msra.mxu0 %v1175
    %2510 = vmatprep.subr.bf16.mxu0 0
    %2511 = vmatpush2.bf16.msra.mxu0 0
    %2512 = vmatprep.subr.bf16.mxu0 0
    %2513 = vmatpush2.bf16.msra.mxu0 0
    %2514 = vmatprep.subr.bf16.mxu0 0
    %2515 = vmatpush2.bf16.msra.mxu0 0
    %2516 = vmatprep.subr.bf16.mxu0 0
    %2517 = vmatpush2.bf16.msra.mxu0 0
    %2518 = vmatprep.subr.bf16.mxu0 0
    %2519 = vmatpush2.bf16.msra.mxu0 0
    %2520 = vmatprep.subr.bf16.mxu0 0
    %2521 = vmatpush2.bf16.msra.mxu0 0
    %2522 = vmatprep.subr.bf16.mxu0 0
    %2523 = vmatpush2.bf16.msra.mxu0 0
    %2524 = vmatprep.subr.bf16.mxu0 0
    %2525 = vmatpush2.bf16.msra.mxu0 0
    %2526 = vmatprep.mubr.bf16.mxu0 0
    %2527 = vmatmul.mubr.bf16.gmra.mxu0 %v2369
    %v2528 = vpop.f32.mrf.mxu0
    %v2529 = vadd.f32 %v2447, %v2528
    %v2530 = vpop.f32.mrf.mxu0
    %v2531 = vadd.f32 %v2449, %v2530
    %v2532 = vpop.f32.mrf.mxu0
    %v2533 = vpop.f32.mrf.mxu0
    %2534 = vdwg.mxu0
    %v2535 = vadd.f32 %v2488, %v451
    %v2536 = vadd.f32 %v2490, %v455
    %v2537 = vadd.f32 %v2529, %v459
    %v2538 = vadd.f32 %v2531, %v463
    %v2539 = vxor.u32 %v2535, 2147483648
    %v2540 = vmul.f32 %v2539, 1.442695
    %v2541 = vpow.pop %v2540
    %v2542 = vadd.f32 %v2541, 1.0
    %v2543 = vrcp.pop %v2542
    %v2544 = vmul.f32 1.0, %v2543
    %v2545 = vxor.u32 %v2536, 2147483648
    %v2546 = vmul.f32 %v2545, 1.442695
    %v2547 = vpow.pop %v2546
    %v2548 = vadd.f32 %v2547, 1.0
    %v2549 = vrcp.pop %v2548
    %v2550 = vmul.f32 1.0, %v2549
    %v2551 = vtanh.pop %v2537
    %v2552 = vxor.u32 %v2538, 2147483648
    %v2553 = vmul.f32 %v2552, 1.442695
    %v2554 = vpow.pop %v2553
    %v2555 = vadd.f32 %v2554, 1.0
    %v2556 = vrcp.pop %v2555
    %v2557 = vmul.f32 1.0, %v2556
    %v2558 = vmul.f32 %v2550, %v2256
    %v2559 = vmul.f32 %v2544, %v2551
    %v2560 = vadd.f32 %v2558, %v2559
    %v2561 = vtanh.pop %v2560
    %v2562 = vmul.f32 %v2557, %v2561
    %2563 = vmatprep.subr.bf16.mxu0 %v625
    %2564 = vmatpush1.bf16.msra.mxu0 %v624
    %2565 = vmatprep.subr.bf16.mxu0 %v621
    %2566 = vmatpush1.bf16.msra.mxu0 %v620
    %2567 = vmatprep.subr.bf16.mxu0 %v617
    %2568 = vmatpush1.bf16.msra.mxu0 %v616
    %2569 = vmatprep.subr.bf16.mxu0 %v613
    %2570 = vmatpush1.bf16.msra.mxu0 %v612
    %2571 = vmatprep.subr.bf16.mxu0 %v609
    %2572 = vmatpush1.bf16.msra.mxu0 %v608
    %2573 = vmatprep.subr.bf16.mxu0 %v605
    %2574 = vmatpush1.bf16.msra.mxu0 %v604
    %2575 = vmatprep.subr.bf16.mxu0 %v601
    %2576 = vmatpush1.bf16.msra.mxu0 %v600
    %2577 = vmatprep.subr.bf16.mxu0 %v597
    %2578 = vmatpush1.bf16.msra.mxu0 %v596
    %2579 = vmatprep.subr.bf16.mxu0 0
    %2580 = vmatpush2.bf16.msra.mxu0 0
    %2581 = vmatprep.subr.bf16.mxu0 0
    %2582 = vmatpush2.bf16.msra.mxu0 0
    %2583 = vmatprep.subr.bf16.mxu0 0
    %2584 = vmatpush2.bf16.msra.mxu0 0
    %2585 = vmatprep.subr.bf16.mxu0 0
    %2586 = vmatpush2.bf16.msra.mxu0 0
    %2587 = vmatprep.subr.bf16.mxu0 0
    %2588 = vmatpush2.bf16.msra.mxu0 0
    %2589 = vmatprep.subr.bf16.mxu0 0
    %2590 = vmatpush2.bf16.msra.mxu0 0
    %2591 = vmatprep.subr.bf16.mxu0 0
    %2592 = vmatpush2.bf16.msra.mxu0 0
    %2593 = vmatprep.subr.bf16.mxu0 0
    %2594 = vmatpush2.bf16.msra.mxu0 0
    %2595 = vmatprep.mubr.bf16.mxu0 0
    %2596 = vmatmul.mubr.bf16.gmra.mxu0 %v2369
    %v2597 = vpop.f32.mrf.mxu0
    %v2598 = vadd.f32 0.0, %v2597
    %v2599 = vpop.f32.mrf.mxu0
    %v2600 = vadd.f32 0.0, %v2599
    %v2601 = vpop.f32.mrf.mxu0
    %v2602 = vpop.f32.mrf.mxu0
    %2603 = vdwg.mxu0
    %2604 = vmatprep.subr.bf16.mxu0 %v627
    %2605 = vmatpush1.bf16.msra.mxu0 %v626
    %2606 = vmatprep.subr.bf16.mxu0 %v623
    %2607 = vmatpush1.bf16.msra.mxu0 %v622
    %2608 = vmatprep.subr.bf16.mxu0 %v619
    %2609 = vmatpush1.bf16.msra.mxu0 %v618
    %2610 = vmatprep.subr.bf16.mxu0 %v615
    %2611 = vmatpush1.bf16.msra.mxu0 %v614
    %2612 = vmatprep.subr.bf16.mxu0 %v611
    %2613 = vmatpush1.bf16.msra.mxu0 %v610
    %2614 = vmatprep.subr.bf16.mxu0 %v607
    %2615 = vmatpush1.bf16.msra.mxu0 %v606
    %2616 = vmatprep.subr.bf16.mxu0 %v603
    %2617 = vmatpush1.bf16.msra.mxu0 %v602
    %2618 = vmatprep.subr.bf16.mxu0 %v599
    %2619 = vmatpush1.bf16.msra.mxu0 %v598
    %2620 = vmatprep.subr.bf16.mxu0 0
    %2621 = vmatpush2.bf16.msra.mxu0 0
    %2622 = vmatprep.subr.bf16.mxu0 0
    %2623 = vmatpush2.bf16.msra.mxu0 0
    %2624 = vmatprep.subr.bf16.mxu0 0
    %2625 = vmatpush2.bf16.msra.mxu0 0
    %2626 = vmatprep.subr.bf16.mxu0 0
    %2627 = vmatpush2.bf16.msra.mxu0 0
    %2628 = vmatprep.subr.bf16.mxu0 0
    %2629 = vmatpush2.bf16.msra.mxu0 0
    %2630 = vmatprep.subr.bf16.mxu0 0
    %2631 = vmatpush2.bf16.msra.mxu0 0
    %2632 = vmatprep.subr.bf16.mxu0 0
    %2633 = vmatpush2.bf16.msra.mxu0 0
    %2634 = vmatprep.subr.bf16.mxu0 0
    %2635 = vmatpush2.bf16.msra.mxu0 0
    %2636 = vmatprep.mubr.bf16.mxu0 0
    %2637 = vmatmul.mubr.bf16.gmra.mxu0 %v2369
    %v2638 = vpop.f32.mrf.mxu0
    %v2639 = vadd.f32 0.0, %v2638
    %v2640 = vpop.f32.mrf.mxu0
    %v2641 = vadd.f32 0.0, %v2640
    %v2642 = vpop.f32.mrf.mxu0
    %v2643 = vpop.f32.mrf.mxu0
    %2644 = vdwg.mxu0
    %v2645 = vadd.f32 %v359, %v2598
    %v2646 = vadd.f32 %v361, %v2600
    %v2647 = vadd.f32 %v432, %v2639
    %v2648 = vadd.f32 %v434, %v2641
    %v2649 = vxor.u32 %v2645, 2147483648
    %v2650 = vmul.f32 %v2649, 1.442695
    %v2651 = vpow.pop %v2650
    %v2652 = vadd.f32 %v2651, 1.0
    %v2653 = vrcp.pop %v2652
    %v2654 = vmul.f32 1.0, %v2653
    %v2655 = vxor.u32 %v2646, 2147483648
    %v2656 = vmul.f32 %v2655, 1.442695
    %v2657 = vpow.pop %v2656
    %v2658 = vadd.f32 %v2657, 1.0
    %v2659 = vrcp.pop %v2658
    %v2660 = vmul.f32 1.0, %v2659
    %v2661 = vtanh.pop %v2647
    %v2662 = vxor.u32 %v2648, 2147483648
    %v2663 = vmul.f32 %v2662, 1.442695
    %v2664 = vpow.pop %v2663
    %v2665 = vadd.f32 %v2664, 1.0
    %v2666 = vrcp.pop %v2665
    %v2667 = vmul.f32 1.0, %v2666
    %v2668 = vmul.f32 %v2660, %v2366
    %v2669 = vmul.f32 %v2654, %v2661
    %v2670 = vadd.f32 %v2668, %v2669
    %v2671 = vtanh.pop %v2670
    %v2672 = vmul.f32 %v2667, %v2671
    %v2673 = vpack.c.bf16 %v2672, %v2672
    %v2674 = vpack.c.bf16 %v2562, %v2562
    %2675 = vmatprep.subr.bf16.mxu0 %v960
    %2676 = vmatpush1.bf16.msra.mxu0 %v959
    %2677 = vmatprep.subr.bf16.mxu0 %v956
    %2678 = vmatpush1.bf16.msra.mxu0 %v955
    %2679 = vmatprep.subr.bf16.mxu0 %v952
    %2680 = vmatpush1.bf16.msra.mxu0 %v951
    %2681 = vmatprep.subr.bf16.mxu0 %v948
    %2682 = vmatpush1.bf16.msra.mxu0 %v947
    %2683 = vmatprep.subr.bf16.mxu0 %v944
    %2684 = vmatpush1.bf16.msra.mxu0 %v943
    %2685 = vmatprep.subr.bf16.mxu0 %v940
    %2686 = vmatpush1.bf16.msra.mxu0 %v939
    %2687 = vmatprep.subr.bf16.mxu0 %v936
    %2688 = vmatpush1.bf16.msra.mxu0 %v935
    %2689 = vmatprep.subr.bf16.mxu0 %v932
    %2690 = vmatpush1.bf16.msra.mxu0 %v931
    %2691 = vmatprep.subr.bf16.mxu0 0
    %2692 = vmatpush2.bf16.msra.mxu0 0
    %2693 = vmatprep.subr.bf16.mxu0 0
    %2694 = vmatpush2.bf16.msra.mxu0 0
    %2695 = vmatprep.subr.bf16.mxu0 0
    %2696 = vmatpush2.bf16.msra.mxu0 0
    %2697 = vmatprep.subr.bf16.mxu0 0
    %2698 = vmatpush2.bf16.msra.mxu0 0
    %2699 = vmatprep.subr.bf16.mxu0 0
    %2700 = vmatpush2.bf16.msra.mxu0 0
    %2701 = vmatprep.subr.bf16.mxu0 0
    %2702 = vmatpush2.bf16.msra.mxu0 0
    %2703 = vmatprep.subr.bf16.mxu0 0
    %2704 = vmatpush2.bf16.msra.mxu0 0
    %2705 = vmatprep.subr.bf16.mxu0 0
    %2706 = vmatpush2.bf16.msra.mxu0 0
    %2707 = vmatprep.mubr.bf16.mxu0 0
    %2708 = vmatmul.mubr.bf16.gmra.mxu0 %v2674
    %v2709 = vpop.f32.mrf.mxu0
    %v2710 = vadd.f32 0.0, %v2709
    %v2711 = vpop.f32.mrf.mxu0
    %v2712 = vadd.f32 0.0, %v2711
    %v2713 = vpop.f32.mrf.mxu0
    %v2714 = vpop.f32.mrf.mxu0
    %2715 = vdwg.mxu0
    %2716 = vmatprep.subr.bf16.mxu0 %v962
    %2717 = vmatpush1.bf16.msra.mxu0 %v961
    %2718 = vmatprep.subr.bf16.mxu0 %v958
    %2719 = vmatpush1.bf16.msra.mxu0 %v957
    %2720 = vmatprep.subr.bf16.mxu0 %v954
    %2721 = vmatpush1.bf16.msra.mxu0 %v953
    %2722 = vmatprep.subr.bf16.mxu0 %v950
    %2723 = vmatpush1.bf16.msra.mxu0 %v949
    %2724 = vmatprep.subr.bf16.mxu0 %v946
    %2725 = vmatpush1.bf16.msra.mxu0 %v945
    %2726 = vmatprep.subr.bf16.mxu0 %v942
    %2727 = vmatpush1.bf16.msra.mxu0 %v941
    %2728 = vmatprep.subr.bf16.mxu0 %v938
    %2729 = vmatpush1.bf16.msra.mxu0 %v937
    %2730 = vmatprep.subr.bf16.mxu0 %v934
    %2731 = vmatpush1.bf16.msra.mxu0 %v933
    %2732 = vmatprep.subr.bf16.mxu0 0
    %2733 = vmatpush2.bf16.msra.mxu0 0
    %2734 = vmatprep.subr.bf16.mxu0 0
    %2735 = vmatpush2.bf16.msra.mxu0 0
    %2736 = vmatprep.subr.bf16.mxu0 0
    %2737 = vmatpush2.bf16.msra.mxu0 0
    %2738 = vmatprep.subr.bf16.mxu0 0
    %2739 = vmatpush2.bf16.msra.mxu0 0
    %2740 = vmatprep.subr.bf16.mxu0 0
    %2741 = vmatpush2.bf16.msra.mxu0 0
    %2742 = vmatprep.subr.bf16.mxu0 0
    %2743 = vmatpush2.bf16.msra.mxu0 0
    %2744 = vmatprep.subr.bf16.mxu0 0
    %2745 = vmatpush2.bf16.msra.mxu0 0
    %2746 = vmatprep.subr.bf16.mxu0 0
    %2747 = vmatpush2.bf16.msra.mxu0 0
    %2748 = vmatprep.mubr.bf16.mxu0 0
    %2749 = vmatmul.mubr.bf16.gmra.mxu0 %v2674
    %v2750 = vpop.f32.mrf.mxu0
    %v2751 = vadd.f32 0.0, %v2750
    %v2752 = vpop.f32.mrf.mxu0
    %v2753 = vadd.f32 0.0, %v2752
    %v2754 = vpop.f32.mrf.mxu0
    %v2755 = vpop.f32.mrf.mxu0
    %2756 = vdwg.mxu0
    %2757 = vmatprep.subr.bf16.mxu0 %v1202
    %2758 = vmatpush1.bf16.msra.mxu0 %v1201
    %2759 = vmatprep.subr.bf16.mxu0 %v1198
    %2760 = vmatpush1.bf16.msra.mxu0 %v1197
    %2761 = vmatprep.subr.bf16.mxu0 %v1194
    %2762 = vmatpush1.bf16.msra.mxu0 %v1193
    %2763 = vmatprep.subr.bf16.mxu0 %v1190
    %2764 = vmatpush1.bf16.msra.mxu0 %v1189
    %2765 = vmatprep.subr.bf16.mxu0 %v1186
    %2766 = vmatpush1.bf16.msra.mxu0 %v1185
    %2767 = vmatprep.subr.bf16.mxu0 %v1182
    %2768 = vmatpush1.bf16.msra.mxu0 %v1181
    %2769 = vmatprep.subr.bf16.mxu0 %v1178
    %2770 = vmatpush1.bf16.msra.mxu0 %v1177
    %2771 = vmatprep.subr.bf16.mxu0 %v1174
    %2772 = vmatpush1.bf16.msra.mxu0 %v1173
    %2773 = vmatprep.subr.bf16.mxu0 0
    %2774 = vmatpush2.bf16.msra.mxu0 0
    %2775 = vmatprep.subr.bf16.mxu0 0
    %2776 = vmatpush2.bf16.msra.mxu0 0
    %2777 = vmatprep.subr.bf16.mxu0 0
    %2778 = vmatpush2.bf16.msra.mxu0 0
    %2779 = vmatprep.subr.bf16.mxu0 0
    %2780 = vmatpush2.bf16.msra.mxu0 0
    %2781 = vmatprep.subr.bf16.mxu0 0
    %2782 = vmatpush2.bf16.msra.mxu0 0
    %2783 = vmatprep.subr.bf16.mxu0 0
    %2784 = vmatpush2.bf16.msra.mxu0 0
    %2785 = vmatprep.subr.bf16.mxu0 0
    %2786 = vmatpush2.bf16.msra.mxu0 0
    %2787 = vmatprep.subr.bf16.mxu0 0
    %2788 = vmatpush2.bf16.msra.mxu0 0
    %2789 = vmatprep.mubr.bf16.mxu0 0
    %2790 = vmatmul.mubr.bf16.gmra.mxu0 %v2673
    %v2791 = vpop.f32.mrf.mxu0
    %v2792 = vadd.f32 %v2710, %v2791
    %v2793 = vpop.f32.mrf.mxu0
    %v2794 = vadd.f32 %v2712, %v2793
    %v2795 = vpop.f32.mrf.mxu0
    %v2796 = vpop.f32.mrf.mxu0
    %2797 = vdwg.mxu0
    %2798 = vmatprep.subr.bf16.mxu0 %v1204
    %2799 = vmatpush1.bf16.msra.mxu0 %v1203
    %2800 = vmatprep.subr.bf16.mxu0 %v1200
    %2801 = vmatpush1.bf16.msra.mxu0 %v1199
    %2802 = vmatprep.subr.bf16.mxu0 %v1196
    %2803 = vmatpush1.bf16.msra.mxu0 %v1195
    %2804 = vmatprep.subr.bf16.mxu0 %v1192
    %2805 = vmatpush1.bf16.msra.mxu0 %v1191
    %2806 = vmatprep.subr.bf16.mxu0 %v1188
    %2807 = vmatpush1.bf16.msra.mxu0 %v1187
    %2808 = vmatprep.subr.bf16.mxu0 %v1184
    %2809 = vmatpush1.bf16.msra.mxu0 %v1183
    %2810 = vmatprep.subr.bf16.mxu0 %v1180
    %2811 = vmatpush1.bf16.msra.mxu0 %v1179
    %2812 = vmatprep.subr.bf16.mxu0 %v1176
    %2813 = vmatpush1.bf16.msra.mxu0 %v1175
    %2814 = vmatprep.subr.bf16.mxu0 0
    %2815 = vmatpush2.bf16.msra.mxu0 0
    %2816 = vmatprep.subr.bf16.mxu0 0
    %2817 = vmatpush2.bf16.msra.mxu0 0
    %2818 = vmatprep.subr.bf16.mxu0 0
    %2819 = vmatpush2.bf16.msra.mxu0 0
    %2820 = vmatprep.subr.bf16.mxu0 0
    %2821 = vmatpush2.bf16.msra.mxu0 0
    %2822 = vmatprep.subr.bf16.mxu0 0
    %2823 = vmatpush2.bf16.msra.mxu0 0
    %2824 = vmatprep.subr.bf16.mxu0 0
    %2825 = vmatpush2.bf16.msra.mxu0 0
    %2826 = vmatprep.subr.bf16.mxu0 0
    %2827 = vmatpush2.bf16.msra.mxu0 0
    %2828 = vmatprep.subr.bf16.mxu0 0
    %2829 = vmatpush2.bf16.msra.mxu0 0
    %2830 = vmatprep.mubr.bf16.mxu0 0
    %2831 = vmatmul.mubr.bf16.gmra.mxu0 %v2673
    %v2832 = vpop.f32.mrf.mxu0
    %v2833 = vadd.f32 %v2751, %v2832
    %v2834 = vpop.f32.mrf.mxu0
    %v2835 = vadd.f32 %v2753, %v2834
    %v2836 = vpop.f32.mrf.mxu0
    %v2837 = vpop.f32.mrf.mxu0
    %2838 = vdwg.mxu0
    %v2839 = vadd.f32 %v2792, %v451
    %v2840 = vadd.f32 %v2794, %v455
    %v2841 = vadd.f32 %v2833, %v459
    %v2842 = vadd.f32 %v2835, %v463
    %v2843 = vxor.u32 %v2839, 2147483648
    %v2844 = vmul.f32 %v2843, 1.442695
    %v2845 = vpow.pop %v2844
    %v2846 = vadd.f32 %v2845, 1.0
    %v2847 = vrcp.pop %v2846
    %v2848 = vmul.f32 1.0, %v2847
    %v2849 = vxor.u32 %v2840, 2147483648
    %v2850 = vmul.f32 %v2849, 1.442695
    %v2851 = vpow.pop %v2850
    %v2852 = vadd.f32 %v2851, 1.0
    %v2853 = vrcp.pop %v2852
    %v2854 = vmul.f32 1.0, %v2853
    %v2855 = vtanh.pop %v2841
    %v2856 = vxor.u32 %v2842, 2147483648
    %v2857 = vmul.f32 %v2856, 1.442695
    %v2858 = vpow.pop %v2857
    %v2859 = vadd.f32 %v2858, 1.0
    %v2860 = vrcp.pop %v2859
    %v2861 = vmul.f32 1.0, %v2860
    %v2862 = vmul.f32 %v2854, %v2560
    %v2863 = vmul.f32 %v2848, %v2855
    %v2864 = vadd.f32 %v2862, %v2863
    %v2865 = vtanh.pop %v2864
    %v2866 = vmul.f32 %v2861, %v2865
    %2867 = vmatprep.subr.bf16.mxu0 %v625
    %2868 = vmatpush1.bf16.msra.mxu0 %v624
    %2869 = vmatprep.subr.bf16.mxu0 %v621
    %2870 = vmatpush1.bf16.msra.mxu0 %v620
    %2871 = vmatprep.subr.bf16.mxu0 %v617
    %2872 = vmatpush1.bf16.msra.mxu0 %v616
    %2873 = vmatprep.subr.bf16.mxu0 %v613
    %2874 = vmatpush1.bf16.msra.mxu0 %v612
    %2875 = vmatprep.subr.bf16.mxu0 %v609
    %2876 = vmatpush1.bf16.msra.mxu0 %v608
    %2877 = vmatprep.subr.bf16.mxu0 %v605
    %2878 = vmatpush1.bf16.msra.mxu0 %v604
    %2879 = vmatprep.subr.bf16.mxu0 %v601
    %2880 = vmatpush1.bf16.msra.mxu0 %v600
    %2881 = vmatprep.subr.bf16.mxu0 %v597
    %2882 = vmatpush1.bf16.msra.mxu0 %v596
    %2883 = vmatprep.subr.bf16.mxu0 0
    %2884 = vmatpush2.bf16.msra.mxu0 0
    %2885 = vmatprep.subr.bf16.mxu0 0
    %2886 = vmatpush2.bf16.msra.mxu0 0
    %2887 = vmatprep.subr.bf16.mxu0 0
    %2888 = vmatpush2.bf16.msra.mxu0 0
    %2889 = vmatprep.subr.bf16.mxu0 0
    %2890 = vmatpush2.bf16.msra.mxu0 0
    %2891 = vmatprep.subr.bf16.mxu0 0
    %2892 = vmatpush2.bf16.msra.mxu0 0
    %2893 = vmatprep.subr.bf16.mxu0 0
    %2894 = vmatpush2.bf16.msra.mxu0 0
    %2895 = vmatprep.subr.bf16.mxu0 0
    %2896 = vmatpush2.bf16.msra.mxu0 0
    %2897 = vmatprep.subr.bf16.mxu0 0
    %2898 = vmatpush2.bf16.msra.mxu0 0
    %2899 = vmatprep.mubr.bf16.mxu0 0
    %2900 = vmatmul.mubr.bf16.gmra.mxu0 %v2673
    %v2901 = vpop.f32.mrf.mxu0
    %v2902 = vadd.f32 0.0, %v2901
    %v2903 = vpop.f32.mrf.mxu0
    %v2904 = vadd.f32 0.0, %v2903
    %v2905 = vpop.f32.mrf.mxu0
    %v2906 = vpop.f32.mrf.mxu0
    %2907 = vdwg.mxu0
    %2908 = vmatprep.subr.bf16.mxu0 %v627
    %2909 = vmatpush1.bf16.msra.mxu0 %v626
    %2910 = vmatprep.subr.bf16.mxu0 %v623
    %2911 = vmatpush1.bf16.msra.mxu0 %v622
    %2912 = vmatprep.subr.bf16.mxu0 %v619
    %2913 = vmatpush1.bf16.msra.mxu0 %v618
    %2914 = vmatprep.subr.bf16.mxu0 %v615
    %2915 = vmatpush1.bf16.msra.mxu0 %v614
    %2916 = vmatprep.subr.bf16.mxu0 %v611
    %2917 = vmatpush1.bf16.msra.mxu0 %v610
    %2918 = vmatprep.subr.bf16.mxu0 %v607
    %2919 = vmatpush1.bf16.msra.mxu0 %v606
    %2920 = vmatprep.subr.bf16.mxu0 %v603
    %2921 = vmatpush1.bf16.msra.mxu0 %v602
    %2922 = vmatprep.subr.bf16.mxu0 %v599
    %2923 = vmatpush1.bf16.msra.mxu0 %v598
    %2924 = vmatprep.subr.bf16.mxu0 0
    %2925 = vmatpush2.bf16.msra.mxu0 0
    %2926 = vmatprep.subr.bf16.mxu0 0
    %2927 = vmatpush2.bf16.msra.mxu0 0
    %2928 = vmatprep.subr.bf16.mxu0 0
    %2929 = vmatpush2.bf16.msra.mxu0 0
    %2930 = vmatprep.subr.bf16.mxu0 0
    %2931 = vmatpush2.bf16.msra.mxu0 0
    %2932 = vmatprep.subr.bf16.mxu0 0
    %2933 = vmatpush2.bf16.msra.mxu0 0
    %2934 = vmatprep.subr.bf16.mxu0 0
    %2935 = vmatpush2.bf16.msra.mxu0 0
    %2936 = vmatprep.subr.bf16.mxu0 0
    %2937 = vmatpush2.bf16.msra.mxu0 0
    %2938 = vmatprep.subr.bf16.mxu0 0
    %2939 = vmatpush2.bf16.msra.mxu0 0
    %2940 = vmatprep.mubr.bf16.mxu0 0
    %2941 = vmatmul.mubr.bf16.gmra.mxu0 %v2673
    %v2942 = vpop.f32.mrf.mxu0
    %v2943 = vadd.f32 0.0, %v2942
    %v2944 = vpop.f32.mrf.mxu0
    %v2945 = vadd.f32 0.0, %v2944
    %v2946 = vpop.f32.mrf.mxu0
    %v2947 = vpop.f32.mrf.mxu0
    %2948 = vdwg.mxu0
    %v2949 = vadd.f32 %v365, %v2902
    %v2950 = vadd.f32 %v367, %v2904
    %v2951 = vadd.f32 %v438, %v2943
    %v2952 = vadd.f32 %v440, %v2945
    %v2953 = vxor.u32 %v2949, 2147483648
    %v2954 = vmul.f32 %v2953, 1.442695
    %v2955 = vpow.pop %v2954
    %v2956 = vadd.f32 %v2955, 1.0
    %v2957 = vrcp.pop %v2956
    %v2958 = vmul.f32 1.0, %v2957
    %v2959 = vxor.u32 %v2950, 2147483648
    %v2960 = vmul.f32 %v2959, 1.442695
    %v2961 = vpow.pop %v2960
    %v2962 = vadd.f32 %v2961, 1.0
    %v2963 = vrcp.pop %v2962
    %v2964 = vmul.f32 1.0, %v2963
    %v2965 = vtanh.pop %v2951
    %v2966 = vxor.u32 %v2952, 2147483648
    %v2967 = vmul.f32 %v2966, 1.442695
    %v2968 = vpow.pop %v2967
    %v2969 = vadd.f32 %v2968, 1.0
    %v2970 = vrcp.pop %v2969
    %v2971 = vmul.f32 1.0, %v2970
    %v2972 = vmul.f32 %v2964, %v2670
    %v2973 = vmul.f32 %v2958, %v2965
    %v2974 = vadd.f32 %v2972, %v2973
    %v2975 = vtanh.pop %v2974
    %v2976 = vmul.f32 %v2971, %v2975
    %v2977 = vpack.c.bf16 %v2976, %v2976
    %v2978 = vpack.c.bf16 %v2866, %v2866
    %2979 = vmatprep.subr.bf16.mxu0 %v960
    %2980 = vmatpush1.bf16.msra.mxu0 %v959
    %2981 = vmatprep.subr.bf16.mxu0 %v956
    %2982 = vmatpush1.bf16.msra.mxu0 %v955
    %2983 = vmatprep.subr.bf16.mxu0 %v952
    %2984 = vmatpush1.bf16.msra.mxu0 %v951
    %2985 = vmatprep.subr.bf16.mxu0 %v948
    %2986 = vmatpush1.bf16.msra.mxu0 %v947
    %2987 = vmatprep.subr.bf16.mxu0 %v944
    %2988 = vmatpush1.bf16.msra.mxu0 %v943
    %2989 = vmatprep.subr.bf16.mxu0 %v940
    %2990 = vmatpush1.bf16.msra.mxu0 %v939
    %2991 = vmatprep.subr.bf16.mxu0 %v936
    %2992 = vmatpush1.bf16.msra.mxu0 %v935
    %2993 = vmatprep.subr.bf16.mxu0 %v932
    %2994 = vmatpush1.bf16.msra.mxu0 %v931
    %2995 = vmatprep.subr.bf16.mxu0 0
    %2996 = vmatpush2.bf16.msra.mxu0 0
    %2997 = vmatprep.subr.bf16.mxu0 0
    %2998 = vmatpush2.bf16.msra.mxu0 0
    %2999 = vmatprep.subr.bf16.mxu0 0
    %3000 = vmatpush2.bf16.msra.mxu0 0
    %3001 = vmatprep.subr.bf16.mxu0 0
    %3002 = vmatpush2.bf16.msra.mxu0 0
    %3003 = vmatprep.subr.bf16.mxu0 0
    %3004 = vmatpush2.bf16.msra.mxu0 0
    %3005 = vmatprep.subr.bf16.mxu0 0
    %3006 = vmatpush2.bf16.msra.mxu0 0
    %3007 = vmatprep.subr.bf16.mxu0 0
    %3008 = vmatpush2.bf16.msra.mxu0 0
    %3009 = vmatprep.subr.bf16.mxu0 0
    %3010 = vmatpush2.bf16.msra.mxu0 0
    %3011 = vmatprep.mubr.bf16.mxu0 0
    %3012 = vmatmul.mubr.bf16.gmra.mxu0 %v2978
    %v3013 = vpop.f32.mrf.mxu0
    %v3014 = vadd.f32 0.0, %v3013
    %v3015 = vpop.f32.mrf.mxu0
    %v3016 = vadd.f32 0.0, %v3015
    %v3017 = vpop.f32.mrf.mxu0
    %v3018 = vpop.f32.mrf.mxu0
    %3019 = vdwg.mxu0
    %3020 = vmatprep.subr.bf16.mxu0 %v962
    %3021 = vmatpush1.bf16.msra.mxu0 %v961
    %3022 = vmatprep.subr.bf16.mxu0 %v958
    %3023 = vmatpush1.bf16.msra.mxu0 %v957
    %3024 = vmatprep.subr.bf16.mxu0 %v954
    %3025 = vmatpush1.bf16.msra.mxu0 %v953
    %3026 = vmatprep.subr.bf16.mxu0 %v950
    %3027 = vmatpush1.bf16.msra.mxu0 %v949
    %3028 = vmatprep.subr.bf16.mxu0 %v946
    %3029 = vmatpush1.bf16.msra.mxu0 %v945
    %3030 = vmatprep.subr.bf16.mxu0 %v942
    %3031 = vmatpush1.bf16.msra.mxu0 %v941
    %3032 = vmatprep.subr.bf16.mxu0 %v938
    %3033 = vmatpush1.bf16.msra.mxu0 %v937
    %3034 = vmatprep.subr.bf16.mxu0 %v934
    %3035 = vmatpush1.bf16.msra.mxu0 %v933
    %3036 = vmatprep.subr.bf16.mxu0 0
    %3037 = vmatpush2.bf16.msra.mxu0 0
    %3038 = vmatprep.subr.bf16.mxu0 0
    %3039 = vmatpush2.bf16.msra.mxu0 0
    %3040 = vmatprep.subr.bf16.mxu0 0
    %3041 = vmatpush2.bf16.msra.mxu0 0
    %3042 = vmatprep.subr.bf16.mxu0 0
    %3043 = vmatpush2.bf16.msra.mxu0 0
    %3044 = vmatprep.subr.bf16.mxu0 0
    %3045 = vmatpush2.bf16.msra.mxu0 0
    %3046 = vmatprep.subr.bf16.mxu0 0
    %3047 = vmatpush2.bf16.msra.mxu0 0
    %3048 = vmatprep.subr.bf16.mxu0 0
    %3049 = vmatpush2.bf16.msra.mxu0 0
    %3050 = vmatprep.subr.bf16.mxu0 0
    %3051 = vmatpush2.bf16.msra.mxu0 0
    %3052 = vmatprep.mubr.bf16.mxu0 0
    %3053 = vmatmul.mubr.bf16.gmra.mxu0 %v2978
    %v3054 = vpop.f32.mrf.mxu0
    %v3055 = vadd.f32 0.0, %v3054
    %v3056 = vpop.f32.mrf.mxu0
    %v3057 = vadd.f32 0.0, %v3056
    %v3058 = vpop.f32.mrf.mxu0
    %v3059 = vpop.f32.mrf.mxu0
    %3060 = vdwg.mxu0
    %3061 = vmatprep.subr.bf16.mxu0 %v1202
    %3062 = vmatpush1.bf16.msra.mxu0 %v1201
    %3063 = vmatprep.subr.bf16.mxu0 %v1198
    %3064 = vmatpush1.bf16.msra.mxu0 %v1197
    %3065 = vmatprep.subr.bf16.mxu0 %v1194
    %3066 = vmatpush1.bf16.msra.mxu0 %v1193
    %3067 = vmatprep.subr.bf16.mxu0 %v1190
    %3068 = vmatpush1.bf16.msra.mxu0 %v1189
    %3069 = vmatprep.subr.bf16.mxu0 %v1186
    %3070 = vmatpush1.bf16.msra.mxu0 %v1185
    %3071 = vmatprep.subr.bf16.mxu0 %v1182
    %3072 = vmatpush1.bf16.msra.mxu0 %v1181
    %3073 = vmatprep.subr.bf16.mxu0 %v1178
    %3074 = vmatpush1.bf16.msra.mxu0 %v1177
    %3075 = vmatprep.subr.bf16.mxu0 %v1174
    %3076 = vmatpush1.bf16.msra.mxu0 %v1173
    %3077 = vmatprep.subr.bf16.mxu0 0
    %3078 = vmatpush2.bf16.msra.mxu0 0
    %3079 = vmatprep.subr.bf16.mxu0 0
    %3080 = vmatpush2.bf16.msra.mxu0 0
    %3081 = vmatprep.subr.bf16.mxu0 0
    %3082 = vmatpush2.bf16.msra.mxu0 0
    %3083 = vmatprep.subr.bf16.mxu0 0
    %3084 = vmatpush2.bf16.msra.mxu0 0
    %3085 = vmatprep.subr.bf16.mxu0 0
    %3086 = vmatpush2.bf16.msra.mxu0 0
    %3087 = vmatprep.subr.bf16.mxu0 0
    %3088 = vmatpush2.bf16.msra.mxu0 0
    %3089 = vmatprep.subr.bf16.mxu0 0
    %3090 = vmatpush2.bf16.msra.mxu0 0
    %3091 = vmatprep.subr.bf16.mxu0 0
    %3092 = vmatpush2.bf16.msra.mxu0 0
    %3093 = vmatprep.mubr.bf16.mxu0 0
    %3094 = vmatmul.mubr.bf16.gmra.mxu0 %v2977
    %v3095 = vpop.f32.mrf.mxu0
    %v3096 = vadd.f32 %v3014, %v3095
    %v3097 = vpop.f32.mrf.mxu0
    %v3098 = vadd.f32 %v3016, %v3097
    %v3099 = vpop.f32.mrf.mxu0
    %v3100 = vpop.f32.mrf.mxu0
    %3101 = vdwg.mxu0
    %3102 = vmatprep.subr.bf16.mxu0 %v1204
    %3103 = vmatpush1.bf16.msra.mxu0 %v1203
    %3104 = vmatprep.subr.bf16.mxu0 %v1200
    %3105 = vmatpush1.bf16.msra.mxu0 %v1199
    %3106 = vmatprep.subr.bf16.mxu0 %v1196
    %3107 = vmatpush1.bf16.msra.mxu0 %v1195
    %3108 = vmatprep.subr.bf16.mxu0 %v1192
    %3109 = vmatpush1.bf16.msra.mxu0 %v1191
    %3110 = vmatprep.subr.bf16.mxu0 %v1188
    %3111 = vmatpush1.bf16.msra.mxu0 %v1187
    %3112 = vmatprep.subr.bf16.mxu0 %v1184
    %3113 = vmatpush1.bf16.msra.mxu0 %v1183
    %3114 = vmatprep.subr.bf16.mxu0 %v1180
    %3115 = vmatpush1.bf16.msra.mxu0 %v1179
    %3116 = vmatprep.subr.bf16.mxu0 %v1176
    %3117 = vmatpush1.bf16.msra.mxu0 %v1175
    %3118 = vmatprep.subr.bf16.mxu0 0
    %3119 = vmatpush2.bf16.msra.mxu0 0
    %3120 = vmatprep.subr.bf16.mxu0 0
    %3121 = vmatpush2.bf16.msra.mxu0 0
    %3122 = vmatprep.subr.bf16.mxu0 0
    %3123 = vmatpush2.bf16.msra.mxu0 0
    %3124 = vmatprep.subr.bf16.mxu0 0
    %3125 = vmatpush2.bf16.msra.mxu0 0
    %3126 = vmatprep.subr.bf16.mxu0 0
    %3127 = vmatpush2.bf16.msra.mxu0 0
    %3128 = vmatprep.subr.bf16.mxu0 0
    %3129 = vmatpush2.bf16.msra.mxu0 0
    %3130 = vmatprep.subr.bf16.mxu0 0
    %3131 = vmatpush2.bf16.msra.mxu0 0
    %3132 = vmatprep.subr.bf16.mxu0 0
    %3133 = vmatpush2.bf16.msra.mxu0 0
    %3134 = vmatprep.mubr.bf16.mxu0 0
    %3135 = vmatmul.mubr.bf16.gmra.mxu0 %v2977
    %v3136 = vpop.f32.mrf.mxu0
    %v3137 = vadd.f32 %v3055, %v3136
    %v3138 = vpop.f32.mrf.mxu0
    %v3139 = vadd.f32 %v3057, %v3138
    %v3140 = vpop.f32.mrf.mxu0
    %v3141 = vpop.f32.mrf.mxu0
    %3142 = vdwg.mxu0
    %v3143 = vadd.f32 %v3096, %v451
    %v3144 = vadd.f32 %v3098, %v455
    %v3145 = vadd.f32 %v3137, %v459
    %v3146 = vadd.f32 %v3139, %v463
    %v3147 = vxor.u32 %v3143, 2147483648
    %v3148 = vmul.f32 %v3147, 1.442695
    %v3149 = vpow.pop %v3148
    %v3150 = vadd.f32 %v3149, 1.0
    %v3151 = vrcp.pop %v3150
    %v3152 = vmul.f32 1.0, %v3151
    %v3153 = vxor.u32 %v3144, 2147483648
    %v3154 = vmul.f32 %v3153, 1.442695
    %v3155 = vpow.pop %v3154
    %v3156 = vadd.f32 %v3155, 1.0
    %v3157 = vrcp.pop %v3156
    %v3158 = vmul.f32 1.0, %v3157
    %v3159 = vtanh.pop %v3145
    %v3160 = vxor.u32 %v3146, 2147483648
    %v3161 = vmul.f32 %v3160, 1.442695
    %v3162 = vpow.pop %v3161
    %v3163 = vadd.f32 %v3162, 1.0
    %v3164 = vrcp.pop %v3163
    %v3165 = vmul.f32 1.0, %v3164
    %v3166 = vmul.f32 %v3158, %v2864
    %v3167 = vmul.f32 %v3152, %v3159
    %v3168 = vadd.f32 %v3166, %v3167
    %v3169 = vtanh.pop %v3168
    %v3170 = vmul.f32 %v3165, %v3169
    %3171 = vmatprep.subr.bf16.mxu0 %v625
    %3172 = vmatpush1.bf16.msra.mxu0 %v624
    %3173 = vmatprep.subr.bf16.mxu0 %v621
    %3174 = vmatpush1.bf16.msra.mxu0 %v620
    %3175 = vmatprep.subr.bf16.mxu0 %v617
    %3176 = vmatpush1.bf16.msra.mxu0 %v616
    %3177 = vmatprep.subr.bf16.mxu0 %v613
    %3178 = vmatpush1.bf16.msra.mxu0 %v612
    %3179 = vmatprep.subr.bf16.mxu0 %v609
    %3180 = vmatpush1.bf16.msra.mxu0 %v608
    %3181 = vmatprep.subr.bf16.mxu0 %v605
    %3182 = vmatpush1.bf16.msra.mxu0 %v604
    %3183 = vmatprep.subr.bf16.mxu0 %v601
    %3184 = vmatpush1.bf16.msra.mxu0 %v600
    %3185 = vmatprep.subr.bf16.mxu0 %v597
    %3186 = vmatpush1.bf16.msra.mxu0 %v596
    %3187 = vmatprep.subr.bf16.mxu0 0
    %3188 = vmatpush2.bf16.msra.mxu0 0
    %3189 = vmatprep.subr.bf16.mxu0 0
    %3190 = vmatpush2.bf16.msra.mxu0 0
    %3191 = vmatprep.subr.bf16.mxu0 0
    %3192 = vmatpush2.bf16.msra.mxu0 0
    %3193 = vmatprep.subr.bf16.mxu0 0
    %3194 = vmatpush2.bf16.msra.mxu0 0
    %3195 = vmatprep.subr.bf16.mxu0 0
    %3196 = vmatpush2.bf16.msra.mxu0 0
    %3197 = vmatprep.subr.bf16.mxu0 0
    %3198 = vmatpush2.bf16.msra.mxu0 0
    %3199 = vmatprep.subr.bf16.mxu0 0
    %3200 = vmatpush2.bf16.msra.mxu0 0
    %3201 = vmatprep.subr.bf16.mxu0 0
    %3202 = vmatpush2.bf16.msra.mxu0 0
    %3203 = vmatprep.mubr.bf16.mxu0 0
    %3204 = vmatmul.mubr.bf16.gmra.mxu0 %v2977
    %v3205 = vpop.f32.mrf.mxu0
    %v3206 = vadd.f32 0.0, %v3205
    %v3207 = vpop.f32.mrf.mxu0
    %v3208 = vadd.f32 0.0, %v3207
    %v3209 = vpop.f32.mrf.mxu0
    %v3210 = vpop.f32.mrf.mxu0
    %3211 = vdwg.mxu0
    %3212 = vmatprep.subr.bf16.mxu0 %v627
    %3213 = vmatpush1.bf16.msra.mxu0 %v626
    %3214 = vmatprep.subr.bf16.mxu0 %v623
    %3215 = vmatpush1.bf16.msra.mxu0 %v622
    %3216 = vmatprep.subr.bf16.mxu0 %v619
    %3217 = vmatpush1.bf16.msra.mxu0 %v618
    %3218 = vmatprep.subr.bf16.mxu0 %v615
    %3219 = vmatpush1.bf16.msra.mxu0 %v614
    %3220 = vmatprep.subr.bf16.mxu0 %v611
    %3221 = vmatpush1.bf16.msra.mxu0 %v610
    %3222 = vmatprep.subr.bf16.mxu0 %v607
    %3223 = vmatpush1.bf16.msra.mxu0 %v606
    %3224 = vmatprep.subr.bf16.mxu0 %v603
    %3225 = vmatpush1.bf16.msra.mxu0 %v602
    %3226 = vmatprep.subr.bf16.mxu0 %v599
    %3227 = vmatpush1.bf16.msra.mxu0 %v598
    %3228 = vmatprep.subr.bf16.mxu0 0
    %3229 = vmatpush2.bf16.msra.mxu0 0
    %3230 = vmatprep.subr.bf16.mxu0 0
    %3231 = vmatpush2.bf16.msra.mxu0 0
    %3232 = vmatprep.subr.bf16.mxu0 0
    %3233 = vmatpush2.bf16.msra.mxu0 0
    %3234 = vmatprep.subr.bf16.mxu0 0
    %3235 = vmatpush2.bf16.msra.mxu0 0
    %3236 = vmatprep.subr.bf16.mxu0 0
    %3237 = vmatpush2.bf16.msra.mxu0 0
    %3238 = vmatprep.subr.bf16.mxu0 0
    %3239 = vmatpush2.bf16.msra.mxu0 0
    %3240 = vmatprep.subr.bf16.mxu0 0
    %3241 = vmatpush2.bf16.msra.mxu0 0
    %3242 = vmatprep.subr.bf16.mxu0 0
    %3243 = vmatpush2.bf16.msra.mxu0 0
    %3244 = vmatprep.mubr.bf16.mxu0 0
    %3245 = vmatmul.mubr.bf16.gmra.mxu0 %v2977
    %v3246 = vpop.f32.mrf.mxu0
    %v3247 = vadd.f32 0.0, %v3246
    %v3248 = vpop.f32.mrf.mxu0
    %v3249 = vadd.f32 0.0, %v3248
    %v3250 = vpop.f32.mrf.mxu0
    %v3251 = vpop.f32.mrf.mxu0
    %3252 = vdwg.mxu0
    %v3253 = vadd.f32 %v369, %v3206
    %v3254 = vadd.f32 %v371, %v3208
    %v3255 = vadd.f32 %v442, %v3247
    %v3256 = vadd.f32 %v444, %v3249
    %v3257 = vxor.u32 %v3253, 2147483648
    %v3258 = vmul.f32 %v3257, 1.442695
    %v3259 = vpow.pop %v3258
    %v3260 = vadd.f32 %v3259, 1.0
    %v3261 = vrcp.pop %v3260
    %v3262 = vmul.f32 1.0, %v3261
    %v3263 = vxor.u32 %v3254, 2147483648
    %v3264 = vmul.f32 %v3263, 1.442695
    %v3265 = vpow.pop %v3264
    %v3266 = vadd.f32 %v3265, 1.0
    %v3267 = vrcp.pop %v3266
    %v3268 = vmul.f32 1.0, %v3267
    %v3269 = vtanh.pop %v3255
    %v3270 = vxor.u32 %v3256, 2147483648
    %v3271 = vmul.f32 %v3270, 1.442695
    %v3272 = vpow.pop %v3271
    %v3273 = vadd.f32 %v3272, 1.0
    %v3274 = vrcp.pop %v3273
    %v3275 = vmul.f32 1.0, %v3274
    %v3276 = vmul.f32 %v3268, %v2974
    %v3277 = vmul.f32 %v3262, %v3269
    %v3278 = vadd.f32 %v3276, %v3277
    %v3279 = vtanh.pop %v3278
    %v3280 = vmul.f32 %v3275, %v3279
    %v3281 = vpack.c.bf16 %v3280, %v3280
    %v3282 = vpack.c.bf16 %v3170, %v3170
    %3283 = vmatprep.subr.bf16.mxu0 %v960
    %3284 = vmatpush1.bf16.msra.mxu0 %v959
    %3285 = vmatprep.subr.bf16.mxu0 %v956
    %3286 = vmatpush1.bf16.msra.mxu0 %v955
    %3287 = vmatprep.subr.bf16.mxu0 %v952
    %3288 = vmatpush1.bf16.msra.mxu0 %v951
    %3289 = vmatprep.subr.bf16.mxu0 %v948
    %3290 = vmatpush1.bf16.msra.mxu0 %v947
    %3291 = vmatprep.subr.bf16.mxu0 %v944
    %3292 = vmatpush1.bf16.msra.mxu0 %v943
    %3293 = vmatprep.subr.bf16.mxu0 %v940
    %3294 = vmatpush1.bf16.msra.mxu0 %v939
    %3295 = vmatprep.subr.bf16.mxu0 %v936
    %3296 = vmatpush1.bf16.msra.mxu0 %v935
    %3297 = vmatprep.subr.bf16.mxu0 %v932
    %3298 = vmatpush1.bf16.msra.mxu0 %v931
    %3299 = vmatprep.subr.bf16.mxu0 0
    %3300 = vmatpush2.bf16.msra.mxu0 0
    %3301 = vmatprep.subr.bf16.mxu0 0
    %3302 = vmatpush2.bf16.msra.mxu0 0
    %3303 = vmatprep.subr.bf16.mxu0 0
    %3304 = vmatpush2.bf16.msra.mxu0 0
    %3305 = vmatprep.subr.bf16.mxu0 0
    %3306 = vmatpush2.bf16.msra.mxu0 0
    %3307 = vmatprep.subr.bf16.mxu0 0
    %3308 = vmatpush2.bf16.msra.mxu0 0
    %3309 = vmatprep.subr.bf16.mxu0 0
    %3310 = vmatpush2.bf16.msra.mxu0 0
    %3311 = vmatprep.subr.bf16.mxu0 0
    %3312 = vmatpush2.bf16.msra.mxu0 0
    %3313 = vmatprep.subr.bf16.mxu0 0
    %3314 = vmatpush2.bf16.msra.mxu0 0
    %3315 = vmatprep.mubr.bf16.mxu0 0
    %3316 = vmatmul.mubr.bf16.gmra.mxu0 %v3282
    %v3317 = vpop.f32.mrf.mxu0
    %v3318 = vadd.f32 0.0, %v3317
    %v3319 = vpop.f32.mrf.mxu0
    %v3320 = vadd.f32 0.0, %v3319
    %v3321 = vpop.f32.mrf.mxu0
    %v3322 = vpop.f32.mrf.mxu0
    %3323 = vdwg.mxu0
    %3324 = vmatprep.subr.bf16.mxu0 %v962
    %3325 = vmatpush1.bf16.msra.mxu0 %v961
    %3326 = vmatprep.subr.bf16.mxu0 %v958
    %3327 = vmatpush1.bf16.msra.mxu0 %v957
    %3328 = vmatprep.subr.bf16.mxu0 %v954
    %3329 = vmatpush1.bf16.msra.mxu0 %v953
    %3330 = vmatprep.subr.bf16.mxu0 %v950
    %3331 = vmatpush1.bf16.msra.mxu0 %v949
    %3332 = vmatprep.subr.bf16.mxu0 %v946
    %3333 = vmatpush1.bf16.msra.mxu0 %v945
    %3334 = vmatprep.subr.bf16.mxu0 %v942
    %3335 = vmatpush1.bf16.msra.mxu0 %v941
    %3336 = vmatprep.subr.bf16.mxu0 %v938
    %3337 = vmatpush1.bf16.msra.mxu0 %v937
    %3338 = vmatprep.subr.bf16.mxu0 %v934
    %3339 = vmatpush1.bf16.msra.mxu0 %v933
    %3340 = vmatprep.subr.bf16.mxu0 0
    %3341 = vmatpush2.bf16.msra.mxu0 0
    %3342 = vmatprep.subr.bf16.mxu0 0
    %3343 = vmatpush2.bf16.msra.mxu0 0
    %3344 = vmatprep.subr.bf16.mxu0 0
    %3345 = vmatpush2.bf16.msra.mxu0 0
    %3346 = vmatprep.subr.bf16.mxu0 0
    %3347 = vmatpush2.bf16.msra.mxu0 0
    %3348 = vmatprep.subr.bf16.mxu0 0
    %3349 = vmatpush2.bf16.msra.mxu0 0
    %3350 = vmatprep.subr.bf16.mxu0 0
    %3351 = vmatpush2.bf16.msra.mxu0 0
    %3352 = vmatprep.subr.bf16.mxu0 0
    %3353 = vmatpush2.bf16.msra.mxu0 0
    %3354 = vmatprep.subr.bf16.mxu0 0
    %3355 = vmatpush2.bf16.msra.mxu0 0
    %3356 = vmatprep.mubr.bf16.mxu0 0
    %3357 = vmatmul.mubr.bf16.gmra.mxu0 %v3282
    %v3358 = vpop.f32.mrf.mxu0
    %v3359 = vadd.f32 0.0, %v3358
    %v3360 = vpop.f32.mrf.mxu0
    %v3361 = vadd.f32 0.0, %v3360
    %v3362 = vpop.f32.mrf.mxu0
    %v3363 = vpop.f32.mrf.mxu0
    %3364 = vdwg.mxu0
    %3365 = vmatprep.subr.bf16.mxu0 %v1202
    %3366 = vmatpush1.bf16.msra.mxu0 %v1201
    %3367 = vmatprep.subr.bf16.mxu0 %v1198
    %3368 = vmatpush1.bf16.msra.mxu0 %v1197
    %3369 = vmatprep.subr.bf16.mxu0 %v1194
    %3370 = vmatpush1.bf16.msra.mxu0 %v1193
    %3371 = vmatprep.subr.bf16.mxu0 %v1190
    %3372 = vmatpush1.bf16.msra.mxu0 %v1189
    %3373 = vmatprep.subr.bf16.mxu0 %v1186
    %3374 = vmatpush1.bf16.msra.mxu0 %v1185
    %3375 = vmatprep.subr.bf16.mxu0 %v1182
    %3376 = vmatpush1.bf16.msra.mxu0 %v1181
    %3377 = vmatprep.subr.bf16.mxu0 %v1178
    %3378 = vmatpush1.bf16.msra.mxu0 %v1177
    %3379 = vmatprep.subr.bf16.mxu0 %v1174
    %3380 = vmatpush1.bf16.msra.mxu0 %v1173
    %3381 = vmatprep.subr.bf16.mxu0 0
    %3382 = vmatpush2.bf16.msra.mxu0 0
    %3383 = vmatprep.subr.bf16.mxu0 0
    %3384 = vmatpush2.bf16.msra.mxu0 0
    %3385 = vmatprep.subr.bf16.mxu0 0
    %3386 = vmatpush2.bf16.msra.mxu0 0
    %3387 = vmatprep.subr.bf16.mxu0 0
    %3388 = vmatpush2.bf16.msra.mxu0 0
    %3389 = vmatprep.subr.bf16.mxu0 0
    %3390 = vmatpush2.bf16.msra.mxu0 0
    %3391 = vmatprep.subr.bf16.mxu0 0
    %3392 = vmatpush2.bf16.msra.mxu0 0
    %3393 = vmatprep.subr.bf16.mxu0 0
    %3394 = vmatpush2.bf16.msra.mxu0 0
    %3395 = vmatprep.subr.bf16.mxu0 0
    %3396 = vmatpush2.bf16.msra.mxu0 0
    %3397 = vmatprep.mubr.bf16.mxu0 0
    %3398 = vmatmul.mubr.bf16.gmra.mxu0 %v3281
    %v3399 = vpop.f32.mrf.mxu0
    %v3400 = vadd.f32 %v3318, %v3399
    %v3401 = vpop.f32.mrf.mxu0
    %v3402 = vadd.f32 %v3320, %v3401
    %v3403 = vpop.f32.mrf.mxu0
    %v3404 = vpop.f32.mrf.mxu0
    %3405 = vdwg.mxu0
    %3406 = vmatprep.subr.bf16.mxu0 %v1204
    %3407 = vmatpush1.bf16.msra.mxu0 %v1203
    %3408 = vmatprep.subr.bf16.mxu0 %v1200
    %3409 = vmatpush1.bf16.msra.mxu0 %v1199
    %3410 = vmatprep.subr.bf16.mxu0 %v1196
    %3411 = vmatpush1.bf16.msra.mxu0 %v1195
    %3412 = vmatprep.subr.bf16.mxu0 %v1192
    %3413 = vmatpush1.bf16.msra.mxu0 %v1191
    %3414 = vmatprep.subr.bf16.mxu0 %v1188
    %3415 = vmatpush1.bf16.msra.mxu0 %v1187
    %3416 = vmatprep.subr.bf16.mxu0 %v1184
    %3417 = vmatpush1.bf16.msra.mxu0 %v1183
    %3418 = vmatprep.subr.bf16.mxu0 %v1180
    %3419 = vmatpush1.bf16.msra.mxu0 %v1179
    %3420 = vmatprep.subr.bf16.mxu0 %v1176
    %3421 = vmatpush1.bf16.msra.mxu0 %v1175
    %3422 = vmatprep.subr.bf16.mxu0 0
    %3423 = vmatpush2.bf16.msra.mxu0 0
    %3424 = vmatprep.subr.bf16.mxu0 0
    %3425 = vmatpush2.bf16.msra.mxu0 0
    %3426 = vmatprep.subr.bf16.mxu0 0
    %3427 = vmatpush2.bf16.msra.mxu0 0
    %3428 = vmatprep.subr.bf16.mxu0 0
    %3429 = vmatpush2.bf16.msra.mxu0 0
    %3430 = vmatprep.subr.bf16.mxu0 0
    %3431 = vmatpush2.bf16.msra.mxu0 0
    %3432 = vmatprep.subr.bf16.mxu0 0
    %3433 = vmatpush2.bf16.msra.mxu0 0
    %3434 = vmatprep.subr.bf16.mxu0 0
    %3435 = vmatpush2.bf16.msra.mxu0 0
    %3436 = vmatprep.subr.bf16.mxu0 0
    %3437 = vmatpush2.bf16.msra.mxu0 0
    %3438 = vmatprep.mubr.bf16.mxu0 0
    %3439 = vmatmul.mubr.bf16.gmra.mxu0 %v3281
    %v3440 = vpop.f32.mrf.mxu0
    %v3441 = vadd.f32 %v3359, %v3440
    %v3442 = vpop.f32.mrf.mxu0
    %v3443 = vadd.f32 %v3361, %v3442
    %v3444 = vpop.f32.mrf.mxu0
    %v3445 = vpop.f32.mrf.mxu0
    %3446 = vdwg.mxu0
    %v3447 = vadd.f32 %v3400, %v451
    %v3448 = vadd.f32 %v3402, %v455
    %v3449 = vadd.f32 %v3441, %v459
    %v3450 = vadd.f32 %v3443, %v463
    %v3451 = vxor.u32 %v3447, 2147483648
    %v3452 = vmul.f32 %v3451, 1.442695
    %v3453 = vpow.pop %v3452
    %v3454 = vadd.f32 %v3453, 1.0
    %v3455 = vrcp.pop %v3454
    %v3456 = vmul.f32 1.0, %v3455
    %v3457 = vxor.u32 %v3448, 2147483648
    %v3458 = vmul.f32 %v3457, 1.442695
    %v3459 = vpow.pop %v3458
    %v3460 = vadd.f32 %v3459, 1.0
    %v3461 = vrcp.pop %v3460
    %v3462 = vmul.f32 1.0, %v3461
    %v3463 = vtanh.pop %v3449
    %v3464 = vxor.u32 %v3450, 2147483648
    %v3465 = vmul.f32 %v3464, 1.442695
    %v3466 = vpow.pop %v3465
    %v3467 = vadd.f32 %v3466, 1.0
    %v3468 = vrcp.pop %v3467
    %v3469 = vmul.f32 1.0, %v3468
    %v3470 = vmul.f32 %v3462, %v3168
    %v3471 = vmul.f32 %v3456, %v3463
    %v3472 = vadd.f32 %v3470, %v3471
    %v3473 = vtanh.pop %v3472
    %v3474 = vmul.f32 %v3469, %v3473
    %v3475 = vld [vmem:[%s7] sm:$0xff]
    %v3476 = vld [vmem:[%s7 + $0x8] sm:$0xff]
    %v3477 = vld [vmem:[%s7 + $0x10] sm:$0xff]
    %v3478 = vld [vmem:[%s7 + $0x18] sm:$0xff]
    %v3479 = vld [vmem:[%s7 + $0x20] sm:$0xff]
    %v3480 = vld [vmem:[%s7 + $0x28] sm:$0xff]
    %v3481 = vld [vmem:[%s7 + $0x30] sm:$0xff]
    %v3482 = vld [vmem:[%s7 + $0x38] sm:$0xff]
    %v3483 = vld [vmem:[%s7 + $0x40] sm:$0xff]
    %v3484 = vld [vmem:[%s7 + $0x48] sm:$0xff]
    %v3485 = vld [vmem:[%s7 + $0x50] sm:$0xff]
    %v3486 = vld [vmem:[%s7 + $0x58] sm:$0xff]
    %v3487 = vld [vmem:[%s7 + $0x60] sm:$0xff]
    %v3488 = vld [vmem:[%s7 + $0x68] sm:$0xff]
    %v3489 = vld [vmem:[%s7 + $0x70] sm:$0xff]
    %v3490 = vld [vmem:[%s7 + $0x78] sm:$0xff]
    %v3491 = vld [vmem:[%s8] sm:$0x1]
    %v3493 = vlaneseq
    %v3494 = vshrl.u32 %v3493, 7
    %v3495 = vsub.s32 0, %v3494
    %v3496 = vrot.slane %v3491, %v3495
    %3498 = vmatprep.subr.mxu0 0.0
    %3499 = vmatpush1.msra.mxu0 %v3490
    %3500 = vmatprep.subr.mxu0 0.0
    %3501 = vmatpush1.msra.mxu0 %v3489
    %3502 = vmatprep.subr.mxu0 0.0
    %3503 = vmatpush1.msra.mxu0 %v3488
    %3504 = vmatprep.subr.mxu0 0.0
    %3505 = vmatpush1.msra.mxu0 %v3487
    %3506 = vmatprep.subr.mxu0 0.0
    %3507 = vmatpush1.msra.mxu0 %v3486
    %3508 = vmatprep.subr.mxu0 0.0
    %3509 = vmatpush1.msra.mxu0 %v3485
    %3510 = vmatprep.subr.mxu0 0.0
    %3511 = vmatpush1.msra.mxu0 %v3484
    %3512 = vmatprep.subr.mxu0 0.0
    %3513 = vmatpush1.msra.mxu0 %v3483
    %3514 = vmatprep.subr.mxu0 0.0
    %3515 = vmatpush1.msra.mxu0 %v3482
    %3516 = vmatprep.subr.mxu0 0.0
    %3517 = vmatpush1.msra.mxu0 %v3481
    %3518 = vmatprep.subr.mxu0 0.0
    %3519 = vmatpush1.msra.mxu0 %v3480
    %3520 = vmatprep.subr.mxu0 0.0
    %3521 = vmatpush1.msra.mxu0 %v3479
    %3522 = vmatprep.subr.mxu0 0.0
    %3523 = vmatpush1.msra.mxu0 %v3478
    %3524 = vmatprep.subr.mxu0 0.0
    %3525 = vmatpush1.msra.mxu0 %v3477
    %3526 = vmatprep.subr.mxu0 0.0
    %3527 = vmatpush1.msra.mxu0 %v3476
    %3528 = vmatprep.subr.mxu0 0.0
    %3529 = vmatpush1.msra.mxu0 %v3475
    %3530 = vmatprep.subr.mxu0 0.0
    %3531 = vmatpush2.msra.mxu0 0.0
    %3532 = vmatprep.subr.mxu0 0.0
    %3533 = vmatpush2.msra.mxu0 0.0
    %3534 = vmatprep.subr.mxu0 0.0
    %3535 = vmatpush2.msra.mxu0 0.0
    %3536 = vmatprep.subr.mxu0 0.0
    %3537 = vmatpush2.msra.mxu0 0.0
    %3538 = vmatprep.subr.mxu0 0.0
    %3539 = vmatpush2.msra.mxu0 0.0
    %3540 = vmatprep.subr.mxu0 0.0
    %3541 = vmatpush2.msra.mxu0 0.0
    %3542 = vmatprep.subr.mxu0 0.0
    %3543 = vmatpush2.msra.mxu0 0.0
    %3544 = vmatprep.subr.mxu0 0.0
    %3545 = vmatpush2.msra.mxu0 0.0
    %3546 = vmatprep.subr.mxu0 0.0
    %3547 = vmatpush2.msra.mxu0 0.0
    %3548 = vmatprep.subr.mxu0 0.0
    %3549 = vmatpush2.msra.mxu0 0.0
    %3550 = vmatprep.subr.mxu0 0.0
    %3551 = vmatpush2.msra.mxu0 0.0
    %3552 = vmatprep.subr.mxu0 0.0
    %3553 = vmatpush2.msra.mxu0 0.0
    %3554 = vmatprep.subr.mxu0 0.0
    %3555 = vmatpush2.msra.mxu0 0.0
    %3556 = vmatprep.subr.mxu0 0.0
    %3557 = vmatpush2.msra.mxu0 0.0
    %3558 = vmatprep.subr.mxu0 0.0
    %3559 = vmatpush2.msra.mxu0 0.0
    %3560 = vmatprep.subr.mxu0 0.0
    %3561 = vmatpush2.msra.mxu0 0.0
    %3562 = vmatprep.mubr.f32.mxu0 0.0
    %3563 = vmatmul.mubr.f32.gmra.mxu0 %v3474
    %v3564 = vpop.f32.mrf.mxu0
    %v3565 = vadd.f32 %v3496, %v3564
    %v3566 = vpop.f32.mrf.mxu0
    %3567 = vdwg.mxu0
    %3568 = vst [vmem:[%s9] sm:$0xff] %v3565
    // Predicated region
    $region50: #{_lambda_.1} parent=1 // pred_check
      _
    $region51: #{_lambda_.1} parent=1 // pred_check_branch
      %3570 = sbr.rel (0) target = $region53
    $region52: #{_lambda_.1} parent=1 // pred_region
      _
    $region53: #{_lambda_.1} parent=1 // pred_fallthru
      _
    // Predicated region
    $region54: #{_lambda_.1} parent=1 // pred_check
      _
    $region55: #{_lambda_.1} parent=1 // pred_check_branch
      %3572 = sbr.rel (0) target = $region57
    $region56: #{_lambda_.1} parent=1 // pred_region
      _
    $region57: #{_lambda_.1} parent=1 // pred_fallthru
      _
    %3573 = vsyncpa [#allocation3], 1
    %3574 = vsyncpa [#allocation5], 1

</llo_original>
